<compile_context>
chip_gen: v7x
topology: tpu7x:2x2x1
jax: 0.10.0
libtpu: 0.0.40
codegen_flags: <defaults>
</compile_context>

<pallas_src>
import jax
import jax.numpy as jnp
from jax.experimental import pallas as pl
from jax.experimental.pallas import tpu as pltpu

ATTN_MAPS = 32        # config['attention_map_num']
C_TEXTURE = 1024      # in-channels of attention_texture conv
C_TARGET = 2048       # in-channels of attention_target conv
BN_EPS = 1e-3
MAX_COL_TILE = 512    # spatial-pixel (lane) tile; bf16 operands => ~13 MiB/step double-buffered


def _fused_attention_kernel(x1_ref, x2s_ref, wt_ref, wx_ref,
                            t_scale_ref, t_shift_ref,
                            x_scale_ref, x_shift_ref,
                            o_ref):
    """One (batch, spatial-tile) block of the fused forward.

    x1_ref  : (1, C_TARGET, TN)     bf16  target-branch pixels (channel-major)
    x2s_ref : (1, 4, C_TEXTURE, TN) bf16  texture pixels, four 2x2 sub-grids
    wt_ref  : (M, C_TARGET)         bf16  target conv weight (native layout)
    wx_ref  : (M, C_TEXTURE)        bf16  texture conv weight
    *_scale / *_shift : (M, 1) f32  folded eval-mode BN (texture pair already
                                    includes the 0.25 avg-pool factor)
    o_ref   : (1, M, TN)            f32
    """
    # ---- target branch: conv1x1 -> BN -> ReLU (f32 accumulate on MXU) -------
    acc = jnp.dot(wt_ref[...], x1_ref[0], preferred_element_type=jnp.float32)
    acc = jnp.maximum(acc * t_scale_ref[...] + t_shift_ref[...], 0.0)

    # ---- texture branch: four 2x2 sub-grids, ReLU'd then accumulated --------
    wx = wx_ref[...]
    xs = x_scale_ref[...]
    xb = x_shift_ref[...]
    for k in range(4):  # unrolled; single accumulator keeps vreg pressure low
        y = jnp.dot(wx, x2s_ref[0, k], preferred_element_type=jnp.float32)
        acc = acc + jnp.maximum(y * xs + xb, 0.0)

    o_ref[0] = acc.astype(o_ref.dtype)


@jax.jit
def dbl_attention_forward(x2, x1, params):
    """x2: (B, 1024, H2, W2) NCHW, x1: (B, 2048, H1, W1) NCHW, H2 = 2*H1."""
    B, C2, H2, W2 = x2.shape
    _, C1, H1, W1 = x1.shape
    M = ATTN_MAPS
    S1 = H1 * W1

    # ---- glue: no transposes for x1 / output; one fused cast+regroup for x2 --
    x1_cm = x1.reshape(B, C1, S1).astype(jnp.bfloat16)          # free reshape + cast
    x2r = x2.reshape(B, C2, H1, 2, W1, 2)                       # free split of H2/W2
    x2s = (jnp.transpose(x2r, (0, 3, 5, 1, 2, 4))               # (B, di, dj, C2, H1, W1)
           .astype(jnp.bfloat16)
           .reshape(B, 4, C2, S1))                              # sub-grid k = 2*di + dj

    # conv weights kept in native (M, Cin) layout, cast to bf16
    wt = params['w_target'].reshape(M, C1).astype(jnp.bfloat16)
    wx = params['w_texture'].reshape(M, C2).astype(jnp.bfloat16)

    # fold eval-mode BatchNorm (and the avg-pool 1/4 for texture) into scale/shift
    def bn_fold(gamma, beta, mean, var, factor):
        inv = gamma / jnp.sqrt(var + BN_EPS)
        scale = (factor * inv).reshape(M, 1).astype(jnp.float32)
        shift = (factor * (beta - mean * inv)).reshape(M, 1).astype(jnp.float32)
        return scale, shift

    t_scale, t_shift = bn_fold(params['bn_t_gamma'], params['bn_t_beta'],
                               params['bn_t_mean'], params['bn_t_var'], 1.0)
    x_scale, x_shift = bn_fold(params['bn_x_gamma'], params['bn_x_beta'],
                               params['bn_x_mean'], params['bn_x_var'], 0.25)

    TN = S1 if S1 <= MAX_COL_TILE else MAX_COL_TILE
    grid = (B, pl.cdiv(S1, TN))

    vec_spec = pl.BlockSpec((M, 1), lambda b, j: (0, 0))

    out_flat = pl.pallas_call(
        _fused_attention_kernel,
        out_shape=jax.ShapeDtypeStruct((B, M, S1), jnp.float32),
        grid_spec=pltpu.PrefetchScalarGridSpec(
            num_scalar_prefetch=0,
            grid=grid,
            in_specs=[
                pl.BlockSpec((1, C1, TN), lambda b, j: (b, 0, j)),
                pl.BlockSpec((1, 4, C2, TN), lambda b, j: (b, 0, 0, j)),
                pl.BlockSpec((M, C1), lambda b, j: (0, 0)),
                pl.BlockSpec((M, C2), lambda b, j: (0, 0)),
                vec_spec, vec_spec, vec_spec, vec_spec,
            ],
            out_specs=pl.BlockSpec((1, M, TN), lambda b, j: (b, 0, j)),
        ),
        compiler_params=pltpu.CompilerParams(
            dimension_semantics=("parallel", "parallel"),
            vmem_limit_bytes=48 * 1024 * 1024),
    )(x1_cm, x2s, wt, wx, t_scale, t_shift, x_scale, x_shift)

    # ---- glue: output is already NCHW-flattened; only a free reshape --------
    return out_flat.reshape(B, M, H1, W1)


def _reference(x2, x1, params):
    """Pure-JAX f32 reference of the PyTorch forward (eval-mode BatchNorm)."""
    M = ATTN_MAPS

    def conv_bn_relu(x, w, gamma, beta, mean, var):
        y = jnp.einsum('bchw,mc->bmhw', x, w.reshape(M, -1),
                       preferred_element_type=jnp.float32)
        inv = gamma / jnp.sqrt(var + BN_EPS)
        y = y * inv[None, :, None, None] + (beta - mean * inv)[None, :, None, None]
        return jnp.maximum(y, 0.0)

    tgt = conv_bn_relu(x1, params['w_target'], params['bn_t_gamma'],
                       params['bn_t_beta'], params['bn_t_mean'],
                       params['bn_t_var'])
    tex = conv_bn_relu(x2, params['w_texture'], params['bn_x_gamma'],
                       params['bn_x_beta'], params['bn_x_mean'],
                       params['bn_x_var'])
    pooled = 0.25 * (tex[:, :, 0::2, 0::2] + tex[:, :, 0::2, 1::2]
                     + tex[:, :, 1::2, 0::2] + tex[:, :, 1::2, 1::2])
    return tgt + pooled


def _make_params():
    """Deterministic synthetic parameters matching the module's shapes."""
    M = ATTN_MAPS
    keys = jax.random.split(jax.random.PRNGKey(42), 10)
    return {
        # Conv2d weights: (out, in, 1, 1), bias=False
        'w_target': 0.02 * jax.random.normal(keys[0], (M, C_TARGET, 1, 1), jnp.float32),
        'w_texture': 0.02 * jax.random.normal(keys[1], (M, C_TEXTURE, 1, 1), jnp.float32),
        # BatchNorm2d(M) parameters + running stats (eval-mode semantics)
        'bn_t_gamma': 1.0 + 0.1 * jax.random.normal(keys[2], (M,), jnp.float32),
        'bn_t_beta': 0.05 * jax.random.normal(keys[3], (M,), jnp.float32),
        'bn_t_mean': 0.1 * jax.random.normal(keys[4], (M,), jnp.float32),
        'bn_t_var': 1.0 + 0.1 * jax.random.uniform(keys[5], (M,), jnp.float32),
        'bn_x_gamma': 1.0 + 0.1 * jax.random.normal(keys[6], (M,), jnp.float32),
        'bn_x_beta': 0.05 * jax.random.normal(keys[7], (M,), jnp.float32),
        'bn_x_mean': 0.1 * jax.random.normal(keys[8], (M,), jnp.float32),
        'bn_x_var': 1.0 + 0.1 * jax.random.uniform(keys[9], (M,), jnp.float32),
    }


if __name__ == "__main__":
    # Small spatial dims consistent with the module: x1 is the deeper feature
    # map (2048 ch), x2 the shallower one (1024 ch) at 2x the resolution.
    B, H1, W1 = 2, 4, 4
    H2, W2 = 2 * H1, 2 * W1

    k1, k2 = jax.random.split(jax.random.PRNGKey(0))
    x1 = jax.random.normal(k1, (B, C_TARGET, H1, W1), jnp.float32)   # NCHW
    x2 = jax.random.normal(k2, (B, C_TEXTURE, H2, W2), jnp.float32)  # NCHW

    params = _make_params()

    out = dbl_attention_forward(x2, x1, params)
    out = jax.block_until_ready(out)

    ref = _reference(x2, x1, params)
    assert out.shape == (B, ATTN_MAPS, H1, W1), out.shape
    assert jnp.allclose(out, ref, rtol=2e-2, atol=2e-2), (
        float(jnp.max(jnp.abs(out - ref))))

    print("KERNEL_OK")
</pallas_src>

<mosaic_0001>
module attributes {stable_mosaic.version = 11 : i64} {
  func.func @_fused_attention_kernel(%arg0: i32, %arg1: i32, %arg2: memref<1x2048x16xbf16, #tpu.memory_space<vmem>>, %arg3: memref<1x4x1024x16xbf16, #tpu.memory_space<vmem>>, %arg4: memref<32x2048xbf16, #tpu.memory_space<vmem>>, %arg5: memref<32x1024xbf16, #tpu.memory_space<vmem>>, %arg6: memref<32x1xf32, #tpu.memory_space<vmem>>, %arg7: memref<32x1xf32, #tpu.memory_space<vmem>>, %arg8: memref<32x1xf32, #tpu.memory_space<vmem>>, %arg9: memref<32x1xf32, #tpu.memory_space<vmem>>, %arg10: memref<1x32x16xf32, #tpu.memory_space<vmem>>) attributes {dimension_semantics = [#tpu.dimension_semantics<parallel>, #tpu.dimension_semantics<parallel>], iteration_bounds = array<i64: 2, 1>, scalar_prefetch = 0 : i64, scratch_operands = 0 : i64, tpu.core_type = #tpu.core_type<tc>, window_params = [{transform_indices = @transform_0, window_bounds = array<i64: 1, 2048, 16>}, {transform_indices = @transform_1, window_bounds = array<i64: 1, 4, 1024, 16>}, {pipeline_mode = #tpu.pipeline_mode<synchronous>, transform_indices = @transform_2, window_bounds = array<i64: 32, 2048>}, {pipeline_mode = #tpu.pipeline_mode<synchronous>, transform_indices = @transform_3, window_bounds = array<i64: 32, 1024>}, {pipeline_mode = #tpu.pipeline_mode<synchronous>, transform_indices = @transform_4, window_bounds = array<i64: 32, 1>}, {pipeline_mode = #tpu.pipeline_mode<synchronous>, transform_indices = @transform_5, window_bounds = array<i64: 32, 1>}, {pipeline_mode = #tpu.pipeline_mode<synchronous>, transform_indices = @transform_6, window_bounds = array<i64: 32, 1>}, {pipeline_mode = #tpu.pipeline_mode<synchronous>, transform_indices = @transform_7, window_bounds = array<i64: 32, 1>}, {transform_indices = @transform_8, window_bounds = array<i64: 1, 32, 16>}]} {
    %c0 = arith.constant 0 : index
    %c0_0 = arith.constant 0 : index
    %0 = vector.load %arg4[%c0, %c0_0] : memref<32x2048xbf16, #tpu.memory_space<vmem>>, vector<32x2048xbf16>
    %c0_1 = arith.constant 0 : index
    %c0_2 = arith.constant 0 : index
    %c0_3 = arith.constant 0 : index
    %1 = vector.load %arg2[%c0_1, %c0_2, %c0_3] : memref<1x2048x16xbf16, #tpu.memory_space<vmem>>, vector<1x2048x16xbf16>
    %2 = vector.shape_cast %1 : vector<1x2048x16xbf16> to vector<2048x16xbf16>
    %cst = arith.constant dense<0.000000e+00> : vector<32x16xf32>
    %3 = tpu.matmul %0, %2, %cst {dimension_numbers = #tpu.dot_dimension_numbers<[1], [0], [0], [1], [0, 0, 1, 1], [], []>} : vector<32x2048xbf16>, vector<2048x16xbf16>, vector<32x16xf32> -> vector<32x16xf32>
    %c0_4 = arith.constant 0 : index
    %c0_5 = arith.constant 0 : index
    %4 = vector.load %arg6[%c0_4, %c0_5] : memref<32x1xf32, #tpu.memory_space<vmem>>, vector<32x1xf32>
    %5 = vector.broadcast %4 : vector<32x1xf32> to vector<32x16xf32>
    %6 = arith.mulf %3, %5 : vector<32x16xf32>
    %c0_6 = arith.constant 0 : index
    %c0_7 = arith.constant 0 : index
    %7 = vector.load %arg7[%c0_6, %c0_7] : memref<32x1xf32, #tpu.memory_space<vmem>>, vector<32x1xf32>
    %8 = vector.broadcast %7 : vector<32x1xf32> to vector<32x16xf32>
    %9 = arith.addf %6, %8 : vector<32x16xf32>
    %cst_8 = arith.constant 0.000000e+00 : f32
    %10 = vector.broadcast %cst_8 : f32 to vector<32x16xf32>
    %11 = arith.maximumf %9, %10 : vector<32x16xf32>
    %c0_9 = arith.constant 0 : index
    %c0_10 = arith.constant 0 : index
    %12 = vector.load %arg5[%c0_9, %c0_10] : memref<32x1024xbf16, #tpu.memory_space<vmem>>, vector<32x1024xbf16>
    %c0_11 = arith.constant 0 : index
    %c0_12 = arith.constant 0 : index
    %13 = vector.load %arg8[%c0_11, %c0_12] : memref<32x1xf32, #tpu.memory_space<vmem>>, vector<32x1xf32>
    %c0_13 = arith.constant 0 : index
    %c0_14 = arith.constant 0 : index
    %14 = vector.load %arg9[%c0_13, %c0_14] : memref<32x1xf32, #tpu.memory_space<vmem>>, vector<32x1xf32>
    %c0_15 = arith.constant 0 : index
    %c0_16 = arith.constant 0 : index
    %c0_17 = arith.constant 0 : index
    %c0_18 = arith.constant 0 : index
    %15 = vector.load %arg3[%c0_15, %c0_16, %c0_17, %c0_18] : memref<1x4x1024x16xbf16, #tpu.memory_space<vmem>>, vector<1x1x1024x16xbf16>
    %16 = vector.shape_cast %15 : vector<1x1x1024x16xbf16> to vector<1024x16xbf16>
    %cst_19 = arith.constant dense<0.000000e+00> : vector<32x16xf32>
    %17 = tpu.matmul %12, %16, %cst_19 {dimension_numbers = #tpu.dot_dimension_numbers<[1], [0], [0], [1], [0, 0, 1, 1], [], []>} : vector<32x1024xbf16>, vector<1024x16xbf16>, vector<32x16xf32> -> vector<32x16xf32>
    %18 = vector.broadcast %13 : vector<32x1xf32> to vector<32x16xf32>
    %19 = arith.mulf %17, %18 : vector<32x16xf32>
    %20 = vector.broadcast %14 : vector<32x1xf32> to vector<32x16xf32>
    %21 = arith.addf %19, %20 : vector<32x16xf32>
    %cst_20 = arith.constant 0.000000e+00 : f32
    %22 = vector.broadcast %cst_20 : f32 to vector<32x16xf32>
    %23 = arith.maximumf %21, %22 : vector<32x16xf32>
    %24 = arith.addf %11, %23 : vector<32x16xf32>
    %c0_21 = arith.constant 0 : index
    %c1 = arith.constant 1 : index
    %c0_22 = arith.constant 0 : index
    %c0_23 = arith.constant 0 : index
    %25 = vector.load %arg3[%c0_21, %c1, %c0_22, %c0_23] : memref<1x4x1024x16xbf16, #tpu.memory_space<vmem>>, vector<1x1x1024x16xbf16>
    %26 = vector.shape_cast %25 : vector<1x1x1024x16xbf16> to vector<1024x16xbf16>
    %cst_24 = arith.constant dense<0.000000e+00> : vector<32x16xf32>
    %27 = tpu.matmul %12, %26, %cst_24 {dimension_numbers = #tpu.dot_dimension_numbers<[1], [0], [0], [1], [0, 0, 1, 1], [], []>} : vector<32x1024xbf16>, vector<1024x16xbf16>, vector<32x16xf32> -> vector<32x16xf32>
    %28 = vector.broadcast %13 : vector<32x1xf32> to vector<32x16xf32>
    %29 = arith.mulf %27, %28 : vector<32x16xf32>
    %30 = vector.broadcast %14 : vector<32x1xf32> to vector<32x16xf32>
    %31 = arith.addf %29, %30 : vector<32x16xf32>
    %cst_25 = arith.constant 0.000000e+00 : f32
    %32 = vector.broadcast %cst_25 : f32 to vector<32x16xf32>
    %33 = arith.maximumf %31, %32 : vector<32x16xf32>
    %34 = arith.addf %24, %33 : vector<32x16xf32>
    %c0_26 = arith.constant 0 : index
    %c2 = arith.constant 2 : index
    %c0_27 = arith.constant 0 : index
    %c0_28 = arith.constant 0 : index
    %35 = vector.load %arg3[%c0_26, %c2, %c0_27, %c0_28] : memref<1x4x1024x16xbf16, #tpu.memory_space<vmem>>, vector<1x1x1024x16xbf16>
    %36 = vector.shape_cast %35 : vector<1x1x1024x16xbf16> to vector<1024x16xbf16>
    %cst_29 = arith.constant dense<0.000000e+00> : vector<32x16xf32>
    %37 = tpu.matmul %12, %36, %cst_29 {dimension_numbers = #tpu.dot_dimension_numbers<[1], [0], [0], [1], [0, 0, 1, 1], [], []>} : vector<32x1024xbf16>, vector<1024x16xbf16>, vector<32x16xf32> -> vector<32x16xf32>
    %38 = vector.broadcast %13 : vector<32x1xf32> to vector<32x16xf32>
    %39 = arith.mulf %37, %38 : vector<32x16xf32>
    %40 = vector.broadcast %14 : vector<32x1xf32> to vector<32x16xf32>
    %41 = arith.addf %39, %40 : vector<32x16xf32>
    %cst_30 = arith.constant 0.000000e+00 : f32
    %42 = vector.broadcast %cst_30 : f32 to vector<32x16xf32>
    %43 = arith.maximumf %41, %42 : vector<32x16xf32>
    %44 = arith.addf %34, %43 : vector<32x16xf32>
    %c0_31 = arith.constant 0 : index
    %c3 = arith.constant 3 : index
    %c0_32 = arith.constant 0 : index
    %c0_33 = arith.constant 0 : index
    %45 = vector.load %arg3[%c0_31, %c3, %c0_32, %c0_33] : memref<1x4x1024x16xbf16, #tpu.memory_space<vmem>>, vector<1x1x1024x16xbf16>
    %46 = vector.shape_cast %45 : vector<1x1x1024x16xbf16> to vector<1024x16xbf16>
    %cst_34 = arith.constant dense<0.000000e+00> : vector<32x16xf32>
    %47 = tpu.matmul %12, %46, %cst_34 {dimension_numbers = #tpu.dot_dimension_numbers<[1], [0], [0], [1], [0, 0, 1, 1], [], []>} : vector<32x1024xbf16>, vector<1024x16xbf16>, vector<32x16xf32> -> vector<32x16xf32>
    %48 = vector.broadcast %13 : vector<32x1xf32> to vector<32x16xf32>
    %49 = arith.mulf %47, %48 : vector<32x16xf32>
    %50 = vector.broadcast %14 : vector<32x1xf32> to vector<32x16xf32>
    %51 = arith.addf %49, %50 : vector<32x16xf32>
    %cst_35 = arith.constant 0.000000e+00 : f32
    %52 = vector.broadcast %cst_35 : f32 to vector<32x16xf32>
    %53 = arith.maximumf %51, %52 : vector<32x16xf32>
    %54 = arith.addf %44, %53 : vector<32x16xf32>
    %c0_36 = arith.constant 0 : index
    %c0_37 = arith.constant 0 : index
    %c0_38 = arith.constant 0 : index
    %55 = vector.load %arg10[%c0_36, %c0_37, %c0_38] : memref<1x32x16xf32, #tpu.memory_space<vmem>>, vector<1x32x16xf32>
    %56 = vector.shape_cast %55 : vector<1x32x16xf32> to vector<32x16xf32>
    %57 = vector.shape_cast %54 : vector<32x16xf32> to vector<1x32x16xf32>
    tpu.vector_store %arg10[%c0_36, %c0_37, %c0_38], %57 {strides = array<i32>} : memref<1x32x16xf32, #tpu.memory_space<vmem>>, vector<1x32x16xf32>,
    return
  }
  func.func @transform_0(%arg0: i32, %arg1: i32) -> (i32, i32, i32) {
    %c0_i32 = arith.constant 0 : i32
    %c0_i32_0 = arith.constant 0 : i32
    return %arg0, %c0_i32, %arg1 : i32, i32, i32
  }
  func.func @transform_1(%arg0: i32, %arg1: i32) -> (i32, i32, i32, i32) {
    %c0_i32 = arith.constant 0 : i32
    %c0_i32_0 = arith.constant 0 : i32
    %c0_i32_1 = arith.constant 0 : i32
    return %arg0, %c0_i32, %c0_i32_0, %arg1 : i32, i32, i32, i32
  }
  func.func @transform_2(%arg0: i32, %arg1: i32) -> (i32, i32) {
    %c0_i32 = arith.constant 0 : i32
    %c0_i32_0 = arith.constant 0 : i32
    %c0_i32_1 = arith.constant 0 : i32
    return %c0_i32, %c0_i32_0 : i32, i32
  }
  func.func @transform_3(%arg0: i32, %arg1: i32) -> (i32, i32) {
    %c0_i32 = arith.constant 0 : i32
    %c0_i32_0 = arith.constant 0 : i32
    %c0_i32_1 = arith.constant 0 : i32
    return %c0_i32, %c0_i32_0 : i32, i32
  }
  func.func @transform_4(%arg0: i32, %arg1: i32) -> (i32, i32) {
    %c0_i32 = arith.constant 0 : i32
    %c0_i32_0 = arith.constant 0 : i32
    %c0_i32_1 = arith.constant 0 : i32
    return %c0_i32, %c0_i32_0 : i32, i32
  }
  func.func @transform_5(%arg0: i32, %arg1: i32) -> (i32, i32) {
    %c0_i32 = arith.constant 0 : i32
    %c0_i32_0 = arith.constant 0 : i32
    %c0_i32_1 = arith.constant 0 : i32
    return %c0_i32, %c0_i32_0 : i32, i32
  }
  func.func @transform_6(%arg0: i32, %arg1: i32) -> (i32, i32) {
    %c0_i32 = arith.constant 0 : i32
    %c0_i32_0 = arith.constant 0 : i32
    %c0_i32_1 = arith.constant 0 : i32
    return %c0_i32, %c0_i32_0 : i32, i32
  }
  func.func @transform_7(%arg0: i32, %arg1: i32) -> (i32, i32) {
    %c0_i32 = arith.constant 0 : i32
    %c0_i32_0 = arith.constant 0 : i32
    %c0_i32_1 = arith.constant 0 : i32
    return %c0_i32, %c0_i32_0 : i32, i32
  }
  func.func @transform_8(%arg0: i32, %arg1: i32) -> (i32, i32, i32) {
    %c0_i32 = arith.constant 0 : i32
    %c0_i32_0 = arith.constant 0 : i32
    return %arg0, %c0_i32, %arg1 : i32, i32, i32
  }
}

</mosaic_0001>

<llo_original>
// kernel: dbl_attention_forward.1
$region0: #{dbl_attention_forward.1}
  #allocation0 [shape = 'u32[]', space=smem, size = 0x4, offset = 0x4, fixed_abs, tag = 'smem constant byte address 0x4 - core index']
  #allocation1 [shape = 'u32[144,128]{1,0:T(1,128)}', space=vmem, size = 0x12000, scoped, tag = 'internal scratch']
  %s0 = inlined_call_operand.vmem [shape: bf16[2,2048,16], index: 0, kind: input, shape index: {}]
  %s1 = inlined_call_operand.vmem [shape: bf16[2,4,1024,16], index: 1, kind: input, shape index: {}]
  %s2 = inlined_call_operand.vmem [shape: bf16[32,2048], index: 2, kind: input, shape index: {}]
  %s3 = inlined_call_operand.vmem [shape: bf16[32,1024], index: 3, kind: input, shape index: {}]
  %s4 = inlined_call_operand.vmem [shape: f32[32,1], index: 4, kind: input, shape index: {}]
  %s5 = inlined_call_operand.vmem [shape: f32[32,1], index: 5, kind: input, shape index: {}]
  %s6 = inlined_call_operand.vmem [shape: f32[32,1], index: 6, kind: input, shape index: {}]
  %s7 = inlined_call_operand.vmem [shape: f32[32,1], index: 7, kind: input, shape index: {}]
  %s8 = inlined_call_operand.vmem [shape: f32[2,32,16], index: 8, kind: output, shape index: {}]
  %s9 = sld [smem:[#allocation0]]
  $region65: #{dbl_attention_forward.1} parent=0
    _
  %s11 = ssub.s32 1, %s9
  %s12 = scalar_select 0, %s11, %s9
  loop: start=0, step=1, limit=4
  $region2: #{dbl_attention_forward.1} parent=0 // loop_pre_header
    _
  $region3: #{dbl_attention_forward.1} parent=0 // loop_header
    %s14 = sphi 0, %s18
    %p15 = scmp.ge.s32.totalorder %s14, 4
    %s21 = sphi 0, %s33
    %s22 = sphi 0, %s29
    %s23 = sphi 0, %s21
    %s24 = sphi 0, %s22
    %s25 = sphi 0, %s23
    %s26 = sphi 0, %s24
    %s38 = sphi 0, %s40
    %s41 = sphi 0, %s38
    %s42 = sphi 0, %s41
    %s58 = sphi 0, %s42
    %s66 = sphi 0, %s68
    %s69 = sphi 0, %s66
    %s70 = sphi 0, %s69
    %s86 = sphi 0, %s70
    %s90 = sphi 0, %s90
    %s92 = sphi 0, %s90
    %s93 = sphi 0, %s92
    %s107 = sphi 0, %s93
    %s111 = sphi 0, %s111
    %s113 = sphi 0, %s111
    %s114 = sphi 0, %s113
    %s128 = sphi 0, %s114
    %s132 = sphi 0, %s132
    %s134 = sphi 0, %s132
    %s135 = sphi 0, %s134
    %s149 = sphi 0, %s135
    %s153 = sphi 0, %s153
    %s155 = sphi 0, %s153
    %s156 = sphi 0, %s155
    %s170 = sphi 0, %s156
    %s174 = sphi 0, %s174
    %s176 = sphi 0, %s174
    %s177 = sphi 0, %s176
    %s191 = sphi 0, %s177
    %s195 = sphi 0, %s195
    %s197 = sphi 0, %s195
    %s198 = sphi 0, %s197
    %s212 = sphi 0, %s198
    %s220 = sphi 0, %s222
    %s223 = sphi 0, %s220
    %s224 = sphi 0, %s223
    %s240 = sphi 0, %s224
  $region4: #{dbl_attention_forward.1} parent=0 // loop_header_branch
    %17 = sbr.rel (%p15) target = $region8
  $region5: #{dbl_attention_forward.1} parent=0 // loop_body
    %s19 = ssub.s32 %s14, 1
    %s20 = ssub.s32 %s14, 2
    %s27 = sadd.s32 1, %s22
    %p28 = scmp.ge.s32.totalorder %s27, 1
    %s29 = scalar_select %p28, 0, %s27
    %s30 = sadd.s32 1, %s21
    %s31 = scalar_select %p28, %s30, %s21
    %p32 = scmp.ge.s32.totalorder %s31, 2
    %s33 = scalar_select %p32, 0, %s31
    %s34 = ssub.s32 %s21, %s33
    %s35 = ssub.s32 %s22, %s29
    %s36 = sor.u32 %s34, %s35
    %p37 = scmp.eq.s32.totalorder %s36, 0
    %s39 = sadd.s32 %s38, 1
    %s40 = scalar_select %p37, %s38, %s39
    %p43 = pneg %p37
    %p44 = scmp.eq.s32.totalorder %s14, 1
    %p45 = por %p43, %p44
    %p46 = scmp.ne.s32.totalorder %s38, %s41
    %p47 = scmp.eq.s32.totalorder %s14, 0
    %p48 = por %p46, %p47
    %p49 = scmp.ne.s32.totalorder %s38, %s41
    %p50 = scmp.eq.s32.totalorder %s19, 1
    %p51 = por %p49, %p50
    %p52 = scmp.ne.s32.totalorder %s41, %s42
    %p53 = scmp.eq.s32.totalorder %s19, 0
    %p54 = por %p52, %p53
    %p55 = scmp.ne.s32.totalorder %s41, %s42
    %p56 = scmp.eq.s32.totalorder %s20, 1
    %p57 = por %p55, %p56
    %p59 = scmp.ne.s32.totalorder %s42, %s58
    %p60 = scmp.eq.s32.totalorder %s20, 0
    %p61 = por %p59, %p60
    %s62 = ssub.s32 %s21, %s33
    %s63 = ssub.s32 %s22, %s29
    %s64 = sor.u32 %s62, %s63
    %p65 = scmp.eq.s32.totalorder %s64, 0
    %s67 = sadd.s32 %s66, 1
    %s68 = scalar_select %p65, %s66, %s67
    %p71 = pneg %p65
    %p72 = scmp.eq.s32.totalorder %s14, 1
    %p73 = por %p71, %p72
    %p74 = scmp.ne.s32.totalorder %s66, %s69
    %p75 = scmp.eq.s32.totalorder %s14, 0
    %p76 = por %p74, %p75
    %p77 = scmp.ne.s32.totalorder %s66, %s69
    %p78 = scmp.eq.s32.totalorder %s19, 1
    %p79 = por %p77, %p78
    %p80 = scmp.ne.s32.totalorder %s69, %s70
    %p81 = scmp.eq.s32.totalorder %s19, 0
    %p82 = por %p80, %p81
    %p83 = scmp.ne.s32.totalorder %s69, %s70
    %p84 = scmp.eq.s32.totalorder %s20, 1
    %p85 = por %p83, %p84
    %p87 = scmp.ne.s32.totalorder %s70, %s86
    %p88 = scmp.eq.s32.totalorder %s20, 0
    %p89 = por %p87, %p88
    %s91 = sadd.s32 %s90, 1
    %p94 = scmp.eq.s32.totalorder %s14, 1
    %p95 = scmp.ne.s32.totalorder %s90, %s92
    %p96 = scmp.eq.s32.totalorder %s14, 0
    %p97 = por %p95, %p96
    %p98 = scmp.ne.s32.totalorder %s90, %s92
    %p99 = scmp.eq.s32.totalorder %s19, 1
    %p100 = por %p98, %p99
    %p101 = scmp.ne.s32.totalorder %s92, %s93
    %p102 = scmp.eq.s32.totalorder %s19, 0
    %p103 = por %p101, %p102
    %p104 = scmp.ne.s32.totalorder %s92, %s93
    %p105 = scmp.eq.s32.totalorder %s20, 1
    %p106 = por %p104, %p105
    %p108 = scmp.ne.s32.totalorder %s93, %s107
    %p109 = scmp.eq.s32.totalorder %s20, 0
    %p110 = por %p108, %p109
    %s112 = sadd.s32 %s111, 1
    %p115 = scmp.eq.s32.totalorder %s14, 1
    %p116 = scmp.ne.s32.totalorder %s111, %s113
    %p117 = scmp.eq.s32.totalorder %s14, 0
    %p118 = por %p116, %p117
    %p119 = scmp.ne.s32.totalorder %s111, %s113
    %p120 = scmp.eq.s32.totalorder %s19, 1
    %p121 = por %p119, %p120
    %p122 = scmp.ne.s32.totalorder %s113, %s114
    %p123 = scmp.eq.s32.totalorder %s19, 0
    %p124 = por %p122, %p123
    %p125 = scmp.ne.s32.totalorder %s113, %s114
    %p126 = scmp.eq.s32.totalorder %s20, 1
    %p127 = por %p125, %p126
    %p129 = scmp.ne.s32.totalorder %s114, %s128
    %p130 = scmp.eq.s32.totalorder %s20, 0
    %p131 = por %p129, %p130
    %s133 = sadd.s32 %s132, 1
    %p136 = scmp.eq.s32.totalorder %s14, 1
    %p137 = scmp.ne.s32.totalorder %s132, %s134
    %p138 = scmp.eq.s32.totalorder %s14, 0
    %p139 = por %p137, %p138
    %p140 = scmp.ne.s32.totalorder %s132, %s134
    %p141 = scmp.eq.s32.totalorder %s19, 1
    %p142 = por %p140, %p141
    %p143 = scmp.ne.s32.totalorder %s134, %s135
    %p144 = scmp.eq.s32.totalorder %s19, 0
    %p145 = por %p143, %p144
    %p146 = scmp.ne.s32.totalorder %s134, %s135
    %p147 = scmp.eq.s32.totalorder %s20, 1
    %p148 = por %p146, %p147
    %p150 = scmp.ne.s32.totalorder %s135, %s149
    %p151 = scmp.eq.s32.totalorder %s20, 0
    %p152 = por %p150, %p151
    %s154 = sadd.s32 %s153, 1
    %p157 = scmp.eq.s32.totalorder %s14, 1
    %p158 = scmp.ne.s32.totalorder %s153, %s155
    %p159 = scmp.eq.s32.totalorder %s14, 0
    %p160 = por %p158, %p159
    %p161 = scmp.ne.s32.totalorder %s153, %s155
    %p162 = scmp.eq.s32.totalorder %s19, 1
    %p163 = por %p161, %p162
    %p164 = scmp.ne.s32.totalorder %s155, %s156
    %p165 = scmp.eq.s32.totalorder %s19, 0
    %p166 = por %p164, %p165
    %p167 = scmp.ne.s32.totalorder %s155, %s156
    %p168 = scmp.eq.s32.totalorder %s20, 1
    %p169 = por %p167, %p168
    %p171 = scmp.ne.s32.totalorder %s156, %s170
    %p172 = scmp.eq.s32.totalorder %s20, 0
    %p173 = por %p171, %p172
    %s175 = sadd.s32 %s174, 1
    %p178 = scmp.eq.s32.totalorder %s14, 1
    %p179 = scmp.ne.s32.totalorder %s174, %s176
    %p180 = scmp.eq.s32.totalorder %s14, 0
    %p181 = por %p179, %p180
    %p182 = scmp.ne.s32.totalorder %s174, %s176
    %p183 = scmp.eq.s32.totalorder %s19, 1
    %p184 = por %p182, %p183
    %p185 = scmp.ne.s32.totalorder %s176, %s177
    %p186 = scmp.eq.s32.totalorder %s19, 0
    %p187 = por %p185, %p186
    %p188 = scmp.ne.s32.totalorder %s176, %s177
    %p189 = scmp.eq.s32.totalorder %s20, 1
    %p190 = por %p188, %p189
    %p192 = scmp.ne.s32.totalorder %s177, %s191
    %p193 = scmp.eq.s32.totalorder %s20, 0
    %p194 = por %p192, %p193
    %s196 = sadd.s32 %s195, 1
    %p199 = scmp.eq.s32.totalorder %s14, 1
    %p200 = scmp.ne.s32.totalorder %s195, %s197
    %p201 = scmp.eq.s32.totalorder %s14, 0
    %p202 = por %p200, %p201
    %p203 = scmp.ne.s32.totalorder %s195, %s197
    %p204 = scmp.eq.s32.totalorder %s19, 1
    %p205 = por %p203, %p204
    %p206 = scmp.ne.s32.totalorder %s197, %s198
    %p207 = scmp.eq.s32.totalorder %s19, 0
    %p208 = por %p206, %p207
    %p209 = scmp.ne.s32.totalorder %s197, %s198
    %p210 = scmp.eq.s32.totalorder %s20, 1
    %p211 = por %p209, %p210
    %p213 = scmp.ne.s32.totalorder %s198, %s212
    %p214 = scmp.eq.s32.totalorder %s20, 0
    %p215 = por %p213, %p214
    %s216 = ssub.s32 %s21, %s33
    %s217 = ssub.s32 %s22, %s29
    %s218 = sor.u32 %s216, %s217
    %p219 = scmp.eq.s32.totalorder %s218, 0
    %s221 = sadd.s32 %s220, 1
    %s222 = scalar_select %p219, %s220, %s221
    %p225 = pneg %p219
    %p226 = scmp.eq.s32.totalorder %s14, 1
    %p227 = por %p225, %p226
    %p228 = scmp.ne.s32.totalorder %s220, %s223
    %p229 = scmp.eq.s32.totalorder %s14, 0
    %p230 = por %p228, %p229
    %p231 = scmp.ne.s32.totalorder %s220, %s223
    %p232 = scmp.eq.s32.totalorder %s19, 1
    %p233 = por %p231, %p232
    %p234 = scmp.ne.s32.totalorder %s223, %s224
    %p235 = scmp.eq.s32.totalorder %s19, 0
    %p236 = por %p234, %p235
    %p237 = scmp.ne.s32.totalorder %s223, %s224
    %p238 = scmp.eq.s32.totalorder %s20, 1
    %p239 = por %p237, %p238
    %p241 = scmp.ne.s32.totalorder %s224, %s240
    %p242 = scmp.eq.s32.totalorder %s20, 0
    %p243 = por %p241, %p242
    %p244 = scmp.le.s32.totalorder 1, %s14
    %p245 = scmp.lt.s32.totalorder %s14, 3
    %p246 = pnand %p244, %p245
    %p247 = pneg %p246
    // Predicated region
    $region9: #{dbl_attention_forward.1} parent=5 // pred_check
      _
    $region10: #{dbl_attention_forward.1} parent=5 // pred_check_branch
      %249 = sbr.rel (%p246) target = $region12
    $region11: #{dbl_attention_forward.1} parent=5 // pred_region
      %s250 = ssub.s32 %s14, 1
      // Predicated region
      $region13: #{dbl_attention_forward.1} parent=11 // pred_check
        %p251 = pneg %p103
      $region14: #{dbl_attention_forward.1} parent=11 // pred_check_branch
        %253 = sbr.rel (%p251) target = $region16
      $region15: #{dbl_attention_forward.1} parent=11 // pred_region
        _
      $region16: #{dbl_attention_forward.1} parent=11 // pred_fallthru
        _
      // Predicated region
      $region17: #{dbl_attention_forward.1} parent=11 // pred_check
        %p254 = pneg %p124
      $region18: #{dbl_attention_forward.1} parent=11 // pred_check_branch
        %256 = sbr.rel (%p254) target = $region20
      $region19: #{dbl_attention_forward.1} parent=11 // pred_region
        _
      $region20: #{dbl_attention_forward.1} parent=11 // pred_fallthru
        _
      // Predicated region
      $region21: #{dbl_attention_forward.1} parent=11 // pred_check
        %p257 = pneg %p145
      $region22: #{dbl_attention_forward.1} parent=11 // pred_check_branch
        %259 = sbr.rel (%p257) target = $region24
      $region23: #{dbl_attention_forward.1} parent=11 // pred_region
        _
      $region24: #{dbl_attention_forward.1} parent=11 // pred_fallthru
        _
      // Predicated region
      $region25: #{dbl_attention_forward.1} parent=11 // pred_check
        %p260 = pneg %p166
      $region26: #{dbl_attention_forward.1} parent=11 // pred_check_branch
        %262 = sbr.rel (%p260) target = $region28
      $region27: #{dbl_attention_forward.1} parent=11 // pred_region
        _
      $region28: #{dbl_attention_forward.1} parent=11 // pred_fallthru
        _
      // Predicated region
      $region29: #{dbl_attention_forward.1} parent=11 // pred_check
        %p263 = pneg %p187
      $region30: #{dbl_attention_forward.1} parent=11 // pred_check_branch
        %265 = sbr.rel (%p263) target = $region32
      $region31: #{dbl_attention_forward.1} parent=11 // pred_region
        _
      $region32: #{dbl_attention_forward.1} parent=11 // pred_fallthru
        _
      // Predicated region
      $region33: #{dbl_attention_forward.1} parent=11 // pred_check
        %p266 = pneg %p208
      $region34: #{dbl_attention_forward.1} parent=11 // pred_check_branch
        %268 = sbr.rel (%p266) target = $region36
      $region35: #{dbl_attention_forward.1} parent=11 // pred_region
        _
      $region36: #{dbl_attention_forward.1} parent=11 // pred_fallthru
        _
    $region12: #{dbl_attention_forward.1} parent=5 // pred_fallthru
      _
    %p269 = scmp.lt.s32.totalorder %s14, 2
    // Predicated region
    $region37: #{dbl_attention_forward.1} parent=5 // pred_check
      %p270 = pneg %p269
    $region38: #{dbl_attention_forward.1} parent=5 // pred_check_branch
      %272 = sbr.rel (%p270) target = $region40
    $region39: #{dbl_attention_forward.1} parent=5 // pred_region
      // Predicated region
      $region41: #{dbl_attention_forward.1} parent=39 // pred_check
        %p273 = pneg %p48
      $region42: #{dbl_attention_forward.1} parent=39 // pred_check_branch
        %275 = sbr.rel (%p273) target = $region44
      $region43: #{dbl_attention_forward.1} parent=39 // pred_region
        %p276 = scmp.lt.s32.totalorder %s21, 1
        %s277 = scalar_select %p276, %s21, 1
        %p278 = scmp.lt.s32.totalorder %s22, 0
        %s279 = scalar_select %p278, %s22, 0
        %s280 = smul.addr %s277, 256
        %s281 = sadd.s32 %s279, %s280
        %s282 = smul.addr %s281, 4
        %s283 = scalar_lea.vmem %s0, %s282
      $region44: #{dbl_attention_forward.1} parent=39 // pred_fallthru
        _
      // Predicated region
      $region45: #{dbl_attention_forward.1} parent=39 // pred_check
        %p284 = pneg %p76
      $region46: #{dbl_attention_forward.1} parent=39 // pred_check_branch
        %286 = sbr.rel (%p284) target = $region48
      $region47: #{dbl_attention_forward.1} parent=39 // pred_region
        %p287 = scmp.lt.s32.totalorder %s21, 1
        %s288 = scalar_select %p287, %s21, 1
        %p289 = scmp.lt.s32.totalorder %s22, 0
        %s290 = scalar_select %p289, %s22, 0
        %s291 = smul.addr %s288, 512
        %s292 = sadd.s32 %s290, %s291
        %s293 = smul.addr %s292, 4
        %s294 = scalar_lea.vmem %s1, %s293
      $region48: #{dbl_attention_forward.1} parent=39 // pred_fallthru
        _
    $region40: #{dbl_attention_forward.1} parent=5 // pred_fallthru
      _
    %p295 = scmp.le.s32.totalorder 1, %s14
    %p296 = scmp.lt.s32.totalorder %s14, 3
    %p297 = pnand %p295, %p296
    %p298 = pneg %p297
    // Predicated region
    $region49: #{dbl_attention_forward.1} parent=5 // pred_check
      _
    $region50: #{dbl_attention_forward.1} parent=5 // pred_check_branch
      %300 = sbr.rel (%p297) target = $region52
    $region51: #{dbl_attention_forward.1} parent=5 // pred_region
      %s301 = ssub.s32 %s14, 1
      %p302 = scmp.lt.s32.totalorder %s23, 1
      %s303 = scalar_select %p302, %s23, 1
      %p304 = scmp.lt.s32.totalorder %s24, 0
      %s305 = scalar_select %p304, %s24, 0
      %s306 = smul.addr %s303, 256
      %s307 = sadd.s32 %s305, %s306
      %s308 = smul.addr %s307, 4
      %s309 = scalar_lea.vmem %s0, %s308
      %p310 = pneg %p54
      %p311 = pneg %p51
      %p312 = scmp.lt.s32.totalorder %s23, 1
      %s313 = scalar_select %p312, %s23, 1
      %p314 = scmp.lt.s32.totalorder %s24, 0
      %s315 = scalar_select %p314, %s24, 0
      %s316 = smul.addr %s313, 512
      %s317 = sadd.s32 %s315, %s316
      %s318 = smul.addr %s317, 4
      %s319 = scalar_lea.vmem %s1, %s318
      %p320 = pneg %p82
      %p321 = pneg %p79
      %p322 = pneg %p103
      %p323 = pneg %p100
      %p324 = pneg %p124
      %p325 = pneg %p121
      %p326 = pneg %p145
      %p327 = pneg %p142
      %p328 = pneg %p166
      %p329 = pneg %p163
      %p330 = pneg %p187
      %p331 = pneg %p184
      %p332 = pneg %p208
      %p333 = pneg %p205
      %p334 = pneg %p236
      %p335 = pneg %p233
      %p336 = scmp.lt.s32.totalorder %s23, 1
      %s337 = scalar_select %p336, %s23, 1
      %p338 = scmp.lt.s32.totalorder %s24, 0
      %s339 = scalar_select %p338, %s24, 0
      %s340 = smul.addr %s337, 4
      %s341 = sadd.s32 %s339, %s340
      %s342 = smul.addr %s341, 8
      %s343 = scalar_lea.vmem %s8, %s342
      %p344 = scmp.lt.s32.totalorder %s23, 1
      %s345 = scalar_select %p344, %s23, 1
      %p346 = scmp.lt.s32.totalorder %s24, 0
      %s347 = scalar_select %p346, %s24, 0
      %s348 = smul.addr %s345, 256
      %s349 = sadd.s32 %s347, %s348
      %s350 = smul.addr %s349, 4
      %s351 = scalar_lea.vmem %s0, %s350
      %p352 = scmp.lt.s32.totalorder %s23, 1
      %s353 = scalar_select %p352, %s23, 1
      %p354 = scmp.lt.s32.totalorder %s24, 0
      %s355 = scalar_select %p354, %s24, 0
      %s356 = smul.addr %s353, 512
      %s357 = sadd.s32 %s355, %s356
      %s358 = smul.addr %s357, 4
      %s359 = scalar_lea.vmem %s1, %s358
      %p360 = scmp.lt.s32.totalorder %s23, 1
      %s361 = scalar_select %p360, %s23, 1
      %p362 = scmp.lt.s32.totalorder %s24, 0
      %s363 = scalar_select %p362, %s24, 0
      %s364 = smul.addr %s361, 4
      %s365 = sadd.s32 %s363, %s364
      %s366 = smul.addr %s365, 8
      %s367 = scalar_lea.vmem %s8, %s366
      %v369 = vld [vmem:[%s2] sm:$0xff]
      %v370 = vld [vmem:[%s2 + $0x8] sm:$0xff]
      %v371 = vld [vmem:[%s2 + $0x10] sm:$0xff]
      %v372 = vld [vmem:[%s2 + $0x18] sm:$0xff]
      %v373 = vld [vmem:[%s2 + $0x20] sm:$0xff]
      %v374 = vld [vmem:[%s2 + $0x28] sm:$0xff]
      %v375 = vld [vmem:[%s2 + $0x30] sm:$0xff]
      %v376 = vld [vmem:[%s2 + $0x38] sm:$0xff]
      %v377 = vld [vmem:[%s2 + $0x40] sm:$0xff]
      %v378 = vld [vmem:[%s2 + $0x48] sm:$0xff]
      %v379 = vld [vmem:[%s2 + $0x50] sm:$0xff]
      %v380 = vld [vmem:[%s2 + $0x58] sm:$0xff]
      %v381 = vld [vmem:[%s2 + $0x60] sm:$0xff]
      %v382 = vld [vmem:[%s2 + $0x68] sm:$0xff]
      %v383 = vld [vmem:[%s2 + $0x70] sm:$0xff]
      %v384 = vld [vmem:[%s2 + $0x78] sm:$0xff]
      %v385 = vld [vmem:[%s2 + $0x80] sm:$0xff]
      %v386 = vld [vmem:[%s2 + $0x88] sm:$0xff]
      %v387 = vld [vmem:[%s2 + $0x90] sm:$0xff]
      %v388 = vld [vmem:[%s2 + $0x98] sm:$0xff]
      %v389 = vld [vmem:[%s2 + $0xa0] sm:$0xff]
      %v390 = vld [vmem:[%s2 + $0xa8] sm:$0xff]
      %v391 = vld [vmem:[%s2 + $0xb0] sm:$0xff]
      %v392 = vld [vmem:[%s2 + $0xb8] sm:$0xff]
      %v393 = vld [vmem:[%s2 + $0xc0] sm:$0xff]
      %v394 = vld [vmem:[%s2 + $0xc8] sm:$0xff]
      %v395 = vld [vmem:[%s2 + $0xd0] sm:$0xff]
      %v396 = vld [vmem:[%s2 + $0xd8] sm:$0xff]
      %v397 = vld [vmem:[%s2 + $0xe0] sm:$0xff]
      %v398 = vld [vmem:[%s2 + $0xe8] sm:$0xff]
      %v399 = vld [vmem:[%s2 + $0xf0] sm:$0xff]
      %v400 = vld [vmem:[%s2 + $0xf8] sm:$0xff]
      %v401 = vld [vmem:[%s351] sm:$0xf]
      %v402 = vld [vmem:[%s351 + $0x4] sm:$0xf]
      %v403 = vld [vmem:[%s351 + $0x8] sm:$0xf]
      %v404 = vld [vmem:[%s351 + $0xc] sm:$0xf]
      %v405 = vld [vmem:[%s351 + $0x10] sm:$0xf]
      %v406 = vld [vmem:[%s351 + $0x14] sm:$0xf]
      %v407 = vld [vmem:[%s351 + $0x18] sm:$0xf]
      %v408 = vld [vmem:[%s351 + $0x1c] sm:$0xf]
      %v409 = vld [vmem:[%s351 + $0x20] sm:$0xf]
      %v410 = vld [vmem:[%s351 + $0x24] sm:$0xf]
      %v411 = vld [vmem:[%s351 + $0x28] sm:$0xf]
      %v412 = vld [vmem:[%s351 + $0x2c] sm:$0xf]
      %v413 = vld [vmem:[%s351 + $0x30] sm:$0xf]
      %v414 = vld [vmem:[%s351 + $0x34] sm:$0xf]
      %v415 = vld [vmem:[%s351 + $0x38] sm:$0xf]
      %v416 = vld [vmem:[%s351 + $0x3c] sm:$0xf]
      %v417 = vld [vmem:[%s351 + $0x40] sm:$0xf]
      %v418 = vld [vmem:[%s351 + $0x44] sm:$0xf]
      %v419 = vld [vmem:[%s351 + $0x48] sm:$0xf]
      %v420 = vld [vmem:[%s351 + $0x4c] sm:$0xf]
      %v421 = vld [vmem:[%s351 + $0x50] sm:$0xf]
      %v422 = vld [vmem:[%s351 + $0x54] sm:$0xf]
      %v423 = vld [vmem:[%s351 + $0x58] sm:$0xf]
      %v424 = vld [vmem:[%s351 + $0x5c] sm:$0xf]
      %v425 = vld [vmem:[%s351 + $0x60] sm:$0xf]
      %v426 = vld [vmem:[%s351 + $0x64] sm:$0xf]
      %v427 = vld [vmem:[%s351 + $0x68] sm:$0xf]
      %v428 = vld [vmem:[%s351 + $0x6c] sm:$0xf]
      %v429 = vld [vmem:[%s351 + $0x70] sm:$0xf]
      %v430 = vld [vmem:[%s351 + $0x74] sm:$0xf]
      %v431 = vld [vmem:[%s351 + $0x78] sm:$0xf]
      %v432 = vld [vmem:[%s351 + $0x7c] sm:$0xf]
      %v433 = vld [vmem:[%s351 + $0x80] sm:$0xf]
      %v434 = vld [vmem:[%s351 + $0x84] sm:$0xf]
      %v435 = vld [vmem:[%s351 + $0x88] sm:$0xf]
      %v436 = vld [vmem:[%s351 + $0x8c] sm:$0xf]
      %v437 = vld [vmem:[%s351 + $0x90] sm:$0xf]
      %v438 = vld [vmem:[%s351 + $0x94] sm:$0xf]
      %v439 = vld [vmem:[%s351 + $0x98] sm:$0xf]
      %v440 = vld [vmem:[%s351 + $0x9c] sm:$0xf]
      %v441 = vld [vmem:[%s351 + $0xa0] sm:$0xf]
      %v442 = vld [vmem:[%s351 + $0xa4] sm:$0xf]
      %v443 = vld [vmem:[%s351 + $0xa8] sm:$0xf]
      %v444 = vld [vmem:[%s351 + $0xac] sm:$0xf]
      %v445 = vld [vmem:[%s351 + $0xb0] sm:$0xf]
      %v446 = vld [vmem:[%s351 + $0xb4] sm:$0xf]
      %v447 = vld [vmem:[%s351 + $0xb8] sm:$0xf]
      %v448 = vld [vmem:[%s351 + $0xbc] sm:$0xf]
      %v449 = vld [vmem:[%s351 + $0xc0] sm:$0xf]
      %v450 = vld [vmem:[%s351 + $0xc4] sm:$0xf]
      %v451 = vld [vmem:[%s351 + $0xc8] sm:$0xf]
      %v452 = vld [vmem:[%s351 + $0xcc] sm:$0xf]
      %v453 = vld [vmem:[%s351 + $0xd0] sm:$0xf]
      %v454 = vld [vmem:[%s351 + $0xd4] sm:$0xf]
      %v455 = vld [vmem:[%s351 + $0xd8] sm:$0xf]
      %v456 = vld [vmem:[%s351 + $0xdc] sm:$0xf]
      %v457 = vld [vmem:[%s351 + $0xe0] sm:$0xf]
      %v458 = vld [vmem:[%s351 + $0xe4] sm:$0xf]
      %v459 = vld [vmem:[%s351 + $0xe8] sm:$0xf]
      %v460 = vld [vmem:[%s351 + $0xec] sm:$0xf]
      %v461 = vld [vmem:[%s351 + $0xf0] sm:$0xf]
      %v462 = vld [vmem:[%s351 + $0xf4] sm:$0xf]
      %v463 = vld [vmem:[%s351 + $0xf8] sm:$0xf]
      %v464 = vld [vmem:[%s351 + $0xfc] sm:$0xf]
      %v465 = vld [vmem:[%s351 + $0x100] sm:$0xf]
      %v466 = vld [vmem:[%s351 + $0x104] sm:$0xf]
      %v467 = vld [vmem:[%s351 + $0x108] sm:$0xf]
      %v468 = vld [vmem:[%s351 + $0x10c] sm:$0xf]
      %v469 = vld [vmem:[%s351 + $0x110] sm:$0xf]
      %v470 = vld [vmem:[%s351 + $0x114] sm:$0xf]
      %v471 = vld [vmem:[%s351 + $0x118] sm:$0xf]
      %v472 = vld [vmem:[%s351 + $0x11c] sm:$0xf]
      %v473 = vld [vmem:[%s351 + $0x120] sm:$0xf]
      %v474 = vld [vmem:[%s351 + $0x124] sm:$0xf]
      %v475 = vld [vmem:[%s351 + $0x128] sm:$0xf]
      %v476 = vld [vmem:[%s351 + $0x12c] sm:$0xf]
      %v477 = vld [vmem:[%s351 + $0x130] sm:$0xf]
      %v478 = vld [vmem:[%s351 + $0x134] sm:$0xf]
      %v479 = vld [vmem:[%s351 + $0x138] sm:$0xf]
      %v480 = vld [vmem:[%s351 + $0x13c] sm:$0xf]
      %v481 = vld [vmem:[%s351 + $0x140] sm:$0xf]
      %v482 = vld [vmem:[%s351 + $0x144] sm:$0xf]
      %v483 = vld [vmem:[%s351 + $0x148] sm:$0xf]
      %v484 = vld [vmem:[%s351 + $0x14c] sm:$0xf]
      %v485 = vld [vmem:[%s351 + $0x150] sm:$0xf]
      %v486 = vld [vmem:[%s351 + $0x154] sm:$0xf]
      %v487 = vld [vmem:[%s351 + $0x158] sm:$0xf]
      %v488 = vld [vmem:[%s351 + $0x15c] sm:$0xf]
      %v489 = vld [vmem:[%s351 + $0x160] sm:$0xf]
      %v490 = vld [vmem:[%s351 + $0x164] sm:$0xf]
      %v491 = vld [vmem:[%s351 + $0x168] sm:$0xf]
      %v492 = vld [vmem:[%s351 + $0x16c] sm:$0xf]
      %v493 = vld [vmem:[%s351 + $0x170] sm:$0xf]
      %v494 = vld [vmem:[%s351 + $0x174] sm:$0xf]
      %v495 = vld [vmem:[%s351 + $0x178] sm:$0xf]
      %v496 = vld [vmem:[%s351 + $0x17c] sm:$0xf]
      %v497 = vld [vmem:[%s351 + $0x180] sm:$0xf]
      %v498 = vld [vmem:[%s351 + $0x184] sm:$0xf]
      %v499 = vld [vmem:[%s351 + $0x188] sm:$0xf]
      %v500 = vld [vmem:[%s351 + $0x18c] sm:$0xf]
      %v501 = vld [vmem:[%s351 + $0x190] sm:$0xf]
      %v502 = vld [vmem:[%s351 + $0x194] sm:$0xf]
      %v503 = vld [vmem:[%s351 + $0x198] sm:$0xf]
      %v504 = vld [vmem:[%s351 + $0x19c] sm:$0xf]
      %v505 = vld [vmem:[%s351 + $0x1a0] sm:$0xf]
      %v506 = vld [vmem:[%s351 + $0x1a4] sm:$0xf]
      %v507 = vld [vmem:[%s351 + $0x1a8] sm:$0xf]
      %v508 = vld [vmem:[%s351 + $0x1ac] sm:$0xf]
      %v509 = vld [vmem:[%s351 + $0x1b0] sm:$0xf]
      %v510 = vld [vmem:[%s351 + $0x1b4] sm:$0xf]
      %v511 = vld [vmem:[%s351 + $0x1b8] sm:$0xf]
      %v512 = vld [vmem:[%s351 + $0x1bc] sm:$0xf]
      %v513 = vld [vmem:[%s351 + $0x1c0] sm:$0xf]
      %v514 = vld [vmem:[%s351 + $0x1c4] sm:$0xf]
      %v515 = vld [vmem:[%s351 + $0x1c8] sm:$0xf]
      %v516 = vld [vmem:[%s351 + $0x1cc] sm:$0xf]
      %v517 = vld [vmem:[%s351 + $0x1d0] sm:$0xf]
      %v518 = vld [vmem:[%s351 + $0x1d4] sm:$0xf]
      %v519 = vld [vmem:[%s351 + $0x1d8] sm:$0xf]
      %v520 = vld [vmem:[%s351 + $0x1dc] sm:$0xf]
      %v521 = vld [vmem:[%s351 + $0x1e0] sm:$0xf]
      %v522 = vld [vmem:[%s351 + $0x1e4] sm:$0xf]
      %v523 = vld [vmem:[%s351 + $0x1e8] sm:$0xf]
      %v524 = vld [vmem:[%s351 + $0x1ec] sm:$0xf]
      %v525 = vld [vmem:[%s351 + $0x1f0] sm:$0xf]
      %v526 = vld [vmem:[%s351 + $0x1f4] sm:$0xf]
      %v527 = vld [vmem:[%s351 + $0x1f8] sm:$0xf]
      %v528 = vld [vmem:[%s351 + $0x1fc] sm:$0xf]
      %v529 = vld [vmem:[%s351 + $0x200] sm:$0xf]
      %v530 = vld [vmem:[%s351 + $0x204] sm:$0xf]
      %v531 = vld [vmem:[%s351 + $0x208] sm:$0xf]
      %v532 = vld [vmem:[%s351 + $0x20c] sm:$0xf]
      %v533 = vld [vmem:[%s351 + $0x210] sm:$0xf]
      %v534 = vld [vmem:[%s351 + $0x214] sm:$0xf]
      %v535 = vld [vmem:[%s351 + $0x218] sm:$0xf]
      %v536 = vld [vmem:[%s351 + $0x21c] sm:$0xf]
      %v537 = vld [vmem:[%s351 + $0x220] sm:$0xf]
      %v538 = vld [vmem:[%s351 + $0x224] sm:$0xf]
      %v539 = vld [vmem:[%s351 + $0x228] sm:$0xf]
      %v540 = vld [vmem:[%s351 + $0x22c] sm:$0xf]
      %v541 = vld [vmem:[%s351 + $0x230] sm:$0xf]
      %v542 = vld [vmem:[%s351 + $0x234] sm:$0xf]
      %v543 = vld [vmem:[%s351 + $0x238] sm:$0xf]
      %v544 = vld [vmem:[%s351 + $0x23c] sm:$0xf]
      %v545 = vld [vmem:[%s351 + $0x240] sm:$0xf]
      %v546 = vld [vmem:[%s351 + $0x244] sm:$0xf]
      %v547 = vld [vmem:[%s351 + $0x248] sm:$0xf]
      %v548 = vld [vmem:[%s351 + $0x24c] sm:$0xf]
      %v549 = vld [vmem:[%s351 + $0x250] sm:$0xf]
      %v550 = vld [vmem:[%s351 + $0x254] sm:$0xf]
      %v551 = vld [vmem:[%s351 + $0x258] sm:$0xf]
      %v552 = vld [vmem:[%s351 + $0x25c] sm:$0xf]
      %v553 = vld [vmem:[%s351 + $0x260] sm:$0xf]
      %v554 = vld [vmem:[%s351 + $0x264] sm:$0xf]
      %v555 = vld [vmem:[%s351 + $0x268] sm:$0xf]
      %v556 = vld [vmem:[%s351 + $0x26c] sm:$0xf]
      %v557 = vld [vmem:[%s351 + $0x270] sm:$0xf]
      %v558 = vld [vmem:[%s351 + $0x274] sm:$0xf]
      %v559 = vld [vmem:[%s351 + $0x278] sm:$0xf]
      %v560 = vld [vmem:[%s351 + $0x27c] sm:$0xf]
      %v561 = vld [vmem:[%s351 + $0x280] sm:$0xf]
      %v562 = vld [vmem:[%s351 + $0x284] sm:$0xf]
      %v563 = vld [vmem:[%s351 + $0x288] sm:$0xf]
      %v564 = vld [vmem:[%s351 + $0x28c] sm:$0xf]
      %v565 = vld [vmem:[%s351 + $0x290] sm:$0xf]
      %v566 = vld [vmem:[%s351 + $0x294] sm:$0xf]
      %v567 = vld [vmem:[%s351 + $0x298] sm:$0xf]
      %v568 = vld [vmem:[%s351 + $0x29c] sm:$0xf]
      %v569 = vld [vmem:[%s351 + $0x2a0] sm:$0xf]
      %v570 = vld [vmem:[%s351 + $0x2a4] sm:$0xf]
      %v571 = vld [vmem:[%s351 + $0x2a8] sm:$0xf]
      %v572 = vld [vmem:[%s351 + $0x2ac] sm:$0xf]
      %v573 = vld [vmem:[%s351 + $0x2b0] sm:$0xf]
      %v574 = vld [vmem:[%s351 + $0x2b4] sm:$0xf]
      %v575 = vld [vmem:[%s351 + $0x2b8] sm:$0xf]
      %v576 = vld [vmem:[%s351 + $0x2bc] sm:$0xf]
      %v577 = vld [vmem:[%s351 + $0x2c0] sm:$0xf]
      %v578 = vld [vmem:[%s351 + $0x2c4] sm:$0xf]
      %v579 = vld [vmem:[%s351 + $0x2c8] sm:$0xf]
      %v580 = vld [vmem:[%s351 + $0x2cc] sm:$0xf]
      %v581 = vld [vmem:[%s351 + $0x2d0] sm:$0xf]
      %v582 = vld [vmem:[%s351 + $0x2d4] sm:$0xf]
      %v583 = vld [vmem:[%s351 + $0x2d8] sm:$0xf]
      %v584 = vld [vmem:[%s351 + $0x2dc] sm:$0xf]
      %v585 = vld [vmem:[%s351 + $0x2e0] sm:$0xf]
      %v586 = vld [vmem:[%s351 + $0x2e4] sm:$0xf]
      %v587 = vld [vmem:[%s351 + $0x2e8] sm:$0xf]
      %v588 = vld [vmem:[%s351 + $0x2ec] sm:$0xf]
      %v589 = vld [vmem:[%s351 + $0x2f0] sm:$0xf]
      %v590 = vld [vmem:[%s351 + $0x2f4] sm:$0xf]
      %v591 = vld [vmem:[%s351 + $0x2f8] sm:$0xf]
      %v592 = vld [vmem:[%s351 + $0x2fc] sm:$0xf]
      %v593 = vld [vmem:[%s351 + $0x300] sm:$0xf]
      %v594 = vld [vmem:[%s351 + $0x304] sm:$0xf]
      %v595 = vld [vmem:[%s351 + $0x308] sm:$0xf]
      %v596 = vld [vmem:[%s351 + $0x30c] sm:$0xf]
      %v597 = vld [vmem:[%s351 + $0x310] sm:$0xf]
      %v598 = vld [vmem:[%s351 + $0x314] sm:$0xf]
      %v599 = vld [vmem:[%s351 + $0x318] sm:$0xf]
      %v600 = vld [vmem:[%s351 + $0x31c] sm:$0xf]
      %v601 = vld [vmem:[%s351 + $0x320] sm:$0xf]
      %v602 = vld [vmem:[%s351 + $0x324] sm:$0xf]
      %v603 = vld [vmem:[%s351 + $0x328] sm:$0xf]
      %v604 = vld [vmem:[%s351 + $0x32c] sm:$0xf]
      %v605 = vld [vmem:[%s351 + $0x330] sm:$0xf]
      %v606 = vld [vmem:[%s351 + $0x334] sm:$0xf]
      %v607 = vld [vmem:[%s351 + $0x338] sm:$0xf]
      %v608 = vld [vmem:[%s351 + $0x33c] sm:$0xf]
      %v609 = vld [vmem:[%s351 + $0x340] sm:$0xf]
      %v610 = vld [vmem:[%s351 + $0x344] sm:$0xf]
      %v611 = vld [vmem:[%s351 + $0x348] sm:$0xf]
      %v612 = vld [vmem:[%s351 + $0x34c] sm:$0xf]
      %v613 = vld [vmem:[%s351 + $0x350] sm:$0xf]
      %v614 = vld [vmem:[%s351 + $0x354] sm:$0xf]
      %v615 = vld [vmem:[%s351 + $0x358] sm:$0xf]
      %v616 = vld [vmem:[%s351 + $0x35c] sm:$0xf]
      %v617 = vld [vmem:[%s351 + $0x360] sm:$0xf]
      %v618 = vld [vmem:[%s351 + $0x364] sm:$0xf]
      %v619 = vld [vmem:[%s351 + $0x368] sm:$0xf]
      %v620 = vld [vmem:[%s351 + $0x36c] sm:$0xf]
      %v621 = vld [vmem:[%s351 + $0x370] sm:$0xf]
      %v622 = vld [vmem:[%s351 + $0x374] sm:$0xf]
      %v623 = vld [vmem:[%s351 + $0x378] sm:$0xf]
      %v624 = vld [vmem:[%s351 + $0x37c] sm:$0xf]
      %v625 = vld [vmem:[%s351 + $0x380] sm:$0xf]
      %v626 = vld [vmem:[%s351 + $0x384] sm:$0xf]
      %v627 = vld [vmem:[%s351 + $0x388] sm:$0xf]
      %v628 = vld [vmem:[%s351 + $0x38c] sm:$0xf]
      %v629 = vld [vmem:[%s351 + $0x390] sm:$0xf]
      %v630 = vld [vmem:[%s351 + $0x394] sm:$0xf]
      %v631 = vld [vmem:[%s351 + $0x398] sm:$0xf]
      %v632 = vld [vmem:[%s351 + $0x39c] sm:$0xf]
      %v633 = vld [vmem:[%s351 + $0x3a0] sm:$0xf]
      %v634 = vld [vmem:[%s351 + $0x3a4] sm:$0xf]
      %v635 = vld [vmem:[%s351 + $0x3a8] sm:$0xf]
      %v636 = vld [vmem:[%s351 + $0x3ac] sm:$0xf]
      %v637 = vld [vmem:[%s351 + $0x3b0] sm:$0xf]
      %v638 = vld [vmem:[%s351 + $0x3b4] sm:$0xf]
      %v639 = vld [vmem:[%s351 + $0x3b8] sm:$0xf]
      %v640 = vld [vmem:[%s351 + $0x3bc] sm:$0xf]
      %v641 = vld [vmem:[%s351 + $0x3c0] sm:$0xf]
      %v642 = vld [vmem:[%s351 + $0x3c4] sm:$0xf]
      %v643 = vld [vmem:[%s351 + $0x3c8] sm:$0xf]
      %v644 = vld [vmem:[%s351 + $0x3cc] sm:$0xf]
      %v645 = vld [vmem:[%s351 + $0x3d0] sm:$0xf]
      %v646 = vld [vmem:[%s351 + $0x3d4] sm:$0xf]
      %v647 = vld [vmem:[%s351 + $0x3d8] sm:$0xf]
      %v648 = vld [vmem:[%s351 + $0x3dc] sm:$0xf]
      %v649 = vld [vmem:[%s351 + $0x3e0] sm:$0xf]
      %v650 = vld [vmem:[%s351 + $0x3e4] sm:$0xf]
      %v651 = vld [vmem:[%s351 + $0x3e8] sm:$0xf]
      %v652 = vld [vmem:[%s351 + $0x3ec] sm:$0xf]
      %v653 = vld [vmem:[%s351 + $0x3f0] sm:$0xf]
      %v654 = vld [vmem:[%s351 + $0x3f4] sm:$0xf]
      %v655 = vld [vmem:[%s351 + $0x3f8] sm:$0xf]
      %v656 = vld [vmem:[%s351 + $0x3fc] sm:$0xf]
      %v689 = vunpack.c.l.b16 %v369
      %v690 = vunpack.c.h.b16 %v369
      %v691 = vunpack.c.l.b16 %v370
      %v692 = vunpack.c.h.b16 %v370
      %v693 = vunpack.c.l.b16 %v371
      %v694 = vunpack.c.h.b16 %v371
      %v695 = vunpack.c.l.b16 %v372
      %v696 = vunpack.c.h.b16 %v372
      %v697 = vunpack.c.l.b16 %v373
      %v698 = vunpack.c.h.b16 %v373
      %v699 = vunpack.c.l.b16 %v374
      %v700 = vunpack.c.h.b16 %v374
      %v701 = vunpack.c.l.b16 %v375
      %v702 = vunpack.c.h.b16 %v375
      %v703 = vunpack.c.l.b16 %v376
      %v704 = vunpack.c.h.b16 %v376
      %v705 = vunpack.c.l.b16 %v377
      %v706 = vunpack.c.h.b16 %v377
      %v707 = vunpack.c.l.b16 %v378
      %v708 = vunpack.c.h.b16 %v378
      %v709 = vunpack.c.l.b16 %v379
      %v710 = vunpack.c.h.b16 %v379
      %v711 = vunpack.c.l.b16 %v380
      %v712 = vunpack.c.h.b16 %v380
      %v713 = vunpack.c.l.b16 %v381
      %v714 = vunpack.c.h.b16 %v381
      %v715 = vunpack.c.l.b16 %v382
      %v716 = vunpack.c.h.b16 %v382
      %v717 = vunpack.c.l.b16 %v383
      %v718 = vunpack.c.h.b16 %v383
      %v719 = vunpack.c.l.b16 %v384
      %v720 = vunpack.c.h.b16 %v384
      %v721 = vunpack.c.l.b16 %v385
      %v722 = vunpack.c.h.b16 %v385
      %v723 = vunpack.c.l.b16 %v386
      %v724 = vunpack.c.h.b16 %v386
      %v725 = vunpack.c.l.b16 %v387
      %v726 = vunpack.c.h.b16 %v387
      %v727 = vunpack.c.l.b16 %v388
      %v728 = vunpack.c.h.b16 %v388
      %v729 = vunpack.c.l.b16 %v389
      %v730 = vunpack.c.h.b16 %v389
      %v731 = vunpack.c.l.b16 %v390
      %v732 = vunpack.c.h.b16 %v390
      %v733 = vunpack.c.l.b16 %v391
      %v734 = vunpack.c.h.b16 %v391
      %v735 = vunpack.c.l.b16 %v392
      %v736 = vunpack.c.h.b16 %v392
      %v737 = vunpack.c.l.b16 %v393
      %v738 = vunpack.c.h.b16 %v393
      %v739 = vunpack.c.l.b16 %v394
      %v740 = vunpack.c.h.b16 %v394
      %v741 = vunpack.c.l.b16 %v395
      %v742 = vunpack.c.h.b16 %v395
      %v743 = vunpack.c.l.b16 %v396
      %v744 = vunpack.c.h.b16 %v396
      %v745 = vunpack.c.l.b16 %v397
      %v746 = vunpack.c.h.b16 %v397
      %v747 = vunpack.c.l.b16 %v398
      %v748 = vunpack.c.h.b16 %v398
      %v749 = vunpack.c.l.b16 %v399
      %v750 = vunpack.c.h.b16 %v399
      %v751 = vunpack.c.l.b16 %v400
      %v752 = vunpack.c.h.b16 %v400
      %v753 = vpack.c.b16 %v705, %v689
      %v754 = vpack.c.b16 %v706, %v690
      %v755 = vpack.c.b16 %v707, %v691
      %v756 = vpack.c.b16 %v708, %v692
      %v757 = vpack.c.b16 %v709, %v693
      %v758 = vpack.c.b16 %v710, %v694
      %v759 = vpack.c.b16 %v711, %v695
      %v760 = vpack.c.b16 %v712, %v696
      %v761 = vpack.c.b16 %v713, %v697
      %v762 = vpack.c.b16 %v714, %v698
      %v763 = vpack.c.b16 %v715, %v699
      %v764 = vpack.c.b16 %v716, %v700
      %v765 = vpack.c.b16 %v717, %v701
      %v766 = vpack.c.b16 %v718, %v702
      %v767 = vpack.c.b16 %v719, %v703
      %v768 = vpack.c.b16 %v720, %v704
      %v769 = vpack.c.b16 %v737, %v721
      %v770 = vpack.c.b16 %v738, %v722
      %v771 = vpack.c.b16 %v739, %v723
      %v772 = vpack.c.b16 %v740, %v724
      %v773 = vpack.c.b16 %v741, %v725
      %v774 = vpack.c.b16 %v742, %v726
      %v775 = vpack.c.b16 %v743, %v727
      %v776 = vpack.c.b16 %v744, %v728
      %v777 = vpack.c.b16 %v745, %v729
      %v778 = vpack.c.b16 %v746, %v730
      %v779 = vpack.c.b16 %v747, %v731
      %v780 = vpack.c.b16 %v748, %v732
      %v781 = vpack.c.b16 %v749, %v733
      %v782 = vpack.c.b16 %v750, %v734
      %v783 = vpack.c.b16 %v751, %v735
      %v784 = vpack.c.b16 %v752, %v736
      %v1073 = vunpack.c.l.b16 %v401
      %v1074 = vunpack.c.l.b16 %v402
      %v1075 = vunpack.c.l.b16 %v403
      %v1076 = vunpack.c.l.b16 %v404
      %v1077 = vunpack.c.l.b16 %v405
      %v1078 = vunpack.c.l.b16 %v406
      %v1079 = vunpack.c.l.b16 %v407
      %v1080 = vunpack.c.l.b16 %v408
      %v1081 = vunpack.c.l.b16 %v409
      %v1082 = vunpack.c.l.b16 %v410
      %v1083 = vunpack.c.l.b16 %v411
      %v1084 = vunpack.c.l.b16 %v412
      %v1085 = vunpack.c.l.b16 %v413
      %v1086 = vunpack.c.l.b16 %v414
      %v1087 = vunpack.c.l.b16 %v415
      %v1088 = vunpack.c.l.b16 %v416
      %v1089 = vunpack.c.l.b16 %v417
      %v1090 = vunpack.c.l.b16 %v418
      %v1091 = vunpack.c.l.b16 %v419
      %v1092 = vunpack.c.l.b16 %v420
      %v1093 = vunpack.c.l.b16 %v421
      %v1094 = vunpack.c.l.b16 %v422
      %v1095 = vunpack.c.l.b16 %v423
      %v1096 = vunpack.c.l.b16 %v424
      %v1097 = vunpack.c.l.b16 %v425
      %v1098 = vunpack.c.l.b16 %v426
      %v1099 = vunpack.c.l.b16 %v427
      %v1100 = vunpack.c.l.b16 %v428
      %v1101 = vunpack.c.l.b16 %v429
      %v1102 = vunpack.c.l.b16 %v430
      %v1103 = vunpack.c.l.b16 %v431
      %v1104 = vunpack.c.l.b16 %v432
      %v1105 = vunpack.c.l.b16 %v433
      %v1106 = vunpack.c.l.b16 %v434
      %v1107 = vunpack.c.l.b16 %v435
      %v1108 = vunpack.c.l.b16 %v436
      %v1109 = vunpack.c.l.b16 %v437
      %v1110 = vunpack.c.l.b16 %v438
      %v1111 = vunpack.c.l.b16 %v439
      %v1112 = vunpack.c.l.b16 %v440
      %v1113 = vunpack.c.l.b16 %v441
      %v1114 = vunpack.c.l.b16 %v442
      %v1115 = vunpack.c.l.b16 %v443
      %v1116 = vunpack.c.l.b16 %v444
      %v1117 = vunpack.c.l.b16 %v445
      %v1118 = vunpack.c.l.b16 %v446
      %v1119 = vunpack.c.l.b16 %v447
      %v1120 = vunpack.c.l.b16 %v448
      %v1121 = vunpack.c.l.b16 %v449
      %v1122 = vunpack.c.l.b16 %v450
      %v1123 = vunpack.c.l.b16 %v451
      %v1124 = vunpack.c.l.b16 %v452
      %v1125 = vunpack.c.l.b16 %v453
      %v1126 = vunpack.c.l.b16 %v454
      %v1127 = vunpack.c.l.b16 %v455
      %v1128 = vunpack.c.l.b16 %v456
      %v1129 = vunpack.c.l.b16 %v457
      %v1130 = vunpack.c.l.b16 %v458
      %v1131 = vunpack.c.l.b16 %v459
      %v1132 = vunpack.c.l.b16 %v460
      %v1133 = vunpack.c.l.b16 %v461
      %v1134 = vunpack.c.l.b16 %v462
      %v1135 = vunpack.c.l.b16 %v463
      %v1136 = vunpack.c.l.b16 %v464
      %v1137 = vunpack.c.l.b16 %v465
      %v1138 = vunpack.c.l.b16 %v466
      %v1139 = vunpack.c.l.b16 %v467
      %v1140 = vunpack.c.l.b16 %v468
      %v1141 = vunpack.c.l.b16 %v469
      %v1142 = vunpack.c.l.b16 %v470
      %v1143 = vunpack.c.l.b16 %v471
      %v1144 = vunpack.c.l.b16 %v472
      %v1145 = vunpack.c.l.b16 %v473
      %v1146 = vunpack.c.l.b16 %v474
      %v1147 = vunpack.c.l.b16 %v475
      %v1148 = vunpack.c.l.b16 %v476
      %v1149 = vunpack.c.l.b16 %v477
      %v1150 = vunpack.c.l.b16 %v478
      %v1151 = vunpack.c.l.b16 %v479
      %v1152 = vunpack.c.l.b16 %v480
      %v1153 = vunpack.c.l.b16 %v481
      %v1154 = vunpack.c.l.b16 %v482
      %v1155 = vunpack.c.l.b16 %v483
      %v1156 = vunpack.c.l.b16 %v484
      %v1157 = vunpack.c.l.b16 %v485
      %v1158 = vunpack.c.l.b16 %v486
      %v1159 = vunpack.c.l.b16 %v487
      %v1160 = vunpack.c.l.b16 %v488
      %v1161 = vunpack.c.l.b16 %v489
      %v1162 = vunpack.c.l.b16 %v490
      %v1163 = vunpack.c.l.b16 %v491
      %v1164 = vunpack.c.l.b16 %v492
      %v1165 = vunpack.c.l.b16 %v493
      %v1166 = vunpack.c.l.b16 %v494
      %v1167 = vunpack.c.l.b16 %v495
      %v1168 = vunpack.c.l.b16 %v496
      %v1169 = vunpack.c.l.b16 %v497
      %v1170 = vunpack.c.l.b16 %v498
      %v1171 = vunpack.c.l.b16 %v499
      %v1172 = vunpack.c.l.b16 %v500
      %v1173 = vunpack.c.l.b16 %v501
      %v1174 = vunpack.c.l.b16 %v502
      %v1175 = vunpack.c.l.b16 %v503
      %v1176 = vunpack.c.l.b16 %v504
      %v1177 = vunpack.c.l.b16 %v505
      %v1178 = vunpack.c.l.b16 %v506
      %v1179 = vunpack.c.l.b16 %v507
      %v1180 = vunpack.c.l.b16 %v508
      %v1181 = vunpack.c.l.b16 %v509
      %v1182 = vunpack.c.l.b16 %v510
      %v1183 = vunpack.c.l.b16 %v511
      %v1184 = vunpack.c.l.b16 %v512
      %v1185 = vunpack.c.l.b16 %v513
      %v1186 = vunpack.c.l.b16 %v514
      %v1187 = vunpack.c.l.b16 %v515
      %v1188 = vunpack.c.l.b16 %v516
      %v1189 = vunpack.c.l.b16 %v517
      %v1190 = vunpack.c.l.b16 %v518
      %v1191 = vunpack.c.l.b16 %v519
      %v1192 = vunpack.c.l.b16 %v520
      %v1193 = vunpack.c.l.b16 %v521
      %v1194 = vunpack.c.l.b16 %v522
      %v1195 = vunpack.c.l.b16 %v523
      %v1196 = vunpack.c.l.b16 %v524
      %v1197 = vunpack.c.l.b16 %v525
      %v1198 = vunpack.c.l.b16 %v526
      %v1199 = vunpack.c.l.b16 %v527
      %v1200 = vunpack.c.l.b16 %v528
      %v1201 = vunpack.c.l.b16 %v529
      %v1202 = vunpack.c.l.b16 %v530
      %v1203 = vunpack.c.l.b16 %v531
      %v1204 = vunpack.c.l.b16 %v532
      %v1205 = vunpack.c.l.b16 %v533
      %v1206 = vunpack.c.l.b16 %v534
      %v1207 = vunpack.c.l.b16 %v535
      %v1208 = vunpack.c.l.b16 %v536
      %v1209 = vunpack.c.l.b16 %v537
      %v1210 = vunpack.c.l.b16 %v538
      %v1211 = vunpack.c.l.b16 %v539
      %v1212 = vunpack.c.l.b16 %v540
      %v1213 = vunpack.c.l.b16 %v541
      %v1214 = vunpack.c.l.b16 %v542
      %v1215 = vunpack.c.l.b16 %v543
      %v1216 = vunpack.c.l.b16 %v544
      %v1217 = vunpack.c.l.b16 %v545
      %v1218 = vunpack.c.l.b16 %v546
      %v1219 = vunpack.c.l.b16 %v547
      %v1220 = vunpack.c.l.b16 %v548
      %v1221 = vunpack.c.l.b16 %v549
      %v1222 = vunpack.c.l.b16 %v550
      %v1223 = vunpack.c.l.b16 %v551
      %v1224 = vunpack.c.l.b16 %v552
      %v1225 = vunpack.c.l.b16 %v553
      %v1226 = vunpack.c.l.b16 %v554
      %v1227 = vunpack.c.l.b16 %v555
      %v1228 = vunpack.c.l.b16 %v556
      %v1229 = vunpack.c.l.b16 %v557
      %v1230 = vunpack.c.l.b16 %v558
      %v1231 = vunpack.c.l.b16 %v559
      %v1232 = vunpack.c.l.b16 %v560
      %v1233 = vunpack.c.l.b16 %v561
      %v1234 = vunpack.c.l.b16 %v562
      %v1235 = vunpack.c.l.b16 %v563
      %v1236 = vunpack.c.l.b16 %v564
      %v1237 = vunpack.c.l.b16 %v565
      %v1238 = vunpack.c.l.b16 %v566
      %v1239 = vunpack.c.l.b16 %v567
      %v1240 = vunpack.c.l.b16 %v568
      %v1241 = vunpack.c.l.b16 %v569
      %v1242 = vunpack.c.l.b16 %v570
      %v1243 = vunpack.c.l.b16 %v571
      %v1244 = vunpack.c.l.b16 %v572
      %v1245 = vunpack.c.l.b16 %v573
      %v1246 = vunpack.c.l.b16 %v574
      %v1247 = vunpack.c.l.b16 %v575
      %v1248 = vunpack.c.l.b16 %v576
      %v1249 = vunpack.c.l.b16 %v577
      %v1250 = vunpack.c.l.b16 %v578
      %v1251 = vunpack.c.l.b16 %v579
      %v1252 = vunpack.c.l.b16 %v580
      %v1253 = vunpack.c.l.b16 %v581
      %v1254 = vunpack.c.l.b16 %v582
      %v1255 = vunpack.c.l.b16 %v583
      %v1256 = vunpack.c.l.b16 %v584
      %v1257 = vunpack.c.l.b16 %v585
      %v1258 = vunpack.c.l.b16 %v586
      %v1259 = vunpack.c.l.b16 %v587
      %v1260 = vunpack.c.l.b16 %v588
      %v1261 = vunpack.c.l.b16 %v589
      %v1262 = vunpack.c.l.b16 %v590
      %v1263 = vunpack.c.l.b16 %v591
      %v1264 = vunpack.c.l.b16 %v592
      %v1265 = vunpack.c.l.b16 %v593
      %v1266 = vunpack.c.l.b16 %v594
      %v1267 = vunpack.c.l.b16 %v595
      %v1268 = vunpack.c.l.b16 %v596
      %v1269 = vunpack.c.l.b16 %v597
      %v1270 = vunpack.c.l.b16 %v598
      %v1271 = vunpack.c.l.b16 %v599
      %v1272 = vunpack.c.l.b16 %v600
      %v1273 = vunpack.c.l.b16 %v601
      %v1274 = vunpack.c.l.b16 %v602
      %v1275 = vunpack.c.l.b16 %v603
      %v1276 = vunpack.c.l.b16 %v604
      %v1277 = vunpack.c.l.b16 %v605
      %v1278 = vunpack.c.l.b16 %v606
      %v1279 = vunpack.c.l.b16 %v607
      %v1280 = vunpack.c.l.b16 %v608
      %v1281 = vunpack.c.l.b16 %v609
      %v1282 = vunpack.c.l.b16 %v610
      %v1283 = vunpack.c.l.b16 %v611
      %v1284 = vunpack.c.l.b16 %v612
      %v1285 = vunpack.c.l.b16 %v613
      %v1286 = vunpack.c.l.b16 %v614
      %v1287 = vunpack.c.l.b16 %v615
      %v1288 = vunpack.c.l.b16 %v616
      %v1289 = vunpack.c.l.b16 %v617
      %v1290 = vunpack.c.l.b16 %v618
      %v1291 = vunpack.c.l.b16 %v619
      %v1292 = vunpack.c.l.b16 %v620
      %v1293 = vunpack.c.l.b16 %v621
      %v1294 = vunpack.c.l.b16 %v622
      %v1295 = vunpack.c.l.b16 %v623
      %v1296 = vunpack.c.l.b16 %v624
      %v1297 = vunpack.c.l.b16 %v625
      %v1298 = vunpack.c.l.b16 %v626
      %v1299 = vunpack.c.l.b16 %v627
      %v1300 = vunpack.c.l.b16 %v628
      %v1301 = vunpack.c.l.b16 %v629
      %v1302 = vunpack.c.l.b16 %v630
      %v1303 = vunpack.c.l.b16 %v631
      %v1304 = vunpack.c.l.b16 %v632
      %v1305 = vunpack.c.l.b16 %v633
      %v1306 = vunpack.c.l.b16 %v634
      %v1307 = vunpack.c.l.b16 %v635
      %v1308 = vunpack.c.l.b16 %v636
      %v1309 = vunpack.c.l.b16 %v637
      %v1310 = vunpack.c.l.b16 %v638
      %v1311 = vunpack.c.l.b16 %v639
      %v1312 = vunpack.c.l.b16 %v640
      %v1313 = vunpack.c.l.b16 %v641
      %v1314 = vunpack.c.l.b16 %v642
      %v1315 = vunpack.c.l.b16 %v643
      %v1316 = vunpack.c.l.b16 %v644
      %v1317 = vunpack.c.l.b16 %v645
      %v1318 = vunpack.c.l.b16 %v646
      %v1319 = vunpack.c.l.b16 %v647
      %v1320 = vunpack.c.l.b16 %v648
      %v1321 = vunpack.c.l.b16 %v649
      %v1322 = vunpack.c.l.b16 %v650
      %v1323 = vunpack.c.l.b16 %v651
      %v1324 = vunpack.c.l.b16 %v652
      %v1325 = vunpack.c.l.b16 %v653
      %v1326 = vunpack.c.l.b16 %v654
      %v1327 = vunpack.c.l.b16 %v655
      %v1328 = vunpack.c.l.b16 %v656
      %v1329 = vpack.c.b16 %v1074, %v1073
      %v1330 = vpack.c.b16 %v1076, %v1075
      %v1331 = vpack.c.b16 %v1078, %v1077
      %v1332 = vpack.c.b16 %v1080, %v1079
      %v1333 = vpack.c.b16 %v1082, %v1081
      %v1334 = vpack.c.b16 %v1084, %v1083
      %v1335 = vpack.c.b16 %v1086, %v1085
      %v1336 = vpack.c.b16 %v1088, %v1087
      %v1337 = vpack.c.b16 %v1090, %v1089
      %v1338 = vpack.c.b16 %v1092, %v1091
      %v1339 = vpack.c.b16 %v1094, %v1093
      %v1340 = vpack.c.b16 %v1096, %v1095
      %v1341 = vpack.c.b16 %v1098, %v1097
      %v1342 = vpack.c.b16 %v1100, %v1099
      %v1343 = vpack.c.b16 %v1102, %v1101
      %v1344 = vpack.c.b16 %v1104, %v1103
      %v1345 = vpack.c.b16 %v1106, %v1105
      %v1346 = vpack.c.b16 %v1108, %v1107
      %v1347 = vpack.c.b16 %v1110, %v1109
      %v1348 = vpack.c.b16 %v1112, %v1111
      %v1349 = vpack.c.b16 %v1114, %v1113
      %v1350 = vpack.c.b16 %v1116, %v1115
      %v1351 = vpack.c.b16 %v1118, %v1117
      %v1352 = vpack.c.b16 %v1120, %v1119
      %v1353 = vpack.c.b16 %v1122, %v1121
      %v1354 = vpack.c.b16 %v1124, %v1123
      %v1355 = vpack.c.b16 %v1126, %v1125
      %v1356 = vpack.c.b16 %v1128, %v1127
      %v1357 = vpack.c.b16 %v1130, %v1129
      %v1358 = vpack.c.b16 %v1132, %v1131
      %v1359 = vpack.c.b16 %v1134, %v1133
      %v1360 = vpack.c.b16 %v1136, %v1135
      %v1361 = vpack.c.b16 %v1138, %v1137
      %v1362 = vpack.c.b16 %v1140, %v1139
      %v1363 = vpack.c.b16 %v1142, %v1141
      %v1364 = vpack.c.b16 %v1144, %v1143
      %v1365 = vpack.c.b16 %v1146, %v1145
      %v1366 = vpack.c.b16 %v1148, %v1147
      %v1367 = vpack.c.b16 %v1150, %v1149
      %v1368 = vpack.c.b16 %v1152, %v1151
      %v1369 = vpack.c.b16 %v1154, %v1153
      %v1370 = vpack.c.b16 %v1156, %v1155
      %v1371 = vpack.c.b16 %v1158, %v1157
      %v1372 = vpack.c.b16 %v1160, %v1159
      %v1373 = vpack.c.b16 %v1162, %v1161
      %v1374 = vpack.c.b16 %v1164, %v1163
      %v1375 = vpack.c.b16 %v1166, %v1165
      %v1376 = vpack.c.b16 %v1168, %v1167
      %v1377 = vpack.c.b16 %v1170, %v1169
      %v1378 = vpack.c.b16 %v1172, %v1171
      %v1379 = vpack.c.b16 %v1174, %v1173
      %v1380 = vpack.c.b16 %v1176, %v1175
      %v1381 = vpack.c.b16 %v1178, %v1177
      %v1382 = vpack.c.b16 %v1180, %v1179
      %v1383 = vpack.c.b16 %v1182, %v1181
      %v1384 = vpack.c.b16 %v1184, %v1183
      %v1385 = vpack.c.b16 %v1186, %v1185
      %v1386 = vpack.c.b16 %v1188, %v1187
      %v1387 = vpack.c.b16 %v1190, %v1189
      %v1388 = vpack.c.b16 %v1192, %v1191
      %v1389 = vpack.c.b16 %v1194, %v1193
      %v1390 = vpack.c.b16 %v1196, %v1195
      %v1391 = vpack.c.b16 %v1198, %v1197
      %v1392 = vpack.c.b16 %v1200, %v1199
      %v1393 = vpack.c.b16 %v1202, %v1201
      %v1394 = vpack.c.b16 %v1204, %v1203
      %v1395 = vpack.c.b16 %v1206, %v1205
      %v1396 = vpack.c.b16 %v1208, %v1207
      %v1397 = vpack.c.b16 %v1210, %v1209
      %v1398 = vpack.c.b16 %v1212, %v1211
      %v1399 = vpack.c.b16 %v1214, %v1213
      %v1400 = vpack.c.b16 %v1216, %v1215
      %v1401 = vpack.c.b16 %v1218, %v1217
      %v1402 = vpack.c.b16 %v1220, %v1219
      %v1403 = vpack.c.b16 %v1222, %v1221
      %v1404 = vpack.c.b16 %v1224, %v1223
      %v1405 = vpack.c.b16 %v1226, %v1225
      %v1406 = vpack.c.b16 %v1228, %v1227
      %v1407 = vpack.c.b16 %v1230, %v1229
      %v1408 = vpack.c.b16 %v1232, %v1231
      %v1409 = vpack.c.b16 %v1234, %v1233
      %v1410 = vpack.c.b16 %v1236, %v1235
      %v1411 = vpack.c.b16 %v1238, %v1237
      %v1412 = vpack.c.b16 %v1240, %v1239
      %v1413 = vpack.c.b16 %v1242, %v1241
      %v1414 = vpack.c.b16 %v1244, %v1243
      %v1415 = vpack.c.b16 %v1246, %v1245
      %v1416 = vpack.c.b16 %v1248, %v1247
      %v1417 = vpack.c.b16 %v1250, %v1249
      %v1418 = vpack.c.b16 %v1252, %v1251
      %v1419 = vpack.c.b16 %v1254, %v1253
      %v1420 = vpack.c.b16 %v1256, %v1255
      %v1421 = vpack.c.b16 %v1258, %v1257
      %v1422 = vpack.c.b16 %v1260, %v1259
      %v1423 = vpack.c.b16 %v1262, %v1261
      %v1424 = vpack.c.b16 %v1264, %v1263
      %v1425 = vpack.c.b16 %v1266, %v1265
      %v1426 = vpack.c.b16 %v1268, %v1267
      %v1427 = vpack.c.b16 %v1270, %v1269
      %v1428 = vpack.c.b16 %v1272, %v1271
      %v1429 = vpack.c.b16 %v1274, %v1273
      %v1430 = vpack.c.b16 %v1276, %v1275
      %v1431 = vpack.c.b16 %v1278, %v1277
      %v1432 = vpack.c.b16 %v1280, %v1279
      %v1433 = vpack.c.b16 %v1282, %v1281
      %v1434 = vpack.c.b16 %v1284, %v1283
      %v1435 = vpack.c.b16 %v1286, %v1285
      %v1436 = vpack.c.b16 %v1288, %v1287
      %v1437 = vpack.c.b16 %v1290, %v1289
      %v1438 = vpack.c.b16 %v1292, %v1291
      %v1439 = vpack.c.b16 %v1294, %v1293
      %v1440 = vpack.c.b16 %v1296, %v1295
      %v1441 = vpack.c.b16 %v1298, %v1297
      %v1442 = vpack.c.b16 %v1300, %v1299
      %v1443 = vpack.c.b16 %v1302, %v1301
      %v1444 = vpack.c.b16 %v1304, %v1303
      %v1445 = vpack.c.b16 %v1306, %v1305
      %v1446 = vpack.c.b16 %v1308, %v1307
      %v1447 = vpack.c.b16 %v1310, %v1309
      %v1448 = vpack.c.b16 %v1312, %v1311
      %v1449 = vpack.c.b16 %v1314, %v1313
      %v1450 = vpack.c.b16 %v1316, %v1315
      %v1451 = vpack.c.b16 %v1318, %v1317
      %v1452 = vpack.c.b16 %v1320, %v1319
      %v1453 = vpack.c.b16 %v1322, %v1321
      %v1454 = vpack.c.b16 %v1324, %v1323
      %v1455 = vpack.c.b16 %v1326, %v1325
      %v1456 = vpack.c.b16 %v1328, %v1327
      %1585 = vmatprep.subr.bf16.mxu0 0
      %1586 = vmatpush1.bf16.msra.mxu0 %v1329
      %1587 = vmatprep.subr.bf16.mxu0 0
      %1588 = vmatpush1.bf16.msra.mxu0 %v1330
      %1589 = vmatprep.subr.bf16.mxu0 0
      %1590 = vmatpush1.bf16.msra.mxu0 %v1331
      %1591 = vmatprep.subr.bf16.mxu0 0
      %1592 = vmatpush1.bf16.msra.mxu0 %v1332
      %1593 = vmatprep.subr.bf16.mxu0 0
      %1594 = vmatpush1.bf16.msra.mxu0 %v1333
      %1595 = vmatprep.subr.bf16.mxu0 0
      %1596 = vmatpush1.bf16.msra.mxu0 %v1334
      %1597 = vmatprep.subr.bf16.mxu0 0
      %1598 = vmatpush1.bf16.msra.mxu0 %v1335
      %1599 = vmatprep.subr.bf16.mxu0 0
      %1600 = vmatpush1.bf16.msra.mxu0 %v1336
      %1601 = vmatprep.subr.bf16.mxu0 0
      %1602 = vmatpush1.bf16.msra.mxu0 %v1337
      %1603 = vmatprep.subr.bf16.mxu0 0
      %1604 = vmatpush1.bf16.msra.mxu0 %v1338
      %1605 = vmatprep.subr.bf16.mxu0 0
      %1606 = vmatpush1.bf16.msra.mxu0 %v1339
      %1607 = vmatprep.subr.bf16.mxu0 0
      %1608 = vmatpush1.bf16.msra.mxu0 %v1340
      %1609 = vmatprep.subr.bf16.mxu0 0
      %1610 = vmatpush1.bf16.msra.mxu0 %v1341
      %1611 = vmatprep.subr.bf16.mxu0 0
      %1612 = vmatpush1.bf16.msra.mxu0 %v1342
      %1613 = vmatprep.subr.bf16.mxu0 0
      %1614 = vmatpush1.bf16.msra.mxu0 %v1343
      %1615 = vmatprep.subr.bf16.mxu0 0
      %1616 = vmatpush1.bf16.msra.mxu0 %v1344
      %1617 = vmatprep.mubr.bf16.mxu0 %v754
      %1618 = vmatmul.mubr.bf16.gmra.mrb[0].mxu0 %v753
      %v1619 = vpop.f32.mrb[0].mxu0
      %v1620 = vadd.f32 0.0, %v1619
      %v1621 = vpop.f32.mrb[0].mxu0
      %v1622 = vpop.f32.mrb[0].mxu0
      %v1623 = vadd.f32 0.0, %v1622
      %v1624 = vpop.f32.mrb[0].mxu0
      %1625 = vmatprep.mubr.bf16.mxu0 %v770
      %1626 = vmatmul.mubr.bf16.gmra.mrb[0].mxu0 %v769
      %v1627 = vpop.f32.mrb[0].mxu0
      %v1628 = vadd.f32 0.0, %v1627
      %v1629 = vpop.f32.mrb[0].mxu0
      %v1630 = vpop.f32.mrb[0].mxu0
      %v1631 = vadd.f32 0.0, %v1630
      %v1632 = vpop.f32.mrb[0].mxu0
      %1633 = vdwg.mxu0
      %1634 = vmatprep.subr.bf16.mxu0 0
      %1635 = vmatpush1.bf16.msra.mxu0 %v1345
      %1636 = vmatprep.subr.bf16.mxu0 0
      %1637 = vmatpush1.bf16.msra.mxu0 %v1346
      %1638 = vmatprep.subr.bf16.mxu0 0
      %1639 = vmatpush1.bf16.msra.mxu0 %v1347
      %1640 = vmatprep.subr.bf16.mxu0 0
      %1641 = vmatpush1.bf16.msra.mxu0 %v1348
      %1642 = vmatprep.subr.bf16.mxu0 0
      %1643 = vmatpush1.bf16.msra.mxu0 %v1349
      %1644 = vmatprep.subr.bf16.mxu0 0
      %1645 = vmatpush1.bf16.msra.mxu0 %v1350
      %1646 = vmatprep.subr.bf16.mxu0 0
      %1647 = vmatpush1.bf16.msra.mxu0 %v1351
      %1648 = vmatprep.subr.bf16.mxu0 0
      %1649 = vmatpush1.bf16.msra.mxu0 %v1352
      %1650 = vmatprep.subr.bf16.mxu0 0
      %1651 = vmatpush1.bf16.msra.mxu0 %v1353
      %1652 = vmatprep.subr.bf16.mxu0 0
      %1653 = vmatpush1.bf16.msra.mxu0 %v1354
      %1654 = vmatprep.subr.bf16.mxu0 0
      %1655 = vmatpush1.bf16.msra.mxu0 %v1355
      %1656 = vmatprep.subr.bf16.mxu0 0
      %1657 = vmatpush1.bf16.msra.mxu0 %v1356
      %1658 = vmatprep.subr.bf16.mxu0 0
      %1659 = vmatpush1.bf16.msra.mxu0 %v1357
      %1660 = vmatprep.subr.bf16.mxu0 0
      %1661 = vmatpush1.bf16.msra.mxu0 %v1358
      %1662 = vmatprep.subr.bf16.mxu0 0
      %1663 = vmatpush1.bf16.msra.mxu0 %v1359
      %1664 = vmatprep.subr.bf16.mxu0 0
      %1665 = vmatpush1.bf16.msra.mxu0 %v1360
      %1666 = vmatprep.mubr.bf16.mxu0 %v756
      %1667 = vmatmul.mubr.bf16.gmra.mrb[0].mxu0 %v755
      %v1668 = vpop.f32.mrb[0].mxu0
      %v1669 = vadd.f32 %v1620, %v1668
      %v1670 = vpop.f32.mrb[0].mxu0
      %v1671 = vpop.f32.mrb[0].mxu0
      %v1672 = vadd.f32 %v1623, %v1671
      %v1673 = vpop.f32.mrb[0].mxu0
      %1674 = vmatprep.mubr.bf16.mxu0 %v772
      %1675 = vmatmul.mubr.bf16.gmra.mrb[0].mxu0 %v771
      %v1676 = vpop.f32.mrb[0].mxu0
      %v1677 = vadd.f32 %v1628, %v1676
      %v1678 = vpop.f32.mrb[0].mxu0
      %v1679 = vpop.f32.mrb[0].mxu0
      %v1680 = vadd.f32 %v1631, %v1679
      %v1681 = vpop.f32.mrb[0].mxu0
      %1682 = vdwg.mxu0
      %1683 = vmatprep.subr.bf16.mxu0 0
      %1684 = vmatpush1.bf16.msra.mxu0 %v1361
      %1685 = vmatprep.subr.bf16.mxu0 0
      %1686 = vmatpush1.bf16.msra.mxu0 %v1362
      %1687 = vmatprep.subr.bf16.mxu0 0
      %1688 = vmatpush1.bf16.msra.mxu0 %v1363
      %1689 = vmatprep.subr.bf16.mxu0 0
      %1690 = vmatpush1.bf16.msra.mxu0 %v1364
      %1691 = vmatprep.subr.bf16.mxu0 0
      %1692 = vmatpush1.bf16.msra.mxu0 %v1365
      %1693 = vmatprep.subr.bf16.mxu0 0
      %1694 = vmatpush1.bf16.msra.mxu0 %v1366
      %1695 = vmatprep.subr.bf16.mxu0 0
      %1696 = vmatpush1.bf16.msra.mxu0 %v1367
      %1697 = vmatprep.subr.bf16.mxu0 0
      %1698 = vmatpush1.bf16.msra.mxu0 %v1368
      %1699 = vmatprep.subr.bf16.mxu0 0
      %1700 = vmatpush1.bf16.msra.mxu0 %v1369
      %1701 = vmatprep.subr.bf16.mxu0 0
      %1702 = vmatpush1.bf16.msra.mxu0 %v1370
      %1703 = vmatprep.subr.bf16.mxu0 0
      %1704 = vmatpush1.bf16.msra.mxu0 %v1371
      %1705 = vmatprep.subr.bf16.mxu0 0
      %1706 = vmatpush1.bf16.msra.mxu0 %v1372
      %1707 = vmatprep.subr.bf16.mxu0 0
      %1708 = vmatpush1.bf16.msra.mxu0 %v1373
      %1709 = vmatprep.subr.bf16.mxu0 0
      %1710 = vmatpush1.bf16.msra.mxu0 %v1374
      %1711 = vmatprep.subr.bf16.mxu0 0
      %1712 = vmatpush1.bf16.msra.mxu0 %v1375
      %1713 = vmatprep.subr.bf16.mxu0 0
      %1714 = vmatpush1.bf16.msra.mxu0 %v1376
      %1715 = vmatprep.mubr.bf16.mxu0 %v758
      %1716 = vmatmul.mubr.bf16.gmra.mrb[0].mxu0 %v757
      %v1717 = vpop.f32.mrb[0].mxu0
      %v1718 = vadd.f32 %v1669, %v1717
      %v1719 = vpop.f32.mrb[0].mxu0
      %v1720 = vpop.f32.mrb[0].mxu0
      %v1721 = vadd.f32 %v1672, %v1720
      %v1722 = vpop.f32.mrb[0].mxu0
      %1723 = vmatprep.mubr.bf16.mxu0 %v774
      %1724 = vmatmul.mubr.bf16.gmra.mrb[0].mxu0 %v773
      %v1725 = vpop.f32.mrb[0].mxu0
      %v1726 = vadd.f32 %v1677, %v1725
      %v1727 = vpop.f32.mrb[0].mxu0
      %v1728 = vpop.f32.mrb[0].mxu0
      %v1729 = vadd.f32 %v1680, %v1728
      %v1730 = vpop.f32.mrb[0].mxu0
      %1731 = vdwg.mxu0
      %1732 = vmatprep.subr.bf16.mxu0 0
      %1733 = vmatpush1.bf16.msra.mxu0 %v1377
      %1734 = vmatprep.subr.bf16.mxu0 0
      %1735 = vmatpush1.bf16.msra.mxu0 %v1378
      %1736 = vmatprep.subr.bf16.mxu0 0
      %1737 = vmatpush1.bf16.msra.mxu0 %v1379
      %1738 = vmatprep.subr.bf16.mxu0 0
      %1739 = vmatpush1.bf16.msra.mxu0 %v1380
      %1740 = vmatprep.subr.bf16.mxu0 0
      %1741 = vmatpush1.bf16.msra.mxu0 %v1381
      %1742 = vmatprep.subr.bf16.mxu0 0
      %1743 = vmatpush1.bf16.msra.mxu0 %v1382
      %1744 = vmatprep.subr.bf16.mxu0 0
      %1745 = vmatpush1.bf16.msra.mxu0 %v1383
      %1746 = vmatprep.subr.bf16.mxu0 0
      %1747 = vmatpush1.bf16.msra.mxu0 %v1384
      %1748 = vmatprep.subr.bf16.mxu0 0
      %1749 = vmatpush1.bf16.msra.mxu0 %v1385
      %1750 = vmatprep.subr.bf16.mxu0 0
      %1751 = vmatpush1.bf16.msra.mxu0 %v1386
      %1752 = vmatprep.subr.bf16.mxu0 0
      %1753 = vmatpush1.bf16.msra.mxu0 %v1387
      %1754 = vmatprep.subr.bf16.mxu0 0
      %1755 = vmatpush1.bf16.msra.mxu0 %v1388
      %1756 = vmatprep.subr.bf16.mxu0 0
      %1757 = vmatpush1.bf16.msra.mxu0 %v1389
      %1758 = vmatprep.subr.bf16.mxu0 0
      %1759 = vmatpush1.bf16.msra.mxu0 %v1390
      %1760 = vmatprep.subr.bf16.mxu0 0
      %1761 = vmatpush1.bf16.msra.mxu0 %v1391
      %1762 = vmatprep.subr.bf16.mxu0 0
      %1763 = vmatpush1.bf16.msra.mxu0 %v1392
      %1764 = vmatprep.mubr.bf16.mxu0 %v760
      %1765 = vmatmul.mubr.bf16.gmra.mrb[0].mxu0 %v759
      %v1766 = vpop.f32.mrb[0].mxu0
      %v1767 = vadd.f32 %v1718, %v1766
      %v1768 = vpop.f32.mrb[0].mxu0
      %v1769 = vpop.f32.mrb[0].mxu0
      %v1770 = vadd.f32 %v1721, %v1769
      %v1771 = vpop.f32.mrb[0].mxu0
      %1772 = vmatprep.mubr.bf16.mxu0 %v776
      %1773 = vmatmul.mubr.bf16.gmra.mrb[0].mxu0 %v775
      %v1774 = vpop.f32.mrb[0].mxu0
      %v1775 = vadd.f32 %v1726, %v1774
      %v1776 = vpop.f32.mrb[0].mxu0
      %v1777 = vpop.f32.mrb[0].mxu0
      %v1778 = vadd.f32 %v1729, %v1777
      %v1779 = vpop.f32.mrb[0].mxu0
      %1780 = vdwg.mxu0
      %1781 = vmatprep.subr.bf16.mxu0 0
      %1782 = vmatpush1.bf16.msra.mxu0 %v1393
      %1783 = vmatprep.subr.bf16.mxu0 0
      %1784 = vmatpush1.bf16.msra.mxu0 %v1394
      %1785 = vmatprep.subr.bf16.mxu0 0
      %1786 = vmatpush1.bf16.msra.mxu0 %v1395
      %1787 = vmatprep.subr.bf16.mxu0 0
      %1788 = vmatpush1.bf16.msra.mxu0 %v1396
      %1789 = vmatprep.subr.bf16.mxu0 0
      %1790 = vmatpush1.bf16.msra.mxu0 %v1397
      %1791 = vmatprep.subr.bf16.mxu0 0
      %1792 = vmatpush1.bf16.msra.mxu0 %v1398
      %1793 = vmatprep.subr.bf16.mxu0 0
      %1794 = vmatpush1.bf16.msra.mxu0 %v1399
      %1795 = vmatprep.subr.bf16.mxu0 0
      %1796 = vmatpush1.bf16.msra.mxu0 %v1400
      %1797 = vmatprep.subr.bf16.mxu0 0
      %1798 = vmatpush1.bf16.msra.mxu0 %v1401
      %1799 = vmatprep.subr.bf16.mxu0 0
      %1800 = vmatpush1.bf16.msra.mxu0 %v1402
      %1801 = vmatprep.subr.bf16.mxu0 0
      %1802 = vmatpush1.bf16.msra.mxu0 %v1403
      %1803 = vmatprep.subr.bf16.mxu0 0
      %1804 = vmatpush1.bf16.msra.mxu0 %v1404
      %1805 = vmatprep.subr.bf16.mxu0 0
      %1806 = vmatpush1.bf16.msra.mxu0 %v1405
      %1807 = vmatprep.subr.bf16.mxu0 0
      %1808 = vmatpush1.bf16.msra.mxu0 %v1406
      %1809 = vmatprep.subr.bf16.mxu0 0
      %1810 = vmatpush1.bf16.msra.mxu0 %v1407
      %1811 = vmatprep.subr.bf16.mxu0 0
      %1812 = vmatpush1.bf16.msra.mxu0 %v1408
      %1813 = vmatprep.mubr.bf16.mxu0 %v762
      %1814 = vmatmul.mubr.bf16.gmra.mrb[0].mxu0 %v761
      %v1815 = vpop.f32.mrb[0].mxu0
      %v1816 = vadd.f32 %v1767, %v1815
      %v1817 = vpop.f32.mrb[0].mxu0
      %v1818 = vpop.f32.mrb[0].mxu0
      %v1819 = vadd.f32 %v1770, %v1818
      %v1820 = vpop.f32.mrb[0].mxu0
      %1821 = vmatprep.mubr.bf16.mxu0 %v778
      %1822 = vmatmul.mubr.bf16.gmra.mrb[0].mxu0 %v777
      %v1823 = vpop.f32.mrb[0].mxu0
      %v1824 = vadd.f32 %v1775, %v1823
      %v1825 = vpop.f32.mrb[0].mxu0
      %v1826 = vpop.f32.mrb[0].mxu0
      %v1827 = vadd.f32 %v1778, %v1826
      %v1828 = vpop.f32.mrb[0].mxu0
      %1829 = vdwg.mxu0
      %1830 = vmatprep.subr.bf16.mxu0 0
      %1831 = vmatpush1.bf16.msra.mxu0 %v1409
      %1832 = vmatprep.subr.bf16.mxu0 0
      %1833 = vmatpush1.bf16.msra.mxu0 %v1410
      %1834 = vmatprep.subr.bf16.mxu0 0
      %1835 = vmatpush1.bf16.msra.mxu0 %v1411
      %1836 = vmatprep.subr.bf16.mxu0 0
      %1837 = vmatpush1.bf16.msra.mxu0 %v1412
      %1838 = vmatprep.subr.bf16.mxu0 0
      %1839 = vmatpush1.bf16.msra.mxu0 %v1413
      %1840 = vmatprep.subr.bf16.mxu0 0
      %1841 = vmatpush1.bf16.msra.mxu0 %v1414
      %1842 = vmatprep.subr.bf16.mxu0 0
      %1843 = vmatpush1.bf16.msra.mxu0 %v1415
      %1844 = vmatprep.subr.bf16.mxu0 0
      %1845 = vmatpush1.bf16.msra.mxu0 %v1416
      %1846 = vmatprep.subr.bf16.mxu0 0
      %1847 = vmatpush1.bf16.msra.mxu0 %v1417
      %1848 = vmatprep.subr.bf16.mxu0 0
      %1849 = vmatpush1.bf16.msra.mxu0 %v1418
      %1850 = vmatprep.subr.bf16.mxu0 0
      %1851 = vmatpush1.bf16.msra.mxu0 %v1419
      %1852 = vmatprep.subr.bf16.mxu0 0
      %1853 = vmatpush1.bf16.msra.mxu0 %v1420
      %1854 = vmatprep.subr.bf16.mxu0 0
      %1855 = vmatpush1.bf16.msra.mxu0 %v1421
      %1856 = vmatprep.subr.bf16.mxu0 0
      %1857 = vmatpush1.bf16.msra.mxu0 %v1422
      %1858 = vmatprep.subr.bf16.mxu0 0
      %1859 = vmatpush1.bf16.msra.mxu0 %v1423
      %1860 = vmatprep.subr.bf16.mxu0 0
      %1861 = vmatpush1.bf16.msra.mxu0 %v1424
      %1862 = vmatprep.mubr.bf16.mxu0 %v764
      %1863 = vmatmul.mubr.bf16.gmra.mrb[0].mxu0 %v763
      %v1864 = vpop.f32.mrb[0].mxu0
      %v1865 = vadd.f32 %v1816, %v1864
      %v1866 = vpop.f32.mrb[0].mxu0
      %v1867 = vpop.f32.mrb[0].mxu0
      %v1868 = vadd.f32 %v1819, %v1867
      %v1869 = vpop.f32.mrb[0].mxu0
      %1870 = vmatprep.mubr.bf16.mxu0 %v780
      %1871 = vmatmul.mubr.bf16.gmra.mrb[0].mxu0 %v779
      %v1872 = vpop.f32.mrb[0].mxu0
      %v1873 = vadd.f32 %v1824, %v1872
      %v1874 = vpop.f32.mrb[0].mxu0
      %v1875 = vpop.f32.mrb[0].mxu0
      %v1876 = vadd.f32 %v1827, %v1875
      %v1877 = vpop.f32.mrb[0].mxu0
      %1878 = vdwg.mxu0
      %1879 = vmatprep.subr.bf16.mxu0 0
      %1880 = vmatpush1.bf16.msra.mxu0 %v1425
      %1881 = vmatprep.subr.bf16.mxu0 0
      %1882 = vmatpush1.bf16.msra.mxu0 %v1426
      %1883 = vmatprep.subr.bf16.mxu0 0
      %1884 = vmatpush1.bf16.msra.mxu0 %v1427
      %1885 = vmatprep.subr.bf16.mxu0 0
      %1886 = vmatpush1.bf16.msra.mxu0 %v1428
      %1887 = vmatprep.subr.bf16.mxu0 0
      %1888 = vmatpush1.bf16.msra.mxu0 %v1429
      %1889 = vmatprep.subr.bf16.mxu0 0
      %1890 = vmatpush1.bf16.msra.mxu0 %v1430
      %1891 = vmatprep.subr.bf16.mxu0 0
      %1892 = vmatpush1.bf16.msra.mxu0 %v1431
      %1893 = vmatprep.subr.bf16.mxu0 0
      %1894 = vmatpush1.bf16.msra.mxu0 %v1432
      %1895 = vmatprep.subr.bf16.mxu0 0
      %1896 = vmatpush1.bf16.msra.mxu0 %v1433
      %1897 = vmatprep.subr.bf16.mxu0 0
      %1898 = vmatpush1.bf16.msra.mxu0 %v1434
      %1899 = vmatprep.subr.bf16.mxu0 0
      %1900 = vmatpush1.bf16.msra.mxu0 %v1435
      %1901 = vmatprep.subr.bf16.mxu0 0
      %1902 = vmatpush1.bf16.msra.mxu0 %v1436
      %1903 = vmatprep.subr.bf16.mxu0 0
      %1904 = vmatpush1.bf16.msra.mxu0 %v1437
      %1905 = vmatprep.subr.bf16.mxu0 0
      %1906 = vmatpush1.bf16.msra.mxu0 %v1438
      %1907 = vmatprep.subr.bf16.mxu0 0
      %1908 = vmatpush1.bf16.msra.mxu0 %v1439
      %1909 = vmatprep.subr.bf16.mxu0 0
      %1910 = vmatpush1.bf16.msra.mxu0 %v1440
      %1911 = vmatprep.mubr.bf16.mxu0 %v766
      %1912 = vmatmul.mubr.bf16.gmra.mrb[0].mxu0 %v765
      %v1913 = vpop.f32.mrb[0].mxu0
      %v1914 = vadd.f32 %v1865, %v1913
      %v1915 = vpop.f32.mrb[0].mxu0
      %v1916 = vpop.f32.mrb[0].mxu0
      %v1917 = vadd.f32 %v1868, %v1916
      %v1918 = vpop.f32.mrb[0].mxu0
      %1919 = vmatprep.mubr.bf16.mxu0 %v782
      %1920 = vmatmul.mubr.bf16.gmra.mrb[0].mxu0 %v781
      %v1921 = vpop.f32.mrb[0].mxu0
      %v1922 = vadd.f32 %v1873, %v1921
      %v1923 = vpop.f32.mrb[0].mxu0
      %v1924 = vpop.f32.mrb[0].mxu0
      %v1925 = vadd.f32 %v1876, %v1924
      %v1926 = vpop.f32.mrb[0].mxu0
      %1927 = vdwg.mxu0
      %1928 = vmatprep.subr.bf16.mxu0 0
      %1929 = vmatpush1.bf16.msra.mxu0 %v1441
      %1930 = vmatprep.subr.bf16.mxu0 0
      %1931 = vmatpush1.bf16.msra.mxu0 %v1442
      %1932 = vmatprep.subr.bf16.mxu0 0
      %1933 = vmatpush1.bf16.msra.mxu0 %v1443
      %1934 = vmatprep.subr.bf16.mxu0 0
      %1935 = vmatpush1.bf16.msra.mxu0 %v1444
      %1936 = vmatprep.subr.bf16.mxu0 0
      %1937 = vmatpush1.bf16.msra.mxu0 %v1445
      %1938 = vmatprep.subr.bf16.mxu0 0
      %1939 = vmatpush1.bf16.msra.mxu0 %v1446
      %1940 = vmatprep.subr.bf16.mxu0 0
      %1941 = vmatpush1.bf16.msra.mxu0 %v1447
      %1942 = vmatprep.subr.bf16.mxu0 0
      %1943 = vmatpush1.bf16.msra.mxu0 %v1448
      %1944 = vmatprep.subr.bf16.mxu0 0
      %1945 = vmatpush1.bf16.msra.mxu0 %v1449
      %1946 = vmatprep.subr.bf16.mxu0 0
      %1947 = vmatpush1.bf16.msra.mxu0 %v1450
      %1948 = vmatprep.subr.bf16.mxu0 0
      %1949 = vmatpush1.bf16.msra.mxu0 %v1451
      %1950 = vmatprep.subr.bf16.mxu0 0
      %1951 = vmatpush1.bf16.msra.mxu0 %v1452
      %1952 = vmatprep.subr.bf16.mxu0 0
      %1953 = vmatpush1.bf16.msra.mxu0 %v1453
      %1954 = vmatprep.subr.bf16.mxu0 0
      %1955 = vmatpush1.bf16.msra.mxu0 %v1454
      %1956 = vmatprep.subr.bf16.mxu0 0
      %1957 = vmatpush1.bf16.msra.mxu0 %v1455
      %1958 = vmatprep.subr.bf16.mxu0 0
      %1959 = vmatpush1.bf16.msra.mxu0 %v1456
      %1960 = vmatprep.mubr.bf16.mxu0 %v768
      %1961 = vmatmul.mubr.bf16.gmra.mrb[0].mxu0 %v767
      %v1962 = vpop.f32.mrb[0].mxu0
      %v1963 = vadd.f32 %v1914, %v1962
      %v1964 = vpop.f32.mrb[0].mxu0
      %v1965 = vpop.f32.mrb[0].mxu0
      %v1966 = vadd.f32 %v1917, %v1965
      %v1967 = vpop.f32.mrb[0].mxu0
      %1968 = vmatprep.mubr.bf16.mxu0 %v784
      %1969 = vmatmul.mubr.bf16.gmra.mrb[0].mxu0 %v783
      %v1970 = vpop.f32.mrb[0].mxu0
      %v1971 = vadd.f32 %v1922, %v1970
      %v1972 = vpop.f32.mrb[0].mxu0
      %v1973 = vpop.f32.mrb[0].mxu0
      %v1974 = vadd.f32 %v1925, %v1973
      %v1975 = vpop.f32.mrb[0].mxu0
      %1976 = vdwg.mxu0
      %v1977 = vld [vmem:[%s4] sm:$0xff]
      %v1978 = vld [vmem:[%s4 + $0x8] sm:$0xff]
      %v1979 = vld [vmem:[%s4 + $0x10] sm:$0xff]
      %v1980 = vld [vmem:[%s4 + $0x18] sm:$0xff]
      %1982 = vset.pattern.permute.xlu0 0
      %1983 = vperm.xlu0 %1982, %v1977
      %v1984 = vpop.permute.xlu0 %1983
      %1987 = vset.pattern.permute.xlu0 0
      %1988 = vperm.xlu0 %1987, %v1978
      %v1989 = vpop.permute.xlu0 %1988
      %1992 = vset.pattern.permute.xlu0 0
      %1993 = vperm.xlu0 %1992, %v1979
      %v1994 = vpop.permute.xlu0 %1993
      %1997 = vset.pattern.permute.xlu0 0
      %1998 = vperm.xlu0 %1997, %v1980
      %v1999 = vpop.permute.xlu0 %1998
      %v2001 = vmul.f32 %v1963, %v1984
      %v2002 = vmul.f32 %v1966, %v1989
      %v2003 = vmul.f32 %v1971, %v1994
      %v2004 = vmul.f32 %v1974, %v1999
      %v2005 = vld [vmem:[%s5] sm:$0xff]
      %v2006 = vld [vmem:[%s5 + $0x8] sm:$0xff]
      %v2007 = vld [vmem:[%s5 + $0x10] sm:$0xff]
      %v2008 = vld [vmem:[%s5 + $0x18] sm:$0xff]
      %2010 = vset.pattern.permute.xlu0 0
      %2011 = vperm.xlu0 %2010, %v2005
      %v2012 = vpop.permute.xlu0 %2011
      %2015 = vset.pattern.permute.xlu0 0
      %2016 = vperm.xlu0 %2015, %v2006
      %v2017 = vpop.permute.xlu0 %2016
      %2020 = vset.pattern.permute.xlu0 0
      %2021 = vperm.xlu0 %2020, %v2007
      %v2022 = vpop.permute.xlu0 %2021
      %2025 = vset.pattern.permute.xlu0 0
      %2026 = vperm.xlu0 %2025, %v2008
      %v2027 = vpop.permute.xlu0 %2026
      %v2029 = vadd.f32 %v2001, %v2012
      %v2030 = vadd.f32 %v2002, %v2017
      %v2031 = vadd.f32 %v2003, %v2022
      %v2032 = vadd.f32 %v2004, %v2027
      %v2033 = vmax.f32 %v2029, 0.0
      %v2034 = vmax.f32 %v2030, 0.0
      %v2035 = vmax.f32 %v2031, 0.0
      %v2036 = vmax.f32 %v2032, 0.0
      %v2037 = vld [vmem:[%s3] sm:$0xff]
      %v2038 = vld [vmem:[%s3 + $0x8] sm:$0xff]
      %v2039 = vld [vmem:[%s3 + $0x10] sm:$0xff]
      %v2040 = vld [vmem:[%s3 + $0x18] sm:$0xff]
      %v2041 = vld [vmem:[%s3 + $0x20] sm:$0xff]
      %v2042 = vld [vmem:[%s3 + $0x28] sm:$0xff]
      %v2043 = vld [vmem:[%s3 + $0x30] sm:$0xff]
      %v2044 = vld [vmem:[%s3 + $0x38] sm:$0xff]
      %v2045 = vld [vmem:[%s3 + $0x40] sm:$0xff]
      %v2046 = vld [vmem:[%s3 + $0x48] sm:$0xff]
      %v2047 = vld [vmem:[%s3 + $0x50] sm:$0xff]
      %v2048 = vld [vmem:[%s3 + $0x58] sm:$0xff]
      %v2049 = vld [vmem:[%s3 + $0x60] sm:$0xff]
      %v2050 = vld [vmem:[%s3 + $0x68] sm:$0xff]
      %v2051 = vld [vmem:[%s3 + $0x70] sm:$0xff]
      %v2052 = vld [vmem:[%s3 + $0x78] sm:$0xff]
      %v2053 = vld [vmem:[%s6] sm:$0xff]
      %v2054 = vld [vmem:[%s6 + $0x8] sm:$0xff]
      %v2055 = vld [vmem:[%s6 + $0x10] sm:$0xff]
      %v2056 = vld [vmem:[%s6 + $0x18] sm:$0xff]
      %v2057 = vld [vmem:[%s7] sm:$0xff]
      %v2058 = vld [vmem:[%s7 + $0x8] sm:$0xff]
      %v2059 = vld [vmem:[%s7 + $0x10] sm:$0xff]
      %v2060 = vld [vmem:[%s7 + $0x18] sm:$0xff]
      %v2061 = vld [vmem:[%s359] sm:$0xf]
      %v2062 = vld [vmem:[%s359 + $0x4] sm:$0xf]
      %v2063 = vld [vmem:[%s359 + $0x8] sm:$0xf]
      %v2064 = vld [vmem:[%s359 + $0xc] sm:$0xf]
      %v2065 = vld [vmem:[%s359 + $0x10] sm:$0xf]
      %v2066 = vld [vmem:[%s359 + $0x14] sm:$0xf]
      %v2067 = vld [vmem:[%s359 + $0x18] sm:$0xf]
      %v2068 = vld [vmem:[%s359 + $0x1c] sm:$0xf]
      %v2069 = vld [vmem:[%s359 + $0x20] sm:$0xf]
      %v2070 = vld [vmem:[%s359 + $0x24] sm:$0xf]
      %v2071 = vld [vmem:[%s359 + $0x28] sm:$0xf]
      %v2072 = vld [vmem:[%s359 + $0x2c] sm:$0xf]
      %v2073 = vld [vmem:[%s359 + $0x30] sm:$0xf]
      %v2074 = vld [vmem:[%s359 + $0x34] sm:$0xf]
      %v2075 = vld [vmem:[%s359 + $0x38] sm:$0xf]
      %v2076 = vld [vmem:[%s359 + $0x3c] sm:$0xf]
      %v2077 = vld [vmem:[%s359 + $0x40] sm:$0xf]
      %v2078 = vld [vmem:[%s359 + $0x44] sm:$0xf]
      %v2079 = vld [vmem:[%s359 + $0x48] sm:$0xf]
      %v2080 = vld [vmem:[%s359 + $0x4c] sm:$0xf]
      %v2081 = vld [vmem:[%s359 + $0x50] sm:$0xf]
      %v2082 = vld [vmem:[%s359 + $0x54] sm:$0xf]
      %v2083 = vld [vmem:[%s359 + $0x58] sm:$0xf]
      %v2084 = vld [vmem:[%s359 + $0x5c] sm:$0xf]
      %v2085 = vld [vmem:[%s359 + $0x60] sm:$0xf]
      %v2086 = vld [vmem:[%s359 + $0x64] sm:$0xf]
      %v2087 = vld [vmem:[%s359 + $0x68] sm:$0xf]
      %v2088 = vld [vmem:[%s359 + $0x6c] sm:$0xf]
      %v2089 = vld [vmem:[%s359 + $0x70] sm:$0xf]
      %v2090 = vld [vmem:[%s359 + $0x74] sm:$0xf]
      %v2091 = vld [vmem:[%s359 + $0x78] sm:$0xf]
      %v2092 = vld [vmem:[%s359 + $0x7c] sm:$0xf]
      %v2093 = vld [vmem:[%s359 + $0x80] sm:$0xf]
      %v2094 = vld [vmem:[%s359 + $0x84] sm:$0xf]
      %v2095 = vld [vmem:[%s359 + $0x88] sm:$0xf]
      %v2096 = vld [vmem:[%s359 + $0x8c] sm:$0xf]
      %v2097 = vld [vmem:[%s359 + $0x90] sm:$0xf]
      %v2098 = vld [vmem:[%s359 + $0x94] sm:$0xf]
      %v2099 = vld [vmem:[%s359 + $0x98] sm:$0xf]
      %v2100 = vld [vmem:[%s359 + $0x9c] sm:$0xf]
      %v2101 = vld [vmem:[%s359 + $0xa0] sm:$0xf]
      %v2102 = vld [vmem:[%s359 + $0xa4] sm:$0xf]
      %v2103 = vld [vmem:[%s359 + $0xa8] sm:$0xf]
      %v2104 = vld [vmem:[%s359 + $0xac] sm:$0xf]
      %v2105 = vld [vmem:[%s359 + $0xb0] sm:$0xf]
      %v2106 = vld [vmem:[%s359 + $0xb4] sm:$0xf]
      %v2107 = vld [vmem:[%s359 + $0xb8] sm:$0xf]
      %v2108 = vld [vmem:[%s359 + $0xbc] sm:$0xf]
      %v2109 = vld [vmem:[%s359 + $0xc0] sm:$0xf]
      %v2110 = vld [vmem:[%s359 + $0xc4] sm:$0xf]
      %v2111 = vld [vmem:[%s359 + $0xc8] sm:$0xf]
      %v2112 = vld [vmem:[%s359 + $0xcc] sm:$0xf]
      %v2113 = vld [vmem:[%s359 + $0xd0] sm:$0xf]
      %v2114 = vld [vmem:[%s359 + $0xd4] sm:$0xf]
      %v2115 = vld [vmem:[%s359 + $0xd8] sm:$0xf]
      %v2116 = vld [vmem:[%s359 + $0xdc] sm:$0xf]
      %v2117 = vld [vmem:[%s359 + $0xe0] sm:$0xf]
      %v2118 = vld [vmem:[%s359 + $0xe4] sm:$0xf]
      %v2119 = vld [vmem:[%s359 + $0xe8] sm:$0xf]
      %v2120 = vld [vmem:[%s359 + $0xec] sm:$0xf]
      %v2121 = vld [vmem:[%s359 + $0xf0] sm:$0xf]
      %v2122 = vld [vmem:[%s359 + $0xf4] sm:$0xf]
      %v2123 = vld [vmem:[%s359 + $0xf8] sm:$0xf]
      %v2124 = vld [vmem:[%s359 + $0xfc] sm:$0xf]
      %v2125 = vld [vmem:[%s359 + $0x100] sm:$0xf]
      %v2126 = vld [vmem:[%s359 + $0x104] sm:$0xf]
      %v2127 = vld [vmem:[%s359 + $0x108] sm:$0xf]
      %v2128 = vld [vmem:[%s359 + $0x10c] sm:$0xf]
      %v2129 = vld [vmem:[%s359 + $0x110] sm:$0xf]
      %v2130 = vld [vmem:[%s359 + $0x114] sm:$0xf]
      %v2131 = vld [vmem:[%s359 + $0x118] sm:$0xf]
      %v2132 = vld [vmem:[%s359 + $0x11c] sm:$0xf]
      %v2133 = vld [vmem:[%s359 + $0x120] sm:$0xf]
      %v2134 = vld [vmem:[%s359 + $0x124] sm:$0xf]
      %v2135 = vld [vmem:[%s359 + $0x128] sm:$0xf]
      %v2136 = vld [vmem:[%s359 + $0x12c] sm:$0xf]
      %v2137 = vld [vmem:[%s359 + $0x130] sm:$0xf]
      %v2138 = vld [vmem:[%s359 + $0x134] sm:$0xf]
      %v2139 = vld [vmem:[%s359 + $0x138] sm:$0xf]
      %v2140 = vld [vmem:[%s359 + $0x13c] sm:$0xf]
      %v2141 = vld [vmem:[%s359 + $0x140] sm:$0xf]
      %v2142 = vld [vmem:[%s359 + $0x144] sm:$0xf]
      %v2143 = vld [vmem:[%s359 + $0x148] sm:$0xf]
      %v2144 = vld [vmem:[%s359 + $0x14c] sm:$0xf]
      %v2145 = vld [vmem:[%s359 + $0x150] sm:$0xf]
      %v2146 = vld [vmem:[%s359 + $0x154] sm:$0xf]
      %v2147 = vld [vmem:[%s359 + $0x158] sm:$0xf]
      %v2148 = vld [vmem:[%s359 + $0x15c] sm:$0xf]
      %v2149 = vld [vmem:[%s359 + $0x160] sm:$0xf]
      %v2150 = vld [vmem:[%s359 + $0x164] sm:$0xf]
      %v2151 = vld [vmem:[%s359 + $0x168] sm:$0xf]
      %v2152 = vld [vmem:[%s359 + $0x16c] sm:$0xf]
      %v2153 = vld [vmem:[%s359 + $0x170] sm:$0xf]
      %v2154 = vld [vmem:[%s359 + $0x174] sm:$0xf]
      %v2155 = vld [vmem:[%s359 + $0x178] sm:$0xf]
      %v2156 = vld [vmem:[%s359 + $0x17c] sm:$0xf]
      %v2157 = vld [vmem:[%s359 + $0x180] sm:$0xf]
      %v2158 = vld [vmem:[%s359 + $0x184] sm:$0xf]
      %v2159 = vld [vmem:[%s359 + $0x188] sm:$0xf]
      %v2160 = vld [vmem:[%s359 + $0x18c] sm:$0xf]
      %v2161 = vld [vmem:[%s359 + $0x190] sm:$0xf]
      %v2162 = vld [vmem:[%s359 + $0x194] sm:$0xf]
      %v2163 = vld [vmem:[%s359 + $0x198] sm:$0xf]
      %v2164 = vld [vmem:[%s359 + $0x19c] sm:$0xf]
      %v2165 = vld [vmem:[%s359 + $0x1a0] sm:$0xf]
      %v2166 = vld [vmem:[%s359 + $0x1a4] sm:$0xf]
      %v2167 = vld [vmem:[%s359 + $0x1a8] sm:$0xf]
      %v2168 = vld [vmem:[%s359 + $0x1ac] sm:$0xf]
      %v2169 = vld [vmem:[%s359 + $0x1b0] sm:$0xf]
      %v2170 = vld [vmem:[%s359 + $0x1b4] sm:$0xf]
      %v2171 = vld [vmem:[%s359 + $0x1b8] sm:$0xf]
      %v2172 = vld [vmem:[%s359 + $0x1bc] sm:$0xf]
      %v2173 = vld [vmem:[%s359 + $0x1c0] sm:$0xf]
      %v2174 = vld [vmem:[%s359 + $0x1c4] sm:$0xf]
      %v2175 = vld [vmem:[%s359 + $0x1c8] sm:$0xf]
      %v2176 = vld [vmem:[%s359 + $0x1cc] sm:$0xf]
      %v2177 = vld [vmem:[%s359 + $0x1d0] sm:$0xf]
      %v2178 = vld [vmem:[%s359 + $0x1d4] sm:$0xf]
      %v2179 = vld [vmem:[%s359 + $0x1d8] sm:$0xf]
      %v2180 = vld [vmem:[%s359 + $0x1dc] sm:$0xf]
      %v2181 = vld [vmem:[%s359 + $0x1e0] sm:$0xf]
      %v2182 = vld [vmem:[%s359 + $0x1e4] sm:$0xf]
      %v2183 = vld [vmem:[%s359 + $0x1e8] sm:$0xf]
      %v2184 = vld [vmem:[%s359 + $0x1ec] sm:$0xf]
      %v2185 = vld [vmem:[%s359 + $0x1f0] sm:$0xf]
      %v2186 = vld [vmem:[%s359 + $0x1f4] sm:$0xf]
      %v2187 = vld [vmem:[%s359 + $0x1f8] sm:$0xf]
      %v2188 = vld [vmem:[%s359 + $0x1fc] sm:$0xf]
      %v2205 = vunpack.c.l.b16 %v2037
      %v2206 = vunpack.c.h.b16 %v2037
      %v2207 = vunpack.c.l.b16 %v2038
      %v2208 = vunpack.c.h.b16 %v2038
      %v2209 = vunpack.c.l.b16 %v2039
      %v2210 = vunpack.c.h.b16 %v2039
      %v2211 = vunpack.c.l.b16 %v2040
      %v2212 = vunpack.c.h.b16 %v2040
      %v2213 = vunpack.c.l.b16 %v2041
      %v2214 = vunpack.c.h.b16 %v2041
      %v2215 = vunpack.c.l.b16 %v2042
      %v2216 = vunpack.c.h.b16 %v2042
      %v2217 = vunpack.c.l.b16 %v2043
      %v2218 = vunpack.c.h.b16 %v2043
      %v2219 = vunpack.c.l.b16 %v2044
      %v2220 = vunpack.c.h.b16 %v2044
      %v2221 = vunpack.c.l.b16 %v2045
      %v2222 = vunpack.c.h.b16 %v2045
      %v2223 = vunpack.c.l.b16 %v2046
      %v2224 = vunpack.c.h.b16 %v2046
      %v2225 = vunpack.c.l.b16 %v2047
      %v2226 = vunpack.c.h.b16 %v2047
      %v2227 = vunpack.c.l.b16 %v2048
      %v2228 = vunpack.c.h.b16 %v2048
      %v2229 = vunpack.c.l.b16 %v2049
      %v2230 = vunpack.c.h.b16 %v2049
      %v2231 = vunpack.c.l.b16 %v2050
      %v2232 = vunpack.c.h.b16 %v2050
      %v2233 = vunpack.c.l.b16 %v2051
      %v2234 = vunpack.c.h.b16 %v2051
      %v2235 = vunpack.c.l.b16 %v2052
      %v2236 = vunpack.c.h.b16 %v2052
      %v2237 = vpack.c.b16 %v2213, %v2205
      %v2238 = vpack.c.b16 %v2214, %v2206
      %v2239 = vpack.c.b16 %v2215, %v2207
      %v2240 = vpack.c.b16 %v2216, %v2208
      %v2241 = vpack.c.b16 %v2217, %v2209
      %v2242 = vpack.c.b16 %v2218, %v2210
      %v2243 = vpack.c.b16 %v2219, %v2211
      %v2244 = vpack.c.b16 %v2220, %v2212
      %v2245 = vpack.c.b16 %v2229, %v2221
      %v2246 = vpack.c.b16 %v2230, %v2222
      %v2247 = vpack.c.b16 %v2231, %v2223
      %v2248 = vpack.c.b16 %v2232, %v2224
      %v2249 = vpack.c.b16 %v2233, %v2225
      %v2250 = vpack.c.b16 %v2234, %v2226
      %v2251 = vpack.c.b16 %v2235, %v2227
      %v2252 = vpack.c.b16 %v2236, %v2228
      %v2397 = vunpack.c.l.b16 %v2061
      %v2398 = vunpack.c.l.b16 %v2062
      %v2399 = vunpack.c.l.b16 %v2063
      %v2400 = vunpack.c.l.b16 %v2064
      %v2401 = vunpack.c.l.b16 %v2065
      %v2402 = vunpack.c.l.b16 %v2066
      %v2403 = vunpack.c.l.b16 %v2067
      %v2404 = vunpack.c.l.b16 %v2068
      %v2405 = vunpack.c.l.b16 %v2069
      %v2406 = vunpack.c.l.b16 %v2070
      %v2407 = vunpack.c.l.b16 %v2071
      %v2408 = vunpack.c.l.b16 %v2072
      %v2409 = vunpack.c.l.b16 %v2073
      %v2410 = vunpack.c.l.b16 %v2074
      %v2411 = vunpack.c.l.b16 %v2075
      %v2412 = vunpack.c.l.b16 %v2076
      %v2413 = vunpack.c.l.b16 %v2077
      %v2414 = vunpack.c.l.b16 %v2078
      %v2415 = vunpack.c.l.b16 %v2079
      %v2416 = vunpack.c.l.b16 %v2080
      %v2417 = vunpack.c.l.b16 %v2081
      %v2418 = vunpack.c.l.b16 %v2082
      %v2419 = vunpack.c.l.b16 %v2083
      %v2420 = vunpack.c.l.b16 %v2084
      %v2421 = vunpack.c.l.b16 %v2085
      %v2422 = vunpack.c.l.b16 %v2086
      %v2423 = vunpack.c.l.b16 %v2087
      %v2424 = vunpack.c.l.b16 %v2088
      %v2425 = vunpack.c.l.b16 %v2089
      %v2426 = vunpack.c.l.b16 %v2090
      %v2427 = vunpack.c.l.b16 %v2091
      %v2428 = vunpack.c.l.b16 %v2092
      %v2429 = vunpack.c.l.b16 %v2093
      %v2430 = vunpack.c.l.b16 %v2094
      %v2431 = vunpack.c.l.b16 %v2095
      %v2432 = vunpack.c.l.b16 %v2096
      %v2433 = vunpack.c.l.b16 %v2097
      %v2434 = vunpack.c.l.b16 %v2098
      %v2435 = vunpack.c.l.b16 %v2099
      %v2436 = vunpack.c.l.b16 %v2100
      %v2437 = vunpack.c.l.b16 %v2101
      %v2438 = vunpack.c.l.b16 %v2102
      %v2439 = vunpack.c.l.b16 %v2103
      %v2440 = vunpack.c.l.b16 %v2104
      %v2441 = vunpack.c.l.b16 %v2105
      %v2442 = vunpack.c.l.b16 %v2106
      %v2443 = vunpack.c.l.b16 %v2107
      %v2444 = vunpack.c.l.b16 %v2108
      %v2445 = vunpack.c.l.b16 %v2109
      %v2446 = vunpack.c.l.b16 %v2110
      %v2447 = vunpack.c.l.b16 %v2111
      %v2448 = vunpack.c.l.b16 %v2112
      %v2449 = vunpack.c.l.b16 %v2113
      %v2450 = vunpack.c.l.b16 %v2114
      %v2451 = vunpack.c.l.b16 %v2115
      %v2452 = vunpack.c.l.b16 %v2116
      %v2453 = vunpack.c.l.b16 %v2117
      %v2454 = vunpack.c.l.b16 %v2118
      %v2455 = vunpack.c.l.b16 %v2119
      %v2456 = vunpack.c.l.b16 %v2120
      %v2457 = vunpack.c.l.b16 %v2121
      %v2458 = vunpack.c.l.b16 %v2122
      %v2459 = vunpack.c.l.b16 %v2123
      %v2460 = vunpack.c.l.b16 %v2124
      %v2461 = vunpack.c.l.b16 %v2125
      %v2462 = vunpack.c.l.b16 %v2126
      %v2463 = vunpack.c.l.b16 %v2127
      %v2464 = vunpack.c.l.b16 %v2128
      %v2465 = vunpack.c.l.b16 %v2129
      %v2466 = vunpack.c.l.b16 %v2130
      %v2467 = vunpack.c.l.b16 %v2131
      %v2468 = vunpack.c.l.b16 %v2132
      %v2469 = vunpack.c.l.b16 %v2133
      %v2470 = vunpack.c.l.b16 %v2134
      %v2471 = vunpack.c.l.b16 %v2135
      %v2472 = vunpack.c.l.b16 %v2136
      %v2473 = vunpack.c.l.b16 %v2137
      %v2474 = vunpack.c.l.b16 %v2138
      %v2475 = vunpack.c.l.b16 %v2139
      %v2476 = vunpack.c.l.b16 %v2140
      %v2477 = vunpack.c.l.b16 %v2141
      %v2478 = vunpack.c.l.b16 %v2142
      %v2479 = vunpack.c.l.b16 %v2143
      %v2480 = vunpack.c.l.b16 %v2144
      %v2481 = vunpack.c.l.b16 %v2145
      %v2482 = vunpack.c.l.b16 %v2146
      %v2483 = vunpack.c.l.b16 %v2147
      %v2484 = vunpack.c.l.b16 %v2148
      %v2485 = vunpack.c.l.b16 %v2149
      %v2486 = vunpack.c.l.b16 %v2150
      %v2487 = vunpack.c.l.b16 %v2151
      %v2488 = vunpack.c.l.b16 %v2152
      %v2489 = vunpack.c.l.b16 %v2153
      %v2490 = vunpack.c.l.b16 %v2154
      %v2491 = vunpack.c.l.b16 %v2155
      %v2492 = vunpack.c.l.b16 %v2156
      %v2493 = vunpack.c.l.b16 %v2157
      %v2494 = vunpack.c.l.b16 %v2158
      %v2495 = vunpack.c.l.b16 %v2159
      %v2496 = vunpack.c.l.b16 %v2160
      %v2497 = vunpack.c.l.b16 %v2161
      %v2498 = vunpack.c.l.b16 %v2162
      %v2499 = vunpack.c.l.b16 %v2163
      %v2500 = vunpack.c.l.b16 %v2164
      %v2501 = vunpack.c.l.b16 %v2165
      %v2502 = vunpack.c.l.b16 %v2166
      %v2503 = vunpack.c.l.b16 %v2167
      %v2504 = vunpack.c.l.b16 %v2168
      %v2505 = vunpack.c.l.b16 %v2169
      %v2506 = vunpack.c.l.b16 %v2170
      %v2507 = vunpack.c.l.b16 %v2171
      %v2508 = vunpack.c.l.b16 %v2172
      %v2509 = vunpack.c.l.b16 %v2173
      %v2510 = vunpack.c.l.b16 %v2174
      %v2511 = vunpack.c.l.b16 %v2175
      %v2512 = vunpack.c.l.b16 %v2176
      %v2513 = vunpack.c.l.b16 %v2177
      %v2514 = vunpack.c.l.b16 %v2178
      %v2515 = vunpack.c.l.b16 %v2179
      %v2516 = vunpack.c.l.b16 %v2180
      %v2517 = vunpack.c.l.b16 %v2181
      %v2518 = vunpack.c.l.b16 %v2182
      %v2519 = vunpack.c.l.b16 %v2183
      %v2520 = vunpack.c.l.b16 %v2184
      %v2521 = vunpack.c.l.b16 %v2185
      %v2522 = vunpack.c.l.b16 %v2186
      %v2523 = vunpack.c.l.b16 %v2187
      %v2524 = vunpack.c.l.b16 %v2188
      %v2525 = vpack.c.b16 %v2398, %v2397
      %v2526 = vpack.c.b16 %v2400, %v2399
      %v2527 = vpack.c.b16 %v2402, %v2401
      %v2528 = vpack.c.b16 %v2404, %v2403
      %v2529 = vpack.c.b16 %v2406, %v2405
      %v2530 = vpack.c.b16 %v2408, %v2407
      %v2531 = vpack.c.b16 %v2410, %v2409
      %v2532 = vpack.c.b16 %v2412, %v2411
      %v2533 = vpack.c.b16 %v2414, %v2413
      %v2534 = vpack.c.b16 %v2416, %v2415
      %v2535 = vpack.c.b16 %v2418, %v2417
      %v2536 = vpack.c.b16 %v2420, %v2419
      %v2537 = vpack.c.b16 %v2422, %v2421
      %v2538 = vpack.c.b16 %v2424, %v2423
      %v2539 = vpack.c.b16 %v2426, %v2425
      %v2540 = vpack.c.b16 %v2428, %v2427
      %v2541 = vpack.c.b16 %v2430, %v2429
      %v2542 = vpack.c.b16 %v2432, %v2431
      %v2543 = vpack.c.b16 %v2434, %v2433
      %v2544 = vpack.c.b16 %v2436, %v2435
      %v2545 = vpack.c.b16 %v2438, %v2437
      %v2546 = vpack.c.b16 %v2440, %v2439
      %v2547 = vpack.c.b16 %v2442, %v2441
      %v2548 = vpack.c.b16 %v2444, %v2443
      %v2549 = vpack.c.b16 %v2446, %v2445
      %v2550 = vpack.c.b16 %v2448, %v2447
      %v2551 = vpack.c.b16 %v2450, %v2449
      %v2552 = vpack.c.b16 %v2452, %v2451
      %v2553 = vpack.c.b16 %v2454, %v2453
      %v2554 = vpack.c.b16 %v2456, %v2455
      %v2555 = vpack.c.b16 %v2458, %v2457
      %v2556 = vpack.c.b16 %v2460, %v2459
      %v2557 = vpack.c.b16 %v2462, %v2461
      %v2558 = vpack.c.b16 %v2464, %v2463
      %v2559 = vpack.c.b16 %v2466, %v2465
      %v2560 = vpack.c.b16 %v2468, %v2467
      %v2561 = vpack.c.b16 %v2470, %v2469
      %v2562 = vpack.c.b16 %v2472, %v2471
      %v2563 = vpack.c.b16 %v2474, %v2473
      %v2564 = vpack.c.b16 %v2476, %v2475
      %v2565 = vpack.c.b16 %v2478, %v2477
      %v2566 = vpack.c.b16 %v2480, %v2479
      %v2567 = vpack.c.b16 %v2482, %v2481
      %v2568 = vpack.c.b16 %v2484, %v2483
      %v2569 = vpack.c.b16 %v2486, %v2485
      %v2570 = vpack.c.b16 %v2488, %v2487
      %v2571 = vpack.c.b16 %v2490, %v2489
      %v2572 = vpack.c.b16 %v2492, %v2491
      %v2573 = vpack.c.b16 %v2494, %v2493
      %v2574 = vpack.c.b16 %v2496, %v2495
      %v2575 = vpack.c.b16 %v2498, %v2497
      %v2576 = vpack.c.b16 %v2500, %v2499
      %v2577 = vpack.c.b16 %v2502, %v2501
      %v2578 = vpack.c.b16 %v2504, %v2503
      %v2579 = vpack.c.b16 %v2506, %v2505
      %v2580 = vpack.c.b16 %v2508, %v2507
      %v2581 = vpack.c.b16 %v2510, %v2509
      %v2582 = vpack.c.b16 %v2512, %v2511
      %v2583 = vpack.c.b16 %v2514, %v2513
      %v2584 = vpack.c.b16 %v2516, %v2515
      %v2585 = vpack.c.b16 %v2518, %v2517
      %v2586 = vpack.c.b16 %v2520, %v2519
      %v2587 = vpack.c.b16 %v2522, %v2521
      %v2588 = vpack.c.b16 %v2524, %v2523
      %2653 = vmatprep.subr.bf16.mxu0 0
      %2654 = vmatpush1.bf16.msra.mxu0 %v2525
      %2655 = vmatprep.subr.bf16.mxu0 0
      %2656 = vmatpush1.bf16.msra.mxu0 %v2526
      %2657 = vmatprep.subr.bf16.mxu0 0
      %2658 = vmatpush1.bf16.msra.mxu0 %v2527
      %2659 = vmatprep.subr.bf16.mxu0 0
      %2660 = vmatpush1.bf16.msra.mxu0 %v2528
      %2661 = vmatprep.subr.bf16.mxu0 0
      %2662 = vmatpush1.bf16.msra.mxu0 %v2529
      %2663 = vmatprep.subr.bf16.mxu0 0
      %2664 = vmatpush1.bf16.msra.mxu0 %v2530
      %2665 = vmatprep.subr.bf16.mxu0 0
      %2666 = vmatpush1.bf16.msra.mxu0 %v2531
      %2667 = vmatprep.subr.bf16.mxu0 0
      %2668 = vmatpush1.bf16.msra.mxu0 %v2532
      %2669 = vmatprep.subr.bf16.mxu0 0
      %2670 = vmatpush1.bf16.msra.mxu0 %v2533
      %2671 = vmatprep.subr.bf16.mxu0 0
      %2672 = vmatpush1.bf16.msra.mxu0 %v2534
      %2673 = vmatprep.subr.bf16.mxu0 0
      %2674 = vmatpush1.bf16.msra.mxu0 %v2535
      %2675 = vmatprep.subr.bf16.mxu0 0
      %2676 = vmatpush1.bf16.msra.mxu0 %v2536
      %2677 = vmatprep.subr.bf16.mxu0 0
      %2678 = vmatpush1.bf16.msra.mxu0 %v2537
      %2679 = vmatprep.subr.bf16.mxu0 0
      %2680 = vmatpush1.bf16.msra.mxu0 %v2538
      %2681 = vmatprep.subr.bf16.mxu0 0
      %2682 = vmatpush1.bf16.msra.mxu0 %v2539
      %2683 = vmatprep.subr.bf16.mxu0 0
      %2684 = vmatpush1.bf16.msra.mxu0 %v2540
      %2685 = vmatprep.mubr.bf16.mxu0 %v2238
      %2686 = vmatmul.mubr.bf16.gmra.mrb[0].mxu0 %v2237
      %v2687 = vpop.f32.mrb[0].mxu0
      %v2688 = vadd.f32 0.0, %v2687
      %v2689 = vpop.f32.mrb[0].mxu0
      %v2690 = vpop.f32.mrb[0].mxu0
      %v2691 = vadd.f32 0.0, %v2690
      %v2692 = vpop.f32.mrb[0].mxu0
      %2693 = vmatprep.mubr.bf16.mxu0 %v2246
      %2694 = vmatmul.mubr.bf16.gmra.mrb[0].mxu0 %v2245
      %v2695 = vpop.f32.mrb[0].mxu0
      %v2696 = vadd.f32 0.0, %v2695
      %v2697 = vpop.f32.mrb[0].mxu0
      %v2698 = vpop.f32.mrb[0].mxu0
      %v2699 = vadd.f32 0.0, %v2698
      %v2700 = vpop.f32.mrb[0].mxu0
      %2701 = vdwg.mxu0
      %2702 = vmatprep.subr.bf16.mxu0 0
      %2703 = vmatpush1.bf16.msra.mxu0 %v2541
      %2704 = vmatprep.subr.bf16.mxu0 0
      %2705 = vmatpush1.bf16.msra.mxu0 %v2542
      %2706 = vmatprep.subr.bf16.mxu0 0
      %2707 = vmatpush1.bf16.msra.mxu0 %v2543
      %2708 = vmatprep.subr.bf16.mxu0 0
      %2709 = vmatpush1.bf16.msra.mxu0 %v2544
      %2710 = vmatprep.subr.bf16.mxu0 0
      %2711 = vmatpush1.bf16.msra.mxu0 %v2545
      %2712 = vmatprep.subr.bf16.mxu0 0
      %2713 = vmatpush1.bf16.msra.mxu0 %v2546
      %2714 = vmatprep.subr.bf16.mxu0 0
      %2715 = vmatpush1.bf16.msra.mxu0 %v2547
      %2716 = vmatprep.subr.bf16.mxu0 0
      %2717 = vmatpush1.bf16.msra.mxu0 %v2548
      %2718 = vmatprep.subr.bf16.mxu0 0
      %2719 = vmatpush1.bf16.msra.mxu0 %v2549
      %2720 = vmatprep.subr.bf16.mxu0 0
      %2721 = vmatpush1.bf16.msra.mxu0 %v2550
      %2722 = vmatprep.subr.bf16.mxu0 0
      %2723 = vmatpush1.bf16.msra.mxu0 %v2551
      %2724 = vmatprep.subr.bf16.mxu0 0
      %2725 = vmatpush1.bf16.msra.mxu0 %v2552
      %2726 = vmatprep.subr.bf16.mxu0 0
      %2727 = vmatpush1.bf16.msra.mxu0 %v2553
      %2728 = vmatprep.subr.bf16.mxu0 0
      %2729 = vmatpush1.bf16.msra.mxu0 %v2554
      %2730 = vmatprep.subr.bf16.mxu0 0
      %2731 = vmatpush1.bf16.msra.mxu0 %v2555
      %2732 = vmatprep.subr.bf16.mxu0 0
      %2733 = vmatpush1.bf16.msra.mxu0 %v2556
      %2734 = vmatprep.mubr.bf16.mxu0 %v2240
      %2735 = vmatmul.mubr.bf16.gmra.mrb[0].mxu0 %v2239
      %v2736 = vpop.f32.mrb[0].mxu0
      %v2737 = vadd.f32 %v2688, %v2736
      %v2738 = vpop.f32.mrb[0].mxu0
      %v2739 = vpop.f32.mrb[0].mxu0
      %v2740 = vadd.f32 %v2691, %v2739
      %v2741 = vpop.f32.mrb[0].mxu0
      %2742 = vmatprep.mubr.bf16.mxu0 %v2248
      %2743 = vmatmul.mubr.bf16.gmra.mrb[0].mxu0 %v2247
      %v2744 = vpop.f32.mrb[0].mxu0
      %v2745 = vadd.f32 %v2696, %v2744
      %v2746 = vpop.f32.mrb[0].mxu0
      %v2747 = vpop.f32.mrb[0].mxu0
      %v2748 = vadd.f32 %v2699, %v2747
      %v2749 = vpop.f32.mrb[0].mxu0
      %2750 = vdwg.mxu0
      %2751 = vmatprep.subr.bf16.mxu0 0
      %2752 = vmatpush1.bf16.msra.mxu0 %v2557
      %2753 = vmatprep.subr.bf16.mxu0 0
      %2754 = vmatpush1.bf16.msra.mxu0 %v2558
      %2755 = vmatprep.subr.bf16.mxu0 0
      %2756 = vmatpush1.bf16.msra.mxu0 %v2559
      %2757 = vmatprep.subr.bf16.mxu0 0
      %2758 = vmatpush1.bf16.msra.mxu0 %v2560
      %2759 = vmatprep.subr.bf16.mxu0 0
      %2760 = vmatpush1.bf16.msra.mxu0 %v2561
      %2761 = vmatprep.subr.bf16.mxu0 0
      %2762 = vmatpush1.bf16.msra.mxu0 %v2562
      %2763 = vmatprep.subr.bf16.mxu0 0
      %2764 = vmatpush1.bf16.msra.mxu0 %v2563
      %2765 = vmatprep.subr.bf16.mxu0 0
      %2766 = vmatpush1.bf16.msra.mxu0 %v2564
      %2767 = vmatprep.subr.bf16.mxu0 0
      %2768 = vmatpush1.bf16.msra.mxu0 %v2565
      %2769 = vmatprep.subr.bf16.mxu0 0
      %2770 = vmatpush1.bf16.msra.mxu0 %v2566
      %2771 = vmatprep.subr.bf16.mxu0 0
      %2772 = vmatpush1.bf16.msra.mxu0 %v2567
      %2773 = vmatprep.subr.bf16.mxu0 0
      %2774 = vmatpush1.bf16.msra.mxu0 %v2568
      %2775 = vmatprep.subr.bf16.mxu0 0
      %2776 = vmatpush1.bf16.msra.mxu0 %v2569
      %2777 = vmatprep.subr.bf16.mxu0 0
      %2778 = vmatpush1.bf16.msra.mxu0 %v2570
      %2779 = vmatprep.subr.bf16.mxu0 0
      %2780 = vmatpush1.bf16.msra.mxu0 %v2571
      %2781 = vmatprep.subr.bf16.mxu0 0
      %2782 = vmatpush1.bf16.msra.mxu0 %v2572
      %2783 = vmatprep.mubr.bf16.mxu0 %v2242
      %2784 = vmatmul.mubr.bf16.gmra.mrb[0].mxu0 %v2241
      %v2785 = vpop.f32.mrb[0].mxu0
      %v2786 = vadd.f32 %v2737, %v2785
      %v2787 = vpop.f32.mrb[0].mxu0
      %v2788 = vpop.f32.mrb[0].mxu0
      %v2789 = vadd.f32 %v2740, %v2788
      %v2790 = vpop.f32.mrb[0].mxu0
      %2791 = vmatprep.mubr.bf16.mxu0 %v2250
      %2792 = vmatmul.mubr.bf16.gmra.mrb[0].mxu0 %v2249
      %v2793 = vpop.f32.mrb[0].mxu0
      %v2794 = vadd.f32 %v2745, %v2793
      %v2795 = vpop.f32.mrb[0].mxu0
      %v2796 = vpop.f32.mrb[0].mxu0
      %v2797 = vadd.f32 %v2748, %v2796
      %v2798 = vpop.f32.mrb[0].mxu0
      %2799 = vdwg.mxu0
      %2800 = vmatprep.subr.bf16.mxu0 0
      %2801 = vmatpush1.bf16.msra.mxu0 %v2573
      %2802 = vmatprep.subr.bf16.mxu0 0
      %2803 = vmatpush1.bf16.msra.mxu0 %v2574
      %2804 = vmatprep.subr.bf16.mxu0 0
      %2805 = vmatpush1.bf16.msra.mxu0 %v2575
      %2806 = vmatprep.subr.bf16.mxu0 0
      %2807 = vmatpush1.bf16.msra.mxu0 %v2576
      %2808 = vmatprep.subr.bf16.mxu0 0
      %2809 = vmatpush1.bf16.msra.mxu0 %v2577
      %2810 = vmatprep.subr.bf16.mxu0 0
      %2811 = vmatpush1.bf16.msra.mxu0 %v2578
      %2812 = vmatprep.subr.bf16.mxu0 0
      %2813 = vmatpush1.bf16.msra.mxu0 %v2579
      %2814 = vmatprep.subr.bf16.mxu0 0
      %2815 = vmatpush1.bf16.msra.mxu0 %v2580
      %2816 = vmatprep.subr.bf16.mxu0 0
      %2817 = vmatpush1.bf16.msra.mxu0 %v2581
      %2818 = vmatprep.subr.bf16.mxu0 0
      %2819 = vmatpush1.bf16.msra.mxu0 %v2582
      %2820 = vmatprep.subr.bf16.mxu0 0
      %2821 = vmatpush1.bf16.msra.mxu0 %v2583
      %2822 = vmatprep.subr.bf16.mxu0 0
      %2823 = vmatpush1.bf16.msra.mxu0 %v2584
      %2824 = vmatprep.subr.bf16.mxu0 0
      %2825 = vmatpush1.bf16.msra.mxu0 %v2585
      %2826 = vmatprep.subr.bf16.mxu0 0
      %2827 = vmatpush1.bf16.msra.mxu0 %v2586
      %2828 = vmatprep.subr.bf16.mxu0 0
      %2829 = vmatpush1.bf16.msra.mxu0 %v2587
      %2830 = vmatprep.subr.bf16.mxu0 0
      %2831 = vmatpush1.bf16.msra.mxu0 %v2588
      %2832 = vmatprep.mubr.bf16.mxu0 %v2244
      %2833 = vmatmul.mubr.bf16.gmra.mrb[0].mxu0 %v2243
      %v2834 = vpop.f32.mrb[0].mxu0
      %v2835 = vadd.f32 %v2786, %v2834
      %v2836 = vpop.f32.mrb[0].mxu0
      %v2837 = vpop.f32.mrb[0].mxu0
      %v2838 = vadd.f32 %v2789, %v2837
      %v2839 = vpop.f32.mrb[0].mxu0
      %2840 = vmatprep.mubr.bf16.mxu0 %v2252
      %2841 = vmatmul.mubr.bf16.gmra.mrb[0].mxu0 %v2251
      %v2842 = vpop.f32.mrb[0].mxu0
      %v2843 = vadd.f32 %v2794, %v2842
      %v2844 = vpop.f32.mrb[0].mxu0
      %v2845 = vpop.f32.mrb[0].mxu0
      %v2846 = vadd.f32 %v2797, %v2845
      %v2847 = vpop.f32.mrb[0].mxu0
      %2848 = vdwg.mxu0
      %2850 = vset.pattern.permute.xlu0 0
      %2851 = vperm.xlu0 %2850, %v2053
      %v2852 = vpop.permute.xlu0 %2851
      %2855 = vset.pattern.permute.xlu0 0
      %2856 = vperm.xlu0 %2855, %v2054
      %v2857 = vpop.permute.xlu0 %2856
      %2860 = vset.pattern.permute.xlu0 0
      %2861 = vperm.xlu0 %2860, %v2055
      %v2862 = vpop.permute.xlu0 %2861
      %2865 = vset.pattern.permute.xlu0 0
      %2866 = vperm.xlu0 %2865, %v2056
      %v2867 = vpop.permute.xlu0 %2866
      %v2869 = vmul.f32 %v2835, %v2852
      %v2870 = vmul.f32 %v2838, %v2857
      %v2871 = vmul.f32 %v2843, %v2862
      %v2872 = vmul.f32 %v2846, %v2867
      %2874 = vset.pattern.permute.xlu0 0
      %2875 = vperm.xlu0 %2874, %v2057
      %v2876 = vpop.permute.xlu0 %2875
      %2879 = vset.pattern.permute.xlu0 0
      %2880 = vperm.xlu0 %2879, %v2058
      %v2881 = vpop.permute.xlu0 %2880
      %2884 = vset.pattern.permute.xlu0 0
      %2885 = vperm.xlu0 %2884, %v2059
      %v2886 = vpop.permute.xlu0 %2885
      %2889 = vset.pattern.permute.xlu0 0
      %2890 = vperm.xlu0 %2889, %v2060
      %v2891 = vpop.permute.xlu0 %2890
      %v2893 = vadd.f32 %v2869, %v2876
      %v2894 = vadd.f32 %v2870, %v2881
      %v2895 = vadd.f32 %v2871, %v2886
      %v2896 = vadd.f32 %v2872, %v2891
      %v2897 = vmax.f32 %v2893, 0.0
      %v2898 = vmax.f32 %v2894, 0.0
      %v2899 = vmax.f32 %v2895, 0.0
      %v2900 = vmax.f32 %v2896, 0.0
      %v2901 = vadd.f32 %v2033, %v2897
      %v2902 = vadd.f32 %v2034, %v2898
      %v2903 = vadd.f32 %v2035, %v2899
      %v2904 = vadd.f32 %v2036, %v2900
      %s2905 = scalar_lea.vmem %s359, 512
      %v2906 = vld [vmem:[%s2905] sm:$0xf]
      %v2907 = vld [vmem:[%s2905 + $0x4] sm:$0xf]
      %v2908 = vld [vmem:[%s2905 + $0x8] sm:$0xf]
      %v2909 = vld [vmem:[%s2905 + $0xc] sm:$0xf]
      %v2910 = vld [vmem:[%s2905 + $0x10] sm:$0xf]
      %v2911 = vld [vmem:[%s2905 + $0x14] sm:$0xf]
      %v2912 = vld [vmem:[%s2905 + $0x18] sm:$0xf]
      %v2913 = vld [vmem:[%s2905 + $0x1c] sm:$0xf]
      %v2914 = vld [vmem:[%s2905 + $0x20] sm:$0xf]
      %v2915 = vld [vmem:[%s2905 + $0x24] sm:$0xf]
      %v2916 = vld [vmem:[%s2905 + $0x28] sm:$0xf]
      %v2917 = vld [vmem:[%s2905 + $0x2c] sm:$0xf]
      %v2918 = vld [vmem:[%s2905 + $0x30] sm:$0xf]
      %v2919 = vld [vmem:[%s2905 + $0x34] sm:$0xf]
      %v2920 = vld [vmem:[%s2905 + $0x38] sm:$0xf]
      %v2921 = vld [vmem:[%s2905 + $0x3c] sm:$0xf]
      %v2922 = vld [vmem:[%s2905 + $0x40] sm:$0xf]
      %v2923 = vld [vmem:[%s2905 + $0x44] sm:$0xf]
      %v2924 = vld [vmem:[%s2905 + $0x48] sm:$0xf]
      %v2925 = vld [vmem:[%s2905 + $0x4c] sm:$0xf]
      %v2926 = vld [vmem:[%s2905 + $0x50] sm:$0xf]
      %v2927 = vld [vmem:[%s2905 + $0x54] sm:$0xf]
      %v2928 = vld [vmem:[%s2905 + $0x58] sm:$0xf]
      %v2929 = vld [vmem:[%s2905 + $0x5c] sm:$0xf]
      %v2930 = vld [vmem:[%s2905 + $0x60] sm:$0xf]
      %v2931 = vld [vmem:[%s2905 + $0x64] sm:$0xf]
      %v2932 = vld [vmem:[%s2905 + $0x68] sm:$0xf]
      %v2933 = vld [vmem:[%s2905 + $0x6c] sm:$0xf]
      %v2934 = vld [vmem:[%s2905 + $0x70] sm:$0xf]
      %v2935 = vld [vmem:[%s2905 + $0x74] sm:$0xf]
      %v2936 = vld [vmem:[%s2905 + $0x78] sm:$0xf]
      %v2937 = vld [vmem:[%s2905 + $0x7c] sm:$0xf]
      %v2938 = vld [vmem:[%s2905 + $0x80] sm:$0xf]
      %v2939 = vld [vmem:[%s2905 + $0x84] sm:$0xf]
      %v2940 = vld [vmem:[%s2905 + $0x88] sm:$0xf]
      %v2941 = vld [vmem:[%s2905 + $0x8c] sm:$0xf]
      %v2942 = vld [vmem:[%s2905 + $0x90] sm:$0xf]
      %v2943 = vld [vmem:[%s2905 + $0x94] sm:$0xf]
      %v2944 = vld [vmem:[%s2905 + $0x98] sm:$0xf]
      %v2945 = vld [vmem:[%s2905 + $0x9c] sm:$0xf]
      %v2946 = vld [vmem:[%s2905 + $0xa0] sm:$0xf]
      %v2947 = vld [vmem:[%s2905 + $0xa4] sm:$0xf]
      %v2948 = vld [vmem:[%s2905 + $0xa8] sm:$0xf]
      %v2949 = vld [vmem:[%s2905 + $0xac] sm:$0xf]
      %v2950 = vld [vmem:[%s2905 + $0xb0] sm:$0xf]
      %v2951 = vld [vmem:[%s2905 + $0xb4] sm:$0xf]
      %v2952 = vld [vmem:[%s2905 + $0xb8] sm:$0xf]
      %v2953 = vld [vmem:[%s2905 + $0xbc] sm:$0xf]
      %v2954 = vld [vmem:[%s2905 + $0xc0] sm:$0xf]
      %v2955 = vld [vmem:[%s2905 + $0xc4] sm:$0xf]
      %v2956 = vld [vmem:[%s2905 + $0xc8] sm:$0xf]
      %v2957 = vld [vmem:[%s2905 + $0xcc] sm:$0xf]
      %v2958 = vld [vmem:[%s2905 + $0xd0] sm:$0xf]
      %v2959 = vld [vmem:[%s2905 + $0xd4] sm:$0xf]
      %v2960 = vld [vmem:[%s2905 + $0xd8] sm:$0xf]
      %v2961 = vld [vmem:[%s2905 + $0xdc] sm:$0xf]
      %v2962 = vld [vmem:[%s2905 + $0xe0] sm:$0xf]
      %v2963 = vld [vmem:[%s2905 + $0xe4] sm:$0xf]
      %v2964 = vld [vmem:[%s2905 + $0xe8] sm:$0xf]
      %v2965 = vld [vmem:[%s2905 + $0xec] sm:$0xf]
      %v2966 = vld [vmem:[%s2905 + $0xf0] sm:$0xf]
      %v2967 = vld [vmem:[%s2905 + $0xf4] sm:$0xf]
      %v2968 = vld [vmem:[%s2905 + $0xf8] sm:$0xf]
      %v2969 = vld [vmem:[%s2905 + $0xfc] sm:$0xf]
      %v2970 = vld [vmem:[%s2905 + $0x100] sm:$0xf]
      %v2971 = vld [vmem:[%s2905 + $0x104] sm:$0xf]
      %v2972 = vld [vmem:[%s2905 + $0x108] sm:$0xf]
      %v2973 = vld [vmem:[%s2905 + $0x10c] sm:$0xf]
      %v2974 = vld [vmem:[%s2905 + $0x110] sm:$0xf]
      %v2975 = vld [vmem:[%s2905 + $0x114] sm:$0xf]
      %v2976 = vld [vmem:[%s2905 + $0x118] sm:$0xf]
      %v2977 = vld [vmem:[%s2905 + $0x11c] sm:$0xf]
      %v2978 = vld [vmem:[%s2905 + $0x120] sm:$0xf]
      %v2979 = vld [vmem:[%s2905 + $0x124] sm:$0xf]
      %v2980 = vld [vmem:[%s2905 + $0x128] sm:$0xf]
      %v2981 = vld [vmem:[%s2905 + $0x12c] sm:$0xf]
      %v2982 = vld [vmem:[%s2905 + $0x130] sm:$0xf]
      %v2983 = vld [vmem:[%s2905 + $0x134] sm:$0xf]
      %v2984 = vld [vmem:[%s2905 + $0x138] sm:$0xf]
      %v2985 = vld [vmem:[%s2905 + $0x13c] sm:$0xf]
      %v2986 = vld [vmem:[%s2905 + $0x140] sm:$0xf]
      %v2987 = vld [vmem:[%s2905 + $0x144] sm:$0xf]
      %v2988 = vld [vmem:[%s2905 + $0x148] sm:$0xf]
      %v2989 = vld [vmem:[%s2905 + $0x14c] sm:$0xf]
      %v2990 = vld [vmem:[%s2905 + $0x150] sm:$0xf]
      %v2991 = vld [vmem:[%s2905 + $0x154] sm:$0xf]
      %v2992 = vld [vmem:[%s2905 + $0x158] sm:$0xf]
      %v2993 = vld [vmem:[%s2905 + $0x15c] sm:$0xf]
      %v2994 = vld [vmem:[%s2905 + $0x160] sm:$0xf]
      %v2995 = vld [vmem:[%s2905 + $0x164] sm:$0xf]
      %v2996 = vld [vmem:[%s2905 + $0x168] sm:$0xf]
      %v2997 = vld [vmem:[%s2905 + $0x16c] sm:$0xf]
      %v2998 = vld [vmem:[%s2905 + $0x170] sm:$0xf]
      %v2999 = vld [vmem:[%s2905 + $0x174] sm:$0xf]
      %v3000 = vld [vmem:[%s2905 + $0x178] sm:$0xf]
      %v3001 = vld [vmem:[%s2905 + $0x17c] sm:$0xf]
      %v3002 = vld [vmem:[%s2905 + $0x180] sm:$0xf]
      %v3003 = vld [vmem:[%s2905 + $0x184] sm:$0xf]
      %v3004 = vld [vmem:[%s2905 + $0x188] sm:$0xf]
      %v3005 = vld [vmem:[%s2905 + $0x18c] sm:$0xf]
      %v3006 = vld [vmem:[%s2905 + $0x190] sm:$0xf]
      %v3007 = vld [vmem:[%s2905 + $0x194] sm:$0xf]
      %v3008 = vld [vmem:[%s2905 + $0x198] sm:$0xf]
      %v3009 = vld [vmem:[%s2905 + $0x19c] sm:$0xf]
      %v3010 = vld [vmem:[%s2905 + $0x1a0] sm:$0xf]
      %v3011 = vld [vmem:[%s2905 + $0x1a4] sm:$0xf]
      %v3012 = vld [vmem:[%s2905 + $0x1a8] sm:$0xf]
      %v3013 = vld [vmem:[%s2905 + $0x1ac] sm:$0xf]
      %v3014 = vld [vmem:[%s2905 + $0x1b0] sm:$0xf]
      %v3015 = vld [vmem:[%s2905 + $0x1b4] sm:$0xf]
      %v3016 = vld [vmem:[%s2905 + $0x1b8] sm:$0xf]
      %v3017 = vld [vmem:[%s2905 + $0x1bc] sm:$0xf]
      %v3018 = vld [vmem:[%s2905 + $0x1c0] sm:$0xf]
      %v3019 = vld [vmem:[%s2905 + $0x1c4] sm:$0xf]
      %v3020 = vld [vmem:[%s2905 + $0x1c8] sm:$0xf]
      %v3021 = vld [vmem:[%s2905 + $0x1cc] sm:$0xf]
      %v3022 = vld [vmem:[%s2905 + $0x1d0] sm:$0xf]
      %v3023 = vld [vmem:[%s2905 + $0x1d4] sm:$0xf]
      %v3024 = vld [vmem:[%s2905 + $0x1d8] sm:$0xf]
      %v3025 = vld [vmem:[%s2905 + $0x1dc] sm:$0xf]
      %v3026 = vld [vmem:[%s2905 + $0x1e0] sm:$0xf]
      %v3027 = vld [vmem:[%s2905 + $0x1e4] sm:$0xf]
      %v3028 = vld [vmem:[%s2905 + $0x1e8] sm:$0xf]
      %v3029 = vld [vmem:[%s2905 + $0x1ec] sm:$0xf]
      %v3030 = vld [vmem:[%s2905 + $0x1f0] sm:$0xf]
      %v3031 = vld [vmem:[%s2905 + $0x1f4] sm:$0xf]
      %v3032 = vld [vmem:[%s2905 + $0x1f8] sm:$0xf]
      %v3033 = vld [vmem:[%s2905 + $0x1fc] sm:$0xf]
      %v3162 = vunpack.c.l.b16 %v2906
      %v3163 = vunpack.c.l.b16 %v2907
      %v3164 = vunpack.c.l.b16 %v2908
      %v3165 = vunpack.c.l.b16 %v2909
      %v3166 = vunpack.c.l.b16 %v2910
      %v3167 = vunpack.c.l.b16 %v2911
      %v3168 = vunpack.c.l.b16 %v2912
      %v3169 = vunpack.c.l.b16 %v2913
      %v3170 = vunpack.c.l.b16 %v2914
      %v3171 = vunpack.c.l.b16 %v2915
      %v3172 = vunpack.c.l.b16 %v2916
      %v3173 = vunpack.c.l.b16 %v2917
      %v3174 = vunpack.c.l.b16 %v2918
      %v3175 = vunpack.c.l.b16 %v2919
      %v3176 = vunpack.c.l.b16 %v2920
      %v3177 = vunpack.c.l.b16 %v2921
      %v3178 = vunpack.c.l.b16 %v2922
      %v3179 = vunpack.c.l.b16 %v2923
      %v3180 = vunpack.c.l.b16 %v2924
      %v3181 = vunpack.c.l.b16 %v2925
      %v3182 = vunpack.c.l.b16 %v2926
      %v3183 = vunpack.c.l.b16 %v2927
      %v3184 = vunpack.c.l.b16 %v2928
      %v3185 = vunpack.c.l.b16 %v2929
      %v3186 = vunpack.c.l.b16 %v2930
      %v3187 = vunpack.c.l.b16 %v2931
      %v3188 = vunpack.c.l.b16 %v2932
      %v3189 = vunpack.c.l.b16 %v2933
      %v3190 = vunpack.c.l.b16 %v2934
      %v3191 = vunpack.c.l.b16 %v2935
      %v3192 = vunpack.c.l.b16 %v2936
      %v3193 = vunpack.c.l.b16 %v2937
      %v3194 = vunpack.c.l.b16 %v2938
      %v3195 = vunpack.c.l.b16 %v2939
      %v3196 = vunpack.c.l.b16 %v2940
      %v3197 = vunpack.c.l.b16 %v2941
      %v3198 = vunpack.c.l.b16 %v2942
      %v3199 = vunpack.c.l.b16 %v2943
      %v3200 = vunpack.c.l.b16 %v2944
      %v3201 = vunpack.c.l.b16 %v2945
      %v3202 = vunpack.c.l.b16 %v2946
      %v3203 = vunpack.c.l.b16 %v2947
      %v3204 = vunpack.c.l.b16 %v2948
      %v3205 = vunpack.c.l.b16 %v2949
      %v3206 = vunpack.c.l.b16 %v2950
      %v3207 = vunpack.c.l.b16 %v2951
      %v3208 = vunpack.c.l.b16 %v2952
      %v3209 = vunpack.c.l.b16 %v2953
      %v3210 = vunpack.c.l.b16 %v2954
      %v3211 = vunpack.c.l.b16 %v2955
      %v3212 = vunpack.c.l.b16 %v2956
      %v3213 = vunpack.c.l.b16 %v2957
      %v3214 = vunpack.c.l.b16 %v2958
      %v3215 = vunpack.c.l.b16 %v2959
      %v3216 = vunpack.c.l.b16 %v2960
      %v3217 = vunpack.c.l.b16 %v2961
      %v3218 = vunpack.c.l.b16 %v2962
      %v3219 = vunpack.c.l.b16 %v2963
      %v3220 = vunpack.c.l.b16 %v2964
      %v3221 = vunpack.c.l.b16 %v2965
      %v3222 = vunpack.c.l.b16 %v2966
      %v3223 = vunpack.c.l.b16 %v2967
      %v3224 = vunpack.c.l.b16 %v2968
      %v3225 = vunpack.c.l.b16 %v2969
      %v3226 = vunpack.c.l.b16 %v2970
      %v3227 = vunpack.c.l.b16 %v2971
      %v3228 = vunpack.c.l.b16 %v2972
      %v3229 = vunpack.c.l.b16 %v2973
      %v3230 = vunpack.c.l.b16 %v2974
      %v3231 = vunpack.c.l.b16 %v2975
      %v3232 = vunpack.c.l.b16 %v2976
      %v3233 = vunpack.c.l.b16 %v2977
      %v3234 = vunpack.c.l.b16 %v2978
      %v3235 = vunpack.c.l.b16 %v2979
      %v3236 = vunpack.c.l.b16 %v2980
      %v3237 = vunpack.c.l.b16 %v2981
      %v3238 = vunpack.c.l.b16 %v2982
      %v3239 = vunpack.c.l.b16 %v2983
      %v3240 = vunpack.c.l.b16 %v2984
      %v3241 = vunpack.c.l.b16 %v2985
      %v3242 = vunpack.c.l.b16 %v2986
      %v3243 = vunpack.c.l.b16 %v2987
      %v3244 = vunpack.c.l.b16 %v2988
      %v3245 = vunpack.c.l.b16 %v2989
      %v3246 = vunpack.c.l.b16 %v2990
      %v3247 = vunpack.c.l.b16 %v2991
      %v3248 = vunpack.c.l.b16 %v2992
      %v3249 = vunpack.c.l.b16 %v2993
      %v3250 = vunpack.c.l.b16 %v2994
      %v3251 = vunpack.c.l.b16 %v2995
      %v3252 = vunpack.c.l.b16 %v2996
      %v3253 = vunpack.c.l.b16 %v2997
      %v3254 = vunpack.c.l.b16 %v2998
      %v3255 = vunpack.c.l.b16 %v2999
      %v3256 = vunpack.c.l.b16 %v3000
      %v3257 = vunpack.c.l.b16 %v3001
      %v3258 = vunpack.c.l.b16 %v3002
      %v3259 = vunpack.c.l.b16 %v3003
      %v3260 = vunpack.c.l.b16 %v3004
      %v3261 = vunpack.c.l.b16 %v3005
      %v3262 = vunpack.c.l.b16 %v3006
      %v3263 = vunpack.c.l.b16 %v3007
      %v3264 = vunpack.c.l.b16 %v3008
      %v3265 = vunpack.c.l.b16 %v3009
      %v3266 = vunpack.c.l.b16 %v3010
      %v3267 = vunpack.c.l.b16 %v3011
      %v3268 = vunpack.c.l.b16 %v3012
      %v3269 = vunpack.c.l.b16 %v3013
      %v3270 = vunpack.c.l.b16 %v3014
      %v3271 = vunpack.c.l.b16 %v3015
      %v3272 = vunpack.c.l.b16 %v3016
      %v3273 = vunpack.c.l.b16 %v3017
      %v3274 = vunpack.c.l.b16 %v3018
      %v3275 = vunpack.c.l.b16 %v3019
      %v3276 = vunpack.c.l.b16 %v3020
      %v3277 = vunpack.c.l.b16 %v3021
      %v3278 = vunpack.c.l.b16 %v3022
      %v3279 = vunpack.c.l.b16 %v3023
      %v3280 = vunpack.c.l.b16 %v3024
      %v3281 = vunpack.c.l.b16 %v3025
      %v3282 = vunpack.c.l.b16 %v3026
      %v3283 = vunpack.c.l.b16 %v3027
      %v3284 = vunpack.c.l.b16 %v3028
      %v3285 = vunpack.c.l.b16 %v3029
      %v3286 = vunpack.c.l.b16 %v3030
      %v3287 = vunpack.c.l.b16 %v3031
      %v3288 = vunpack.c.l.b16 %v3032
      %v3289 = vunpack.c.l.b16 %v3033
      %v3290 = vpack.c.b16 %v3163, %v3162
      %v3291 = vpack.c.b16 %v3165, %v3164
      %v3292 = vpack.c.b16 %v3167, %v3166
      %v3293 = vpack.c.b16 %v3169, %v3168
      %v3294 = vpack.c.b16 %v3171, %v3170
      %v3295 = vpack.c.b16 %v3173, %v3172
      %v3296 = vpack.c.b16 %v3175, %v3174
      %v3297 = vpack.c.b16 %v3177, %v3176
      %v3298 = vpack.c.b16 %v3179, %v3178
      %v3299 = vpack.c.b16 %v3181, %v3180
      %v3300 = vpack.c.b16 %v3183, %v3182
      %v3301 = vpack.c.b16 %v3185, %v3184
      %v3302 = vpack.c.b16 %v3187, %v3186
      %v3303 = vpack.c.b16 %v3189, %v3188
      %v3304 = vpack.c.b16 %v3191, %v3190
      %v3305 = vpack.c.b16 %v3193, %v3192
      %v3306 = vpack.c.b16 %v3195, %v3194
      %v3307 = vpack.c.b16 %v3197, %v3196
      %v3308 = vpack.c.b16 %v3199, %v3198
      %v3309 = vpack.c.b16 %v3201, %v3200
      %v3310 = vpack.c.b16 %v3203, %v3202
      %v3311 = vpack.c.b16 %v3205, %v3204
      %v3312 = vpack.c.b16 %v3207, %v3206
      %v3313 = vpack.c.b16 %v3209, %v3208
      %v3314 = vpack.c.b16 %v3211, %v3210
      %v3315 = vpack.c.b16 %v3213, %v3212
      %v3316 = vpack.c.b16 %v3215, %v3214
      %v3317 = vpack.c.b16 %v3217, %v3216
      %v3318 = vpack.c.b16 %v3219, %v3218
      %v3319 = vpack.c.b16 %v3221, %v3220
      %v3320 = vpack.c.b16 %v3223, %v3222
      %v3321 = vpack.c.b16 %v3225, %v3224
      %v3322 = vpack.c.b16 %v3227, %v3226
      %v3323 = vpack.c.b16 %v3229, %v3228
      %v3324 = vpack.c.b16 %v3231, %v3230
      %v3325 = vpack.c.b16 %v3233, %v3232
      %v3326 = vpack.c.b16 %v3235, %v3234
      %v3327 = vpack.c.b16 %v3237, %v3236
      %v3328 = vpack.c.b16 %v3239, %v3238
      %v3329 = vpack.c.b16 %v3241, %v3240
      %v3330 = vpack.c.b16 %v3243, %v3242
      %v3331 = vpack.c.b16 %v3245, %v3244
      %v3332 = vpack.c.b16 %v3247, %v3246
      %v3333 = vpack.c.b16 %v3249, %v3248
      %v3334 = vpack.c.b16 %v3251, %v3250
      %v3335 = vpack.c.b16 %v3253, %v3252
      %v3336 = vpack.c.b16 %v3255, %v3254
      %v3337 = vpack.c.b16 %v3257, %v3256
      %v3338 = vpack.c.b16 %v3259, %v3258
      %v3339 = vpack.c.b16 %v3261, %v3260
      %v3340 = vpack.c.b16 %v3263, %v3262
      %v3341 = vpack.c.b16 %v3265, %v3264
      %v3342 = vpack.c.b16 %v3267, %v3266
      %v3343 = vpack.c.b16 %v3269, %v3268
      %v3344 = vpack.c.b16 %v3271, %v3270
      %v3345 = vpack.c.b16 %v3273, %v3272
      %v3346 = vpack.c.b16 %v3275, %v3274
      %v3347 = vpack.c.b16 %v3277, %v3276
      %v3348 = vpack.c.b16 %v3279, %v3278
      %v3349 = vpack.c.b16 %v3281, %v3280
      %v3350 = vpack.c.b16 %v3283, %v3282
      %v3351 = vpack.c.b16 %v3285, %v3284
      %v3352 = vpack.c.b16 %v3287, %v3286
      %v3353 = vpack.c.b16 %v3289, %v3288
      %3418 = vmatprep.subr.bf16.mxu0 0
      %3419 = vmatpush1.bf16.msra.mxu0 %v3290
      %3420 = vmatprep.subr.bf16.mxu0 0
      %3421 = vmatpush1.bf16.msra.mxu0 %v3291
      %3422 = vmatprep.subr.bf16.mxu0 0
      %3423 = vmatpush1.bf16.msra.mxu0 %v3292
      %3424 = vmatprep.subr.bf16.mxu0 0
      %3425 = vmatpush1.bf16.msra.mxu0 %v3293
      %3426 = vmatprep.subr.bf16.mxu0 0
      %3427 = vmatpush1.bf16.msra.mxu0 %v3294
      %3428 = vmatprep.subr.bf16.mxu0 0
      %3429 = vmatpush1.bf16.msra.mxu0 %v3295
      %3430 = vmatprep.subr.bf16.mxu0 0
      %3431 = vmatpush1.bf16.msra.mxu0 %v3296
      %3432 = vmatprep.subr.bf16.mxu0 0
      %3433 = vmatpush1.bf16.msra.mxu0 %v3297
      %3434 = vmatprep.subr.bf16.mxu0 0
      %3435 = vmatpush1.bf16.msra.mxu0 %v3298
      %3436 = vmatprep.subr.bf16.mxu0 0
      %3437 = vmatpush1.bf16.msra.mxu0 %v3299
      %3438 = vmatprep.subr.bf16.mxu0 0
      %3439 = vmatpush1.bf16.msra.mxu0 %v3300
      %3440 = vmatprep.subr.bf16.mxu0 0
      %3441 = vmatpush1.bf16.msra.mxu0 %v3301
      %3442 = vmatprep.subr.bf16.mxu0 0
      %3443 = vmatpush1.bf16.msra.mxu0 %v3302
      %3444 = vmatprep.subr.bf16.mxu0 0
      %3445 = vmatpush1.bf16.msra.mxu0 %v3303
      %3446 = vmatprep.subr.bf16.mxu0 0
      %3447 = vmatpush1.bf16.msra.mxu0 %v3304
      %3448 = vmatprep.subr.bf16.mxu0 0
      %3449 = vmatpush1.bf16.msra.mxu0 %v3305
      %3450 = vmatprep.mubr.bf16.mxu0 %v2238
      %3451 = vmatmul.mubr.bf16.gmra.mrb[0].mxu0 %v2237
      %v3452 = vpop.f32.mrb[0].mxu0
      %v3453 = vadd.f32 0.0, %v3452
      %v3454 = vpop.f32.mrb[0].mxu0
      %v3455 = vpop.f32.mrb[0].mxu0
      %v3456 = vadd.f32 0.0, %v3455
      %v3457 = vpop.f32.mrb[0].mxu0
      %3458 = vmatprep.mubr.bf16.mxu0 %v2246
      %3459 = vmatmul.mubr.bf16.gmra.mrb[0].mxu0 %v2245
      %v3460 = vpop.f32.mrb[0].mxu0
      %v3461 = vadd.f32 0.0, %v3460
      %v3462 = vpop.f32.mrb[0].mxu0
      %v3463 = vpop.f32.mrb[0].mxu0
      %v3464 = vadd.f32 0.0, %v3463
      %v3465 = vpop.f32.mrb[0].mxu0
      %3466 = vdwg.mxu0
      %3467 = vmatprep.subr.bf16.mxu0 0
      %3468 = vmatpush1.bf16.msra.mxu0 %v3306
      %3469 = vmatprep.subr.bf16.mxu0 0
      %3470 = vmatpush1.bf16.msra.mxu0 %v3307
      %3471 = vmatprep.subr.bf16.mxu0 0
      %3472 = vmatpush1.bf16.msra.mxu0 %v3308
      %3473 = vmatprep.subr.bf16.mxu0 0
      %3474 = vmatpush1.bf16.msra.mxu0 %v3309
      %3475 = vmatprep.subr.bf16.mxu0 0
      %3476 = vmatpush1.bf16.msra.mxu0 %v3310
      %3477 = vmatprep.subr.bf16.mxu0 0
      %3478 = vmatpush1.bf16.msra.mxu0 %v3311
      %3479 = vmatprep.subr.bf16.mxu0 0
      %3480 = vmatpush1.bf16.msra.mxu0 %v3312
      %3481 = vmatprep.subr.bf16.mxu0 0
      %3482 = vmatpush1.bf16.msra.mxu0 %v3313
      %3483 = vmatprep.subr.bf16.mxu0 0
      %3484 = vmatpush1.bf16.msra.mxu0 %v3314
      %3485 = vmatprep.subr.bf16.mxu0 0
      %3486 = vmatpush1.bf16.msra.mxu0 %v3315
      %3487 = vmatprep.subr.bf16.mxu0 0
      %3488 = vmatpush1.bf16.msra.mxu0 %v3316
      %3489 = vmatprep.subr.bf16.mxu0 0
      %3490 = vmatpush1.bf16.msra.mxu0 %v3317
      %3491 = vmatprep.subr.bf16.mxu0 0
      %3492 = vmatpush1.bf16.msra.mxu0 %v3318
      %3493 = vmatprep.subr.bf16.mxu0 0
      %3494 = vmatpush1.bf16.msra.mxu0 %v3319
      %3495 = vmatprep.subr.bf16.mxu0 0
      %3496 = vmatpush1.bf16.msra.mxu0 %v3320
      %3497 = vmatprep.subr.bf16.mxu0 0
      %3498 = vmatpush1.bf16.msra.mxu0 %v3321
      %3499 = vmatprep.mubr.bf16.mxu0 %v2240
      %3500 = vmatmul.mubr.bf16.gmra.mrb[0].mxu0 %v2239
      %v3501 = vpop.f32.mrb[0].mxu0
      %v3502 = vadd.f32 %v3453, %v3501
      %v3503 = vpop.f32.mrb[0].mxu0
      %v3504 = vpop.f32.mrb[0].mxu0
      %v3505 = vadd.f32 %v3456, %v3504
      %v3506 = vpop.f32.mrb[0].mxu0
      %3507 = vmatprep.mubr.bf16.mxu0 %v2248
      %3508 = vmatmul.mubr.bf16.gmra.mrb[0].mxu0 %v2247
      %v3509 = vpop.f32.mrb[0].mxu0
      %v3510 = vadd.f32 %v3461, %v3509
      %v3511 = vpop.f32.mrb[0].mxu0
      %v3512 = vpop.f32.mrb[0].mxu0
      %v3513 = vadd.f32 %v3464, %v3512
      %v3514 = vpop.f32.mrb[0].mxu0
      %3515 = vdwg.mxu0
      %3516 = vmatprep.subr.bf16.mxu0 0
      %3517 = vmatpush1.bf16.msra.mxu0 %v3322
      %3518 = vmatprep.subr.bf16.mxu0 0
      %3519 = vmatpush1.bf16.msra.mxu0 %v3323
      %3520 = vmatprep.subr.bf16.mxu0 0
      %3521 = vmatpush1.bf16.msra.mxu0 %v3324
      %3522 = vmatprep.subr.bf16.mxu0 0
      %3523 = vmatpush1.bf16.msra.mxu0 %v3325
      %3524 = vmatprep.subr.bf16.mxu0 0
      %3525 = vmatpush1.bf16.msra.mxu0 %v3326
      %3526 = vmatprep.subr.bf16.mxu0 0
      %3527 = vmatpush1.bf16.msra.mxu0 %v3327
      %3528 = vmatprep.subr.bf16.mxu0 0
      %3529 = vmatpush1.bf16.msra.mxu0 %v3328
      %3530 = vmatprep.subr.bf16.mxu0 0
      %3531 = vmatpush1.bf16.msra.mxu0 %v3329
      %3532 = vmatprep.subr.bf16.mxu0 0
      %3533 = vmatpush1.bf16.msra.mxu0 %v3330
      %3534 = vmatprep.subr.bf16.mxu0 0
      %3535 = vmatpush1.bf16.msra.mxu0 %v3331
      %3536 = vmatprep.subr.bf16.mxu0 0
      %3537 = vmatpush1.bf16.msra.mxu0 %v3332
      %3538 = vmatprep.subr.bf16.mxu0 0
      %3539 = vmatpush1.bf16.msra.mxu0 %v3333
      %3540 = vmatprep.subr.bf16.mxu0 0
      %3541 = vmatpush1.bf16.msra.mxu0 %v3334
      %3542 = vmatprep.subr.bf16.mxu0 0
      %3543 = vmatpush1.bf16.msra.mxu0 %v3335
      %3544 = vmatprep.subr.bf16.mxu0 0
      %3545 = vmatpush1.bf16.msra.mxu0 %v3336
      %3546 = vmatprep.subr.bf16.mxu0 0
      %3547 = vmatpush1.bf16.msra.mxu0 %v3337
      %3548 = vmatprep.mubr.bf16.mxu0 %v2242
      %3549 = vmatmul.mubr.bf16.gmra.mrb[0].mxu0 %v2241
      %v3550 = vpop.f32.mrb[0].mxu0
      %v3551 = vadd.f32 %v3502, %v3550
      %v3552 = vpop.f32.mrb[0].mxu0
      %v3553 = vpop.f32.mrb[0].mxu0
      %v3554 = vadd.f32 %v3505, %v3553
      %v3555 = vpop.f32.mrb[0].mxu0
      %3556 = vmatprep.mubr.bf16.mxu0 %v2250
      %3557 = vmatmul.mubr.bf16.gmra.mrb[0].mxu0 %v2249
      %v3558 = vpop.f32.mrb[0].mxu0
      %v3559 = vadd.f32 %v3510, %v3558
      %v3560 = vpop.f32.mrb[0].mxu0
      %v3561 = vpop.f32.mrb[0].mxu0
      %v3562 = vadd.f32 %v3513, %v3561
      %v3563 = vpop.f32.mrb[0].mxu0
      %3564 = vdwg.mxu0
      %3565 = vmatprep.subr.bf16.mxu0 0
      %3566 = vmatpush1.bf16.msra.mxu0 %v3338
      %3567 = vmatprep.subr.bf16.mxu0 0
      %3568 = vmatpush1.bf16.msra.mxu0 %v3339
      %3569 = vmatprep.subr.bf16.mxu0 0
      %3570 = vmatpush1.bf16.msra.mxu0 %v3340
      %3571 = vmatprep.subr.bf16.mxu0 0
      %3572 = vmatpush1.bf16.msra.mxu0 %v3341
      %3573 = vmatprep.subr.bf16.mxu0 0
      %3574 = vmatpush1.bf16.msra.mxu0 %v3342
      %3575 = vmatprep.subr.bf16.mxu0 0
      %3576 = vmatpush1.bf16.msra.mxu0 %v3343
      %3577 = vmatprep.subr.bf16.mxu0 0
      %3578 = vmatpush1.bf16.msra.mxu0 %v3344
      %3579 = vmatprep.subr.bf16.mxu0 0
      %3580 = vmatpush1.bf16.msra.mxu0 %v3345
      %3581 = vmatprep.subr.bf16.mxu0 0
      %3582 = vmatpush1.bf16.msra.mxu0 %v3346
      %3583 = vmatprep.subr.bf16.mxu0 0
      %3584 = vmatpush1.bf16.msra.mxu0 %v3347
      %3585 = vmatprep.subr.bf16.mxu0 0
      %3586 = vmatpush1.bf16.msra.mxu0 %v3348
      %3587 = vmatprep.subr.bf16.mxu0 0
      %3588 = vmatpush1.bf16.msra.mxu0 %v3349
      %3589 = vmatprep.subr.bf16.mxu0 0
      %3590 = vmatpush1.bf16.msra.mxu0 %v3350
      %3591 = vmatprep.subr.bf16.mxu0 0
      %3592 = vmatpush1.bf16.msra.mxu0 %v3351
      %3593 = vmatprep.subr.bf16.mxu0 0
      %3594 = vmatpush1.bf16.msra.mxu0 %v3352
      %3595 = vmatprep.subr.bf16.mxu0 0
      %3596 = vmatpush1.bf16.msra.mxu0 %v3353
      %3597 = vmatprep.mubr.bf16.mxu0 %v2244
      %3598 = vmatmul.mubr.bf16.gmra.mrb[0].mxu0 %v2243
      %v3599 = vpop.f32.mrb[0].mxu0
      %v3600 = vadd.f32 %v3551, %v3599
      %v3601 = vpop.f32.mrb[0].mxu0
      %v3602 = vpop.f32.mrb[0].mxu0
      %v3603 = vadd.f32 %v3554, %v3602
      %v3604 = vpop.f32.mrb[0].mxu0
      %3605 = vmatprep.mubr.bf16.mxu0 %v2252
      %3606 = vmatmul.mubr.bf16.gmra.mrb[0].mxu0 %v2251
      %v3607 = vpop.f32.mrb[0].mxu0
      %v3608 = vadd.f32 %v3559, %v3607
      %v3609 = vpop.f32.mrb[0].mxu0
      %v3610 = vpop.f32.mrb[0].mxu0
      %v3611 = vadd.f32 %v3562, %v3610
      %v3612 = vpop.f32.mrb[0].mxu0
      %3613 = vdwg.mxu0
      %v3614 = vmul.f32 %v3600, %v2852
      %v3615 = vmul.f32 %v3603, %v2857
      %v3616 = vmul.f32 %v3608, %v2862
      %v3617 = vmul.f32 %v3611, %v2867
      %v3618 = vadd.f32 %v3614, %v2876
      %v3619 = vadd.f32 %v3615, %v2881
      %v3620 = vadd.f32 %v3616, %v2886
      %v3621 = vadd.f32 %v3617, %v2891
      %v3622 = vmax.f32 %v3618, 0.0
      %v3623 = vmax.f32 %v3619, 0.0
      %v3624 = vmax.f32 %v3620, 0.0
      %v3625 = vmax.f32 %v3621, 0.0
      %v3626 = vadd.f32 %v2901, %v3622
      %v3627 = vadd.f32 %v2902, %v3623
      %v3628 = vadd.f32 %v2903, %v3624
      %v3629 = vadd.f32 %v2904, %v3625
      %s3630 = scalar_lea.vmem %s359, 1024
      %v3631 = vld [vmem:[%s3630] sm:$0xf]
      %v3632 = vld [vmem:[%s3630 + $0x4] sm:$0xf]
      %v3633 = vld [vmem:[%s3630 + $0x8] sm:$0xf]
      %v3634 = vld [vmem:[%s3630 + $0xc] sm:$0xf]
      %v3635 = vld [vmem:[%s3630 + $0x10] sm:$0xf]
      %v3636 = vld [vmem:[%s3630 + $0x14] sm:$0xf]
      %v3637 = vld [vmem:[%s3630 + $0x18] sm:$0xf]
      %v3638 = vld [vmem:[%s3630 + $0x1c] sm:$0xf]
      %v3639 = vld [vmem:[%s3630 + $0x20] sm:$0xf]
      %v3640 = vld [vmem:[%s3630 + $0x24] sm:$0xf]
      %v3641 = vld [vmem:[%s3630 + $0x28] sm:$0xf]
      %v3642 = vld [vmem:[%s3630 + $0x2c] sm:$0xf]
      %v3643 = vld [vmem:[%s3630 + $0x30] sm:$0xf]
      %v3644 = vld [vmem:[%s3630 + $0x34] sm:$0xf]
      %v3645 = vld [vmem:[%s3630 + $0x38] sm:$0xf]
      %v3646 = vld [vmem:[%s3630 + $0x3c] sm:$0xf]
      %v3647 = vld [vmem:[%s3630 + $0x40] sm:$0xf]
      %v3648 = vld [vmem:[%s3630 + $0x44] sm:$0xf]
      %v3649 = vld [vmem:[%s3630 + $0x48] sm:$0xf]
      %v3650 = vld [vmem:[%s3630 + $0x4c] sm:$0xf]
      %v3651 = vld [vmem:[%s3630 + $0x50] sm:$0xf]
      %v3652 = vld [vmem:[%s3630 + $0x54] sm:$0xf]
      %v3653 = vld [vmem:[%s3630 + $0x58] sm:$0xf]
      %v3654 = vld [vmem:[%s3630 + $0x5c] sm:$0xf]
      %v3655 = vld [vmem:[%s3630 + $0x60] sm:$0xf]
      %v3656 = vld [vmem:[%s3630 + $0x64] sm:$0xf]
      %v3657 = vld [vmem:[%s3630 + $0x68] sm:$0xf]
      %v3658 = vld [vmem:[%s3630 + $0x6c] sm:$0xf]
      %v3659 = vld [vmem:[%s3630 + $0x70] sm:$0xf]
      %v3660 = vld [vmem:[%s3630 + $0x74] sm:$0xf]
      %v3661 = vld [vmem:[%s3630 + $0x78] sm:$0xf]
      %v3662 = vld [vmem:[%s3630 + $0x7c] sm:$0xf]
      %v3663 = vld [vmem:[%s3630 + $0x80] sm:$0xf]
      %v3664 = vld [vmem:[%s3630 + $0x84] sm:$0xf]
      %v3665 = vld [vmem:[%s3630 + $0x88] sm:$0xf]
      %v3666 = vld [vmem:[%s3630 + $0x8c] sm:$0xf]
      %v3667 = vld [vmem:[%s3630 + $0x90] sm:$0xf]
      %v3668 = vld [vmem:[%s3630 + $0x94] sm:$0xf]
      %v3669 = vld [vmem:[%s3630 + $0x98] sm:$0xf]
      %v3670 = vld [vmem:[%s3630 + $0x9c] sm:$0xf]
      %v3671 = vld [vmem:[%s3630 + $0xa0] sm:$0xf]
      %v3672 = vld [vmem:[%s3630 + $0xa4] sm:$0xf]
      %v3673 = vld [vmem:[%s3630 + $0xa8] sm:$0xf]
      %v3674 = vld [vmem:[%s3630 + $0xac] sm:$0xf]
      %v3675 = vld [vmem:[%s3630 + $0xb0] sm:$0xf]
      %v3676 = vld [vmem:[%s3630 + $0xb4] sm:$0xf]
      %v3677 = vld [vmem:[%s3630 + $0xb8] sm:$0xf]
      %v3678 = vld [vmem:[%s3630 + $0xbc] sm:$0xf]
      %v3679 = vld [vmem:[%s3630 + $0xc0] sm:$0xf]
      %v3680 = vld [vmem:[%s3630 + $0xc4] sm:$0xf]
      %v3681 = vld [vmem:[%s3630 + $0xc8] sm:$0xf]
      %v3682 = vld [vmem:[%s3630 + $0xcc] sm:$0xf]
      %v3683 = vld [vmem:[%s3630 + $0xd0] sm:$0xf]
      %v3684 = vld [vmem:[%s3630 + $0xd4] sm:$0xf]
      %v3685 = vld [vmem:[%s3630 + $0xd8] sm:$0xf]
      %v3686 = vld [vmem:[%s3630 + $0xdc] sm:$0xf]
      %v3687 = vld [vmem:[%s3630 + $0xe0] sm:$0xf]
      %v3688 = vld [vmem:[%s3630 + $0xe4] sm:$0xf]
      %v3689 = vld [vmem:[%s3630 + $0xe8] sm:$0xf]
      %v3690 = vld [vmem:[%s3630 + $0xec] sm:$0xf]
      %v3691 = vld [vmem:[%s3630 + $0xf0] sm:$0xf]
      %v3692 = vld [vmem:[%s3630 + $0xf4] sm:$0xf]
      %v3693 = vld [vmem:[%s3630 + $0xf8] sm:$0xf]
      %v3694 = vld [vmem:[%s3630 + $0xfc] sm:$0xf]
      %v3695 = vld [vmem:[%s3630 + $0x100] sm:$0xf]
      %v3696 = vld [vmem:[%s3630 + $0x104] sm:$0xf]
      %v3697 = vld [vmem:[%s3630 + $0x108] sm:$0xf]
      %v3698 = vld [vmem:[%s3630 + $0x10c] sm:$0xf]
      %v3699 = vld [vmem:[%s3630 + $0x110] sm:$0xf]
      %v3700 = vld [vmem:[%s3630 + $0x114] sm:$0xf]
      %v3701 = vld [vmem:[%s3630 + $0x118] sm:$0xf]
      %v3702 = vld [vmem:[%s3630 + $0x11c] sm:$0xf]
      %v3703 = vld [vmem:[%s3630 + $0x120] sm:$0xf]
      %v3704 = vld [vmem:[%s3630 + $0x124] sm:$0xf]
      %v3705 = vld [vmem:[%s3630 + $0x128] sm:$0xf]
      %v3706 = vld [vmem:[%s3630 + $0x12c] sm:$0xf]
      %v3707 = vld [vmem:[%s3630 + $0x130] sm:$0xf]
      %v3708 = vld [vmem:[%s3630 + $0x134] sm:$0xf]
      %v3709 = vld [vmem:[%s3630 + $0x138] sm:$0xf]
      %v3710 = vld [vmem:[%s3630 + $0x13c] sm:$0xf]
      %v3711 = vld [vmem:[%s3630 + $0x140] sm:$0xf]
      %v3712 = vld [vmem:[%s3630 + $0x144] sm:$0xf]
      %v3713 = vld [vmem:[%s3630 + $0x148] sm:$0xf]
      %v3714 = vld [vmem:[%s3630 + $0x14c] sm:$0xf]
      %v3715 = vld [vmem:[%s3630 + $0x150] sm:$0xf]
      %v3716 = vld [vmem:[%s3630 + $0x154] sm:$0xf]
      %v3717 = vld [vmem:[%s3630 + $0x158] sm:$0xf]
      %v3718 = vld [vmem:[%s3630 + $0x15c] sm:$0xf]
      %v3719 = vld [vmem:[%s3630 + $0x160] sm:$0xf]
      %v3720 = vld [vmem:[%s3630 + $0x164] sm:$0xf]
      %v3721 = vld [vmem:[%s3630 + $0x168] sm:$0xf]
      %v3722 = vld [vmem:[%s3630 + $0x16c] sm:$0xf]
      %v3723 = vld [vmem:[%s3630 + $0x170] sm:$0xf]
      %v3724 = vld [vmem:[%s3630 + $0x174] sm:$0xf]
      %v3725 = vld [vmem:[%s3630 + $0x178] sm:$0xf]
      %v3726 = vld [vmem:[%s3630 + $0x17c] sm:$0xf]
      %v3727 = vld [vmem:[%s3630 + $0x180] sm:$0xf]
      %v3728 = vld [vmem:[%s3630 + $0x184] sm:$0xf]
      %v3729 = vld [vmem:[%s3630 + $0x188] sm:$0xf]
      %v3730 = vld [vmem:[%s3630 + $0x18c] sm:$0xf]
      %v3731 = vld [vmem:[%s3630 + $0x190] sm:$0xf]
      %v3732 = vld [vmem:[%s3630 + $0x194] sm:$0xf]
      %v3733 = vld [vmem:[%s3630 + $0x198] sm:$0xf]
      %v3734 = vld [vmem:[%s3630 + $0x19c] sm:$0xf]
      %v3735 = vld [vmem:[%s3630 + $0x1a0] sm:$0xf]
      %v3736 = vld [vmem:[%s3630 + $0x1a4] sm:$0xf]
      %v3737 = vld [vmem:[%s3630 + $0x1a8] sm:$0xf]
      %v3738 = vld [vmem:[%s3630 + $0x1ac] sm:$0xf]
      %v3739 = vld [vmem:[%s3630 + $0x1b0] sm:$0xf]
      %v3740 = vld [vmem:[%s3630 + $0x1b4] sm:$0xf]
      %v3741 = vld [vmem:[%s3630 + $0x1b8] sm:$0xf]
      %v3742 = vld [vmem:[%s3630 + $0x1bc] sm:$0xf]
      %v3743 = vld [vmem:[%s3630 + $0x1c0] sm:$0xf]
      %v3744 = vld [vmem:[%s3630 + $0x1c4] sm:$0xf]
      %v3745 = vld [vmem:[%s3630 + $0x1c8] sm:$0xf]
      %v3746 = vld [vmem:[%s3630 + $0x1cc] sm:$0xf]
      %v3747 = vld [vmem:[%s3630 + $0x1d0] sm:$0xf]
      %v3748 = vld [vmem:[%s3630 + $0x1d4] sm:$0xf]
      %v3749 = vld [vmem:[%s3630 + $0x1d8] sm:$0xf]
      %v3750 = vld [vmem:[%s3630 + $0x1dc] sm:$0xf]
      %v3751 = vld [vmem:[%s3630 + $0x1e0] sm:$0xf]
      %v3752 = vld [vmem:[%s3630 + $0x1e4] sm:$0xf]
      %v3753 = vld [vmem:[%s3630 + $0x1e8] sm:$0xf]
      %v3754 = vld [vmem:[%s3630 + $0x1ec] sm:$0xf]
      %v3755 = vld [vmem:[%s3630 + $0x1f0] sm:$0xf]
      %v3756 = vld [vmem:[%s3630 + $0x1f4] sm:$0xf]
      %v3757 = vld [vmem:[%s3630 + $0x1f8] sm:$0xf]
      %v3758 = vld [vmem:[%s3630 + $0x1fc] sm:$0xf]
      %v3887 = vunpack.c.l.b16 %v3631
      %v3888 = vunpack.c.l.b16 %v3632
      %v3889 = vunpack.c.l.b16 %v3633
      %v3890 = vunpack.c.l.b16 %v3634
      %v3891 = vunpack.c.l.b16 %v3635
      %v3892 = vunpack.c.l.b16 %v3636
      %v3893 = vunpack.c.l.b16 %v3637
      %v3894 = vunpack.c.l.b16 %v3638
      %v3895 = vunpack.c.l.b16 %v3639
      %v3896 = vunpack.c.l.b16 %v3640
      %v3897 = vunpack.c.l.b16 %v3641
      %v3898 = vunpack.c.l.b16 %v3642
      %v3899 = vunpack.c.l.b16 %v3643
      %v3900 = vunpack.c.l.b16 %v3644
      %v3901 = vunpack.c.l.b16 %v3645
      %v3902 = vunpack.c.l.b16 %v3646
      %v3903 = vunpack.c.l.b16 %v3647
      %v3904 = vunpack.c.l.b16 %v3648
      %v3905 = vunpack.c.l.b16 %v3649
      %v3906 = vunpack.c.l.b16 %v3650
      %v3907 = vunpack.c.l.b16 %v3651
      %v3908 = vunpack.c.l.b16 %v3652
      %v3909 = vunpack.c.l.b16 %v3653
      %v3910 = vunpack.c.l.b16 %v3654
      %v3911 = vunpack.c.l.b16 %v3655
      %v3912 = vunpack.c.l.b16 %v3656
      %v3913 = vunpack.c.l.b16 %v3657
      %v3914 = vunpack.c.l.b16 %v3658
      %v3915 = vunpack.c.l.b16 %v3659
      %v3916 = vunpack.c.l.b16 %v3660
      %v3917 = vunpack.c.l.b16 %v3661
      %v3918 = vunpack.c.l.b16 %v3662
      %v3919 = vunpack.c.l.b16 %v3663
      %v3920 = vunpack.c.l.b16 %v3664
      %v3921 = vunpack.c.l.b16 %v3665
      %v3922 = vunpack.c.l.b16 %v3666
      %v3923 = vunpack.c.l.b16 %v3667
      %v3924 = vunpack.c.l.b16 %v3668
      %v3925 = vunpack.c.l.b16 %v3669
      %v3926 = vunpack.c.l.b16 %v3670
      %v3927 = vunpack.c.l.b16 %v3671
      %v3928 = vunpack.c.l.b16 %v3672
      %v3929 = vunpack.c.l.b16 %v3673
      %v3930 = vunpack.c.l.b16 %v3674
      %v3931 = vunpack.c.l.b16 %v3675
      %v3932 = vunpack.c.l.b16 %v3676
      %v3933 = vunpack.c.l.b16 %v3677
      %v3934 = vunpack.c.l.b16 %v3678
      %v3935 = vunpack.c.l.b16 %v3679
      %v3936 = vunpack.c.l.b16 %v3680
      %v3937 = vunpack.c.l.b16 %v3681
      %v3938 = vunpack.c.l.b16 %v3682
      %v3939 = vunpack.c.l.b16 %v3683
      %v3940 = vunpack.c.l.b16 %v3684
      %v3941 = vunpack.c.l.b16 %v3685
      %v3942 = vunpack.c.l.b16 %v3686
      %v3943 = vunpack.c.l.b16 %v3687
      %v3944 = vunpack.c.l.b16 %v3688
      %v3945 = vunpack.c.l.b16 %v3689
      %v3946 = vunpack.c.l.b16 %v3690
      %v3947 = vunpack.c.l.b16 %v3691
      %v3948 = vunpack.c.l.b16 %v3692
      %v3949 = vunpack.c.l.b16 %v3693
      %v3950 = vunpack.c.l.b16 %v3694
      %v3951 = vunpack.c.l.b16 %v3695
      %v3952 = vunpack.c.l.b16 %v3696
      %v3953 = vunpack.c.l.b16 %v3697
      %v3954 = vunpack.c.l.b16 %v3698
      %v3955 = vunpack.c.l.b16 %v3699
      %v3956 = vunpack.c.l.b16 %v3700
      %v3957 = vunpack.c.l.b16 %v3701
      %v3958 = vunpack.c.l.b16 %v3702
      %v3959 = vunpack.c.l.b16 %v3703
      %v3960 = vunpack.c.l.b16 %v3704
      %v3961 = vunpack.c.l.b16 %v3705
      %v3962 = vunpack.c.l.b16 %v3706
      %v3963 = vunpack.c.l.b16 %v3707
      %v3964 = vunpack.c.l.b16 %v3708
      %v3965 = vunpack.c.l.b16 %v3709
      %v3966 = vunpack.c.l.b16 %v3710
      %v3967 = vunpack.c.l.b16 %v3711
      %v3968 = vunpack.c.l.b16 %v3712
      %v3969 = vunpack.c.l.b16 %v3713
      %v3970 = vunpack.c.l.b16 %v3714
      %v3971 = vunpack.c.l.b16 %v3715
      %v3972 = vunpack.c.l.b16 %v3716
      %v3973 = vunpack.c.l.b16 %v3717
      %v3974 = vunpack.c.l.b16 %v3718
      %v3975 = vunpack.c.l.b16 %v3719
      %v3976 = vunpack.c.l.b16 %v3720
      %v3977 = vunpack.c.l.b16 %v3721
      %v3978 = vunpack.c.l.b16 %v3722
      %v3979 = vunpack.c.l.b16 %v3723
      %v3980 = vunpack.c.l.b16 %v3724
      %v3981 = vunpack.c.l.b16 %v3725
      %v3982 = vunpack.c.l.b16 %v3726
      %v3983 = vunpack.c.l.b16 %v3727
      %v3984 = vunpack.c.l.b16 %v3728
      %v3985 = vunpack.c.l.b16 %v3729
      %v3986 = vunpack.c.l.b16 %v3730
      %v3987 = vunpack.c.l.b16 %v3731
      %v3988 = vunpack.c.l.b16 %v3732
      %v3989 = vunpack.c.l.b16 %v3733
      %v3990 = vunpack.c.l.b16 %v3734
      %v3991 = vunpack.c.l.b16 %v3735
      %v3992 = vunpack.c.l.b16 %v3736
      %v3993 = vunpack.c.l.b16 %v3737
      %v3994 = vunpack.c.l.b16 %v3738
      %v3995 = vunpack.c.l.b16 %v3739
      %v3996 = vunpack.c.l.b16 %v3740
      %v3997 = vunpack.c.l.b16 %v3741
      %v3998 = vunpack.c.l.b16 %v3742
      %v3999 = vunpack.c.l.b16 %v3743
      %v4000 = vunpack.c.l.b16 %v3744
      %v4001 = vunpack.c.l.b16 %v3745
      %v4002 = vunpack.c.l.b16 %v3746
      %v4003 = vunpack.c.l.b16 %v3747
      %v4004 = vunpack.c.l.b16 %v3748
      %v4005 = vunpack.c.l.b16 %v3749
      %v4006 = vunpack.c.l.b16 %v3750
      %v4007 = vunpack.c.l.b16 %v3751
      %v4008 = vunpack.c.l.b16 %v3752
      %v4009 = vunpack.c.l.b16 %v3753
      %v4010 = vunpack.c.l.b16 %v3754
      %v4011 = vunpack.c.l.b16 %v3755
      %v4012 = vunpack.c.l.b16 %v3756
      %v4013 = vunpack.c.l.b16 %v3757
      %v4014 = vunpack.c.l.b16 %v3758
      %v4015 = vpack.c.b16 %v3888, %v3887
      %v4016 = vpack.c.b16 %v3890, %v3889
      %v4017 = vpack.c.b16 %v3892, %v3891
      %v4018 = vpack.c.b16 %v3894, %v3893
      %v4019 = vpack.c.b16 %v3896, %v3895
      %v4020 = vpack.c.b16 %v3898, %v3897
      %v4021 = vpack.c.b16 %v3900, %v3899
      %v4022 = vpack.c.b16 %v3902, %v3901
      %v4023 = vpack.c.b16 %v3904, %v3903
      %v4024 = vpack.c.b16 %v3906, %v3905
      %v4025 = vpack.c.b16 %v3908, %v3907
      %v4026 = vpack.c.b16 %v3910, %v3909
      %v4027 = vpack.c.b16 %v3912, %v3911
      %v4028 = vpack.c.b16 %v3914, %v3913
      %v4029 = vpack.c.b16 %v3916, %v3915
      %v4030 = vpack.c.b16 %v3918, %v3917
      %v4031 = vpack.c.b16 %v3920, %v3919
      %v4032 = vpack.c.b16 %v3922, %v3921
      %v4033 = vpack.c.b16 %v3924, %v3923
      %v4034 = vpack.c.b16 %v3926, %v3925
      %v4035 = vpack.c.b16 %v3928, %v3927
      %v4036 = vpack.c.b16 %v3930, %v3929
      %v4037 = vpack.c.b16 %v3932, %v3931
      %v4038 = vpack.c.b16 %v3934, %v3933
      %v4039 = vpack.c.b16 %v3936, %v3935
      %v4040 = vpack.c.b16 %v3938, %v3937
      %v4041 = vpack.c.b16 %v3940, %v3939
      %v4042 = vpack.c.b16 %v3942, %v3941
      %v4043 = vpack.c.b16 %v3944, %v3943
      %v4044 = vpack.c.b16 %v3946, %v3945
      %v4045 = vpack.c.b16 %v3948, %v3947
      %v4046 = vpack.c.b16 %v3950, %v3949
      %v4047 = vpack.c.b16 %v3952, %v3951
      %v4048 = vpack.c.b16 %v3954, %v3953
      %v4049 = vpack.c.b16 %v3956, %v3955
      %v4050 = vpack.c.b16 %v3958, %v3957
      %v4051 = vpack.c.b16 %v3960, %v3959
      %v4052 = vpack.c.b16 %v3962, %v3961
      %v4053 = vpack.c.b16 %v3964, %v3963
      %v4054 = vpack.c.b16 %v3966, %v3965
      %v4055 = vpack.c.b16 %v3968, %v3967
      %v4056 = vpack.c.b16 %v3970, %v3969
      %v4057 = vpack.c.b16 %v3972, %v3971
      %v4058 = vpack.c.b16 %v3974, %v3973
      %v4059 = vpack.c.b16 %v3976, %v3975
      %v4060 = vpack.c.b16 %v3978, %v3977
      %v4061 = vpack.c.b16 %v3980, %v3979
      %v4062 = vpack.c.b16 %v3982, %v3981
      %v4063 = vpack.c.b16 %v3984, %v3983
      %v4064 = vpack.c.b16 %v3986, %v3985
      %v4065 = vpack.c.b16 %v3988, %v3987
      %v4066 = vpack.c.b16 %v3990, %v3989
      %v4067 = vpack.c.b16 %v3992, %v3991
      %v4068 = vpack.c.b16 %v3994, %v3993
      %v4069 = vpack.c.b16 %v3996, %v3995
      %v4070 = vpack.c.b16 %v3998, %v3997
      %v4071 = vpack.c.b16 %v4000, %v3999
      %v4072 = vpack.c.b16 %v4002, %v4001
      %v4073 = vpack.c.b16 %v4004, %v4003
      %v4074 = vpack.c.b16 %v4006, %v4005
      %v4075 = vpack.c.b16 %v4008, %v4007
      %v4076 = vpack.c.b16 %v4010, %v4009
      %v4077 = vpack.c.b16 %v4012, %v4011
      %v4078 = vpack.c.b16 %v4014, %v4013
      %4143 = vmatprep.subr.bf16.mxu0 0
      %4144 = vmatpush1.bf16.msra.mxu0 %v4015
      %4145 = vmatprep.subr.bf16.mxu0 0
      %4146 = vmatpush1.bf16.msra.mxu0 %v4016
      %4147 = vmatprep.subr.bf16.mxu0 0
      %4148 = vmatpush1.bf16.msra.mxu0 %v4017
      %4149 = vmatprep.subr.bf16.mxu0 0
      %4150 = vmatpush1.bf16.msra.mxu0 %v4018
      %4151 = vmatprep.subr.bf16.mxu0 0
      %4152 = vmatpush1.bf16.msra.mxu0 %v4019
      %4153 = vmatprep.subr.bf16.mxu0 0
      %4154 = vmatpush1.bf16.msra.mxu0 %v4020
      %4155 = vmatprep.subr.bf16.mxu0 0
      %4156 = vmatpush1.bf16.msra.mxu0 %v4021
      %4157 = vmatprep.subr.bf16.mxu0 0
      %4158 = vmatpush1.bf16.msra.mxu0 %v4022
      %4159 = vmatprep.subr.bf16.mxu0 0
      %4160 = vmatpush1.bf16.msra.mxu0 %v4023
      %4161 = vmatprep.subr.bf16.mxu0 0
      %4162 = vmatpush1.bf16.msra.mxu0 %v4024
      %4163 = vmatprep.subr.bf16.mxu0 0
      %4164 = vmatpush1.bf16.msra.mxu0 %v4025
      %4165 = vmatprep.subr.bf16.mxu0 0
      %4166 = vmatpush1.bf16.msra.mxu0 %v4026
      %4167 = vmatprep.subr.bf16.mxu0 0
      %4168 = vmatpush1.bf16.msra.mxu0 %v4027
      %4169 = vmatprep.subr.bf16.mxu0 0
      %4170 = vmatpush1.bf16.msra.mxu0 %v4028
      %4171 = vmatprep.subr.bf16.mxu0 0
      %4172 = vmatpush1.bf16.msra.mxu0 %v4029
      %4173 = vmatprep.subr.bf16.mxu0 0
      %4174 = vmatpush1.bf16.msra.mxu0 %v4030
      %4175 = vmatprep.mubr.bf16.mxu0 %v2238
      %4176 = vmatmul.mubr.bf16.gmra.mrb[0].mxu0 %v2237
      %v4177 = vpop.f32.mrb[0].mxu0
      %v4178 = vadd.f32 0.0, %v4177
      %v4179 = vpop.f32.mrb[0].mxu0
      %v4180 = vpop.f32.mrb[0].mxu0
      %v4181 = vadd.f32 0.0, %v4180
      %v4182 = vpop.f32.mrb[0].mxu0
      %4183 = vmatprep.mubr.bf16.mxu0 %v2246
      %4184 = vmatmul.mubr.bf16.gmra.mrb[0].mxu0 %v2245
      %v4185 = vpop.f32.mrb[0].mxu0
      %v4186 = vadd.f32 0.0, %v4185
      %v4187 = vpop.f32.mrb[0].mxu0
      %v4188 = vpop.f32.mrb[0].mxu0
      %v4189 = vadd.f32 0.0, %v4188
      %v4190 = vpop.f32.mrb[0].mxu0
      %4191 = vdwg.mxu0
      %4192 = vmatprep.subr.bf16.mxu0 0
      %4193 = vmatpush1.bf16.msra.mxu0 %v4031
      %4194 = vmatprep.subr.bf16.mxu0 0
      %4195 = vmatpush1.bf16.msra.mxu0 %v4032
      %4196 = vmatprep.subr.bf16.mxu0 0
      %4197 = vmatpush1.bf16.msra.mxu0 %v4033
      %4198 = vmatprep.subr.bf16.mxu0 0
      %4199 = vmatpush1.bf16.msra.mxu0 %v4034
      %4200 = vmatprep.subr.bf16.mxu0 0
      %4201 = vmatpush1.bf16.msra.mxu0 %v4035
      %4202 = vmatprep.subr.bf16.mxu0 0
      %4203 = vmatpush1.bf16.msra.mxu0 %v4036
      %4204 = vmatprep.subr.bf16.mxu0 0
      %4205 = vmatpush1.bf16.msra.mxu0 %v4037
      %4206 = vmatprep.subr.bf16.mxu0 0
      %4207 = vmatpush1.bf16.msra.mxu0 %v4038
      %4208 = vmatprep.subr.bf16.mxu0 0
      %4209 = vmatpush1.bf16.msra.mxu0 %v4039
      %4210 = vmatprep.subr.bf16.mxu0 0
      %4211 = vmatpush1.bf16.msra.mxu0 %v4040
      %4212 = vmatprep.subr.bf16.mxu0 0
      %4213 = vmatpush1.bf16.msra.mxu0 %v4041
      %4214 = vmatprep.subr.bf16.mxu0 0
      %4215 = vmatpush1.bf16.msra.mxu0 %v4042
      %4216 = vmatprep.subr.bf16.mxu0 0
      %4217 = vmatpush1.bf16.msra.mxu0 %v4043
      %4218 = vmatprep.subr.bf16.mxu0 0
      %4219 = vmatpush1.bf16.msra.mxu0 %v4044
      %4220 = vmatprep.subr.bf16.mxu0 0
      %4221 = vmatpush1.bf16.msra.mxu0 %v4045
      %4222 = vmatprep.subr.bf16.mxu0 0
      %4223 = vmatpush1.bf16.msra.mxu0 %v4046
      %4224 = vmatprep.mubr.bf16.mxu0 %v2240
      %4225 = vmatmul.mubr.bf16.gmra.mrb[0].mxu0 %v2239
      %v4226 = vpop.f32.mrb[0].mxu0
      %v4227 = vadd.f32 %v4178, %v4226
      %v4228 = vpop.f32.mrb[0].mxu0
      %v4229 = vpop.f32.mrb[0].mxu0
      %v4230 = vadd.f32 %v4181, %v4229
      %v4231 = vpop.f32.mrb[0].mxu0
      %4232 = vmatprep.mubr.bf16.mxu0 %v2248
      %4233 = vmatmul.mubr.bf16.gmra.mrb[0].mxu0 %v2247
      %v4234 = vpop.f32.mrb[0].mxu0
      %v4235 = vadd.f32 %v4186, %v4234
      %v4236 = vpop.f32.mrb[0].mxu0
      %v4237 = vpop.f32.mrb[0].mxu0
      %v4238 = vadd.f32 %v4189, %v4237
      %v4239 = vpop.f32.mrb[0].mxu0
      %4240 = vdwg.mxu0
      %4241 = vmatprep.subr.bf16.mxu0 0
      %4242 = vmatpush1.bf16.msra.mxu0 %v4047
      %4243 = vmatprep.subr.bf16.mxu0 0
      %4244 = vmatpush1.bf16.msra.mxu0 %v4048
      %4245 = vmatprep.subr.bf16.mxu0 0
      %4246 = vmatpush1.bf16.msra.mxu0 %v4049
      %4247 = vmatprep.subr.bf16.mxu0 0
      %4248 = vmatpush1.bf16.msra.mxu0 %v4050
      %4249 = vmatprep.subr.bf16.mxu0 0
      %4250 = vmatpush1.bf16.msra.mxu0 %v4051
      %4251 = vmatprep.subr.bf16.mxu0 0
      %4252 = vmatpush1.bf16.msra.mxu0 %v4052
      %4253 = vmatprep.subr.bf16.mxu0 0
      %4254 = vmatpush1.bf16.msra.mxu0 %v4053
      %4255 = vmatprep.subr.bf16.mxu0 0
      %4256 = vmatpush1.bf16.msra.mxu0 %v4054
      %4257 = vmatprep.subr.bf16.mxu0 0
      %4258 = vmatpush1.bf16.msra.mxu0 %v4055
      %4259 = vmatprep.subr.bf16.mxu0 0
      %4260 = vmatpush1.bf16.msra.mxu0 %v4056
      %4261 = vmatprep.subr.bf16.mxu0 0
      %4262 = vmatpush1.bf16.msra.mxu0 %v4057
      %4263 = vmatprep.subr.bf16.mxu0 0
      %4264 = vmatpush1.bf16.msra.mxu0 %v4058
      %4265 = vmatprep.subr.bf16.mxu0 0
      %4266 = vmatpush1.bf16.msra.mxu0 %v4059
      %4267 = vmatprep.subr.bf16.mxu0 0
      %4268 = vmatpush1.bf16.msra.mxu0 %v4060
      %4269 = vmatprep.subr.bf16.mxu0 0
      %4270 = vmatpush1.bf16.msra.mxu0 %v4061
      %4271 = vmatprep.subr.bf16.mxu0 0
      %4272 = vmatpush1.bf16.msra.mxu0 %v4062
      %4273 = vmatprep.mubr.bf16.mxu0 %v2242
      %4274 = vmatmul.mubr.bf16.gmra.mrb[0].mxu0 %v2241
      %v4275 = vpop.f32.mrb[0].mxu0
      %v4276 = vadd.f32 %v4227, %v4275
      %v4277 = vpop.f32.mrb[0].mxu0
      %v4278 = vpop.f32.mrb[0].mxu0
      %v4279 = vadd.f32 %v4230, %v4278
      %v4280 = vpop.f32.mrb[0].mxu0
      %4281 = vmatprep.mubr.bf16.mxu0 %v2250
      %4282 = vmatmul.mubr.bf16.gmra.mrb[0].mxu0 %v2249
      %v4283 = vpop.f32.mrb[0].mxu0
      %v4284 = vadd.f32 %v4235, %v4283
      %v4285 = vpop.f32.mrb[0].mxu0
      %v4286 = vpop.f32.mrb[0].mxu0
      %v4287 = vadd.f32 %v4238, %v4286
      %v4288 = vpop.f32.mrb[0].mxu0
      %4289 = vdwg.mxu0
      %4290 = vmatprep.subr.bf16.mxu0 0
      %4291 = vmatpush1.bf16.msra.mxu0 %v4063
      %4292 = vmatprep.subr.bf16.mxu0 0
      %4293 = vmatpush1.bf16.msra.mxu0 %v4064
      %4294 = vmatprep.subr.bf16.mxu0 0
      %4295 = vmatpush1.bf16.msra.mxu0 %v4065
      %4296 = vmatprep.subr.bf16.mxu0 0
      %4297 = vmatpush1.bf16.msra.mxu0 %v4066
      %4298 = vmatprep.subr.bf16.mxu0 0
      %4299 = vmatpush1.bf16.msra.mxu0 %v4067
      %4300 = vmatprep.subr.bf16.mxu0 0
      %4301 = vmatpush1.bf16.msra.mxu0 %v4068
      %4302 = vmatprep.subr.bf16.mxu0 0
      %4303 = vmatpush1.bf16.msra.mxu0 %v4069
      %4304 = vmatprep.subr.bf16.mxu0 0
      %4305 = vmatpush1.bf16.msra.mxu0 %v4070
      %4306 = vmatprep.subr.bf16.mxu0 0
      %4307 = vmatpush1.bf16.msra.mxu0 %v4071
      %4308 = vmatprep.subr.bf16.mxu0 0
      %4309 = vmatpush1.bf16.msra.mxu0 %v4072
      %4310 = vmatprep.subr.bf16.mxu0 0
      %4311 = vmatpush1.bf16.msra.mxu0 %v4073
      %4312 = vmatprep.subr.bf16.mxu0 0
      %4313 = vmatpush1.bf16.msra.mxu0 %v4074
      %4314 = vmatprep.subr.bf16.mxu0 0
      %4315 = vmatpush1.bf16.msra.mxu0 %v4075
      %4316 = vmatprep.subr.bf16.mxu0 0
      %4317 = vmatpush1.bf16.msra.mxu0 %v4076
      %4318 = vmatprep.subr.bf16.mxu0 0
      %4319 = vmatpush1.bf16.msra.mxu0 %v4077
      %4320 = vmatprep.subr.bf16.mxu0 0
      %4321 = vmatpush1.bf16.msra.mxu0 %v4078
      %4322 = vmatprep.mubr.bf16.mxu0 %v2244
      %4323 = vmatmul.mubr.bf16.gmra.mrb[0].mxu0 %v2243
      %v4324 = vpop.f32.mrb[0].mxu0
      %v4325 = vadd.f32 %v4276, %v4324
      %v4326 = vpop.f32.mrb[0].mxu0
      %v4327 = vpop.f32.mrb[0].mxu0
      %v4328 = vadd.f32 %v4279, %v4327
      %v4329 = vpop.f32.mrb[0].mxu0
      %4330 = vmatprep.mubr.bf16.mxu0 %v2252
      %4331 = vmatmul.mubr.bf16.gmra.mrb[0].mxu0 %v2251
      %v4332 = vpop.f32.mrb[0].mxu0
      %v4333 = vadd.f32 %v4284, %v4332
      %v4334 = vpop.f32.mrb[0].mxu0
      %v4335 = vpop.f32.mrb[0].mxu0
      %v4336 = vadd.f32 %v4287, %v4335
      %v4337 = vpop.f32.mrb[0].mxu0
      %4338 = vdwg.mxu0
      %v4339 = vmul.f32 %v4325, %v2852
      %v4340 = vmul.f32 %v4328, %v2857
      %v4341 = vmul.f32 %v4333, %v2862
      %v4342 = vmul.f32 %v4336, %v2867
      %v4343 = vadd.f32 %v4339, %v2876
      %v4344 = vadd.f32 %v4340, %v2881
      %v4345 = vadd.f32 %v4341, %v2886
      %v4346 = vadd.f32 %v4342, %v2891
      %v4347 = vmax.f32 %v4343, 0.0
      %v4348 = vmax.f32 %v4344, 0.0
      %v4349 = vmax.f32 %v4345, 0.0
      %v4350 = vmax.f32 %v4346, 0.0
      %v4351 = vadd.f32 %v3626, %v4347
      %v4352 = vadd.f32 %v3627, %v4348
      %v4353 = vadd.f32 %v3628, %v4349
      %v4354 = vadd.f32 %v3629, %v4350
      %s4355 = scalar_lea.vmem %s359, 1536
      %v4356 = vld [vmem:[%s4355] sm:$0xf]
      %v4357 = vld [vmem:[%s4355 + $0x4] sm:$0xf]
      %v4358 = vld [vmem:[%s4355 + $0x8] sm:$0xf]
      %v4359 = vld [vmem:[%s4355 + $0xc] sm:$0xf]
      %v4360 = vld [vmem:[%s4355 + $0x10] sm:$0xf]
      %v4361 = vld [vmem:[%s4355 + $0x14] sm:$0xf]
      %v4362 = vld [vmem:[%s4355 + $0x18] sm:$0xf]
      %v4363 = vld [vmem:[%s4355 + $0x1c] sm:$0xf]
      %v4364 = vld [vmem:[%s4355 + $0x20] sm:$0xf]
      %v4365 = vld [vmem:[%s4355 + $0x24] sm:$0xf]
      %v4366 = vld [vmem:[%s4355 + $0x28] sm:$0xf]
      %v4367 = vld [vmem:[%s4355 + $0x2c] sm:$0xf]
      %v4368 = vld [vmem:[%s4355 + $0x30] sm:$0xf]
      %v4369 = vld [vmem:[%s4355 + $0x34] sm:$0xf]
      %v4370 = vld [vmem:[%s4355 + $0x38] sm:$0xf]
      %v4371 = vld [vmem:[%s4355 + $0x3c] sm:$0xf]
      %v4372 = vld [vmem:[%s4355 + $0x40] sm:$0xf]
      %v4373 = vld [vmem:[%s4355 + $0x44] sm:$0xf]
      %v4374 = vld [vmem:[%s4355 + $0x48] sm:$0xf]
      %v4375 = vld [vmem:[%s4355 + $0x4c] sm:$0xf]
      %v4376 = vld [vmem:[%s4355 + $0x50] sm:$0xf]
      %v4377 = vld [vmem:[%s4355 + $0x54] sm:$0xf]
      %v4378 = vld [vmem:[%s4355 + $0x58] sm:$0xf]
      %v4379 = vld [vmem:[%s4355 + $0x5c] sm:$0xf]
      %v4380 = vld [vmem:[%s4355 + $0x60] sm:$0xf]
      %v4381 = vld [vmem:[%s4355 + $0x64] sm:$0xf]
      %v4382 = vld [vmem:[%s4355 + $0x68] sm:$0xf]
      %v4383 = vld [vmem:[%s4355 + $0x6c] sm:$0xf]
      %v4384 = vld [vmem:[%s4355 + $0x70] sm:$0xf]
      %v4385 = vld [vmem:[%s4355 + $0x74] sm:$0xf]
      %v4386 = vld [vmem:[%s4355 + $0x78] sm:$0xf]
      %v4387 = vld [vmem:[%s4355 + $0x7c] sm:$0xf]
      %v4388 = vld [vmem:[%s4355 + $0x80] sm:$0xf]
      %v4389 = vld [vmem:[%s4355 + $0x84] sm:$0xf]
      %v4390 = vld [vmem:[%s4355 + $0x88] sm:$0xf]
      %v4391 = vld [vmem:[%s4355 + $0x8c] sm:$0xf]
      %v4392 = vld [vmem:[%s4355 + $0x90] sm:$0xf]
      %v4393 = vld [vmem:[%s4355 + $0x94] sm:$0xf]
      %v4394 = vld [vmem:[%s4355 + $0x98] sm:$0xf]
      %v4395 = vld [vmem:[%s4355 + $0x9c] sm:$0xf]
      %v4396 = vld [vmem:[%s4355 + $0xa0] sm:$0xf]
      %v4397 = vld [vmem:[%s4355 + $0xa4] sm:$0xf]
      %v4398 = vld [vmem:[%s4355 + $0xa8] sm:$0xf]
      %v4399 = vld [vmem:[%s4355 + $0xac] sm:$0xf]
      %v4400 = vld [vmem:[%s4355 + $0xb0] sm:$0xf]
      %v4401 = vld [vmem:[%s4355 + $0xb4] sm:$0xf]
      %v4402 = vld [vmem:[%s4355 + $0xb8] sm:$0xf]
      %v4403 = vld [vmem:[%s4355 + $0xbc] sm:$0xf]
      %v4404 = vld [vmem:[%s4355 + $0xc0] sm:$0xf]
      %v4405 = vld [vmem:[%s4355 + $0xc4] sm:$0xf]
      %v4406 = vld [vmem:[%s4355 + $0xc8] sm:$0xf]
      %v4407 = vld [vmem:[%s4355 + $0xcc] sm:$0xf]
      %v4408 = vld [vmem:[%s4355 + $0xd0] sm:$0xf]
      %v4409 = vld [vmem:[%s4355 + $0xd4] sm:$0xf]
      %v4410 = vld [vmem:[%s4355 + $0xd8] sm:$0xf]
      %v4411 = vld [vmem:[%s4355 + $0xdc] sm:$0xf]
      %v4412 = vld [vmem:[%s4355 + $0xe0] sm:$0xf]
      %v4413 = vld [vmem:[%s4355 + $0xe4] sm:$0xf]
      %v4414 = vld [vmem:[%s4355 + $0xe8] sm:$0xf]
      %v4415 = vld [vmem:[%s4355 + $0xec] sm:$0xf]
      %v4416 = vld [vmem:[%s4355 + $0xf0] sm:$0xf]
      %v4417 = vld [vmem:[%s4355 + $0xf4] sm:$0xf]
      %v4418 = vld [vmem:[%s4355 + $0xf8] sm:$0xf]
      %v4419 = vld [vmem:[%s4355 + $0xfc] sm:$0xf]
      %v4420 = vld [vmem:[%s4355 + $0x100] sm:$0xf]
      %v4421 = vld [vmem:[%s4355 + $0x104] sm:$0xf]
      %v4422 = vld [vmem:[%s4355 + $0x108] sm:$0xf]
      %v4423 = vld [vmem:[%s4355 + $0x10c] sm:$0xf]
      %v4424 = vld [vmem:[%s4355 + $0x110] sm:$0xf]
      %v4425 = vld [vmem:[%s4355 + $0x114] sm:$0xf]
      %v4426 = vld [vmem:[%s4355 + $0x118] sm:$0xf]
      %v4427 = vld [vmem:[%s4355 + $0x11c] sm:$0xf]
      %v4428 = vld [vmem:[%s4355 + $0x120] sm:$0xf]
      %v4429 = vld [vmem:[%s4355 + $0x124] sm:$0xf]
      %v4430 = vld [vmem:[%s4355 + $0x128] sm:$0xf]
      %v4431 = vld [vmem:[%s4355 + $0x12c] sm:$0xf]
      %v4432 = vld [vmem:[%s4355 + $0x130] sm:$0xf]
      %v4433 = vld [vmem:[%s4355 + $0x134] sm:$0xf]
      %v4434 = vld [vmem:[%s4355 + $0x138] sm:$0xf]
      %v4435 = vld [vmem:[%s4355 + $0x13c] sm:$0xf]
      %v4436 = vld [vmem:[%s4355 + $0x140] sm:$0xf]
      %v4437 = vld [vmem:[%s4355 + $0x144] sm:$0xf]
      %v4438 = vld [vmem:[%s4355 + $0x148] sm:$0xf]
      %v4439 = vld [vmem:[%s4355 + $0x14c] sm:$0xf]
      %v4440 = vld [vmem:[%s4355 + $0x150] sm:$0xf]
      %v4441 = vld [vmem:[%s4355 + $0x154] sm:$0xf]
      %v4442 = vld [vmem:[%s4355 + $0x158] sm:$0xf]
      %v4443 = vld [vmem:[%s4355 + $0x15c] sm:$0xf]
      %v4444 = vld [vmem:[%s4355 + $0x160] sm:$0xf]
      %v4445 = vld [vmem:[%s4355 + $0x164] sm:$0xf]
      %v4446 = vld [vmem:[%s4355 + $0x168] sm:$0xf]
      %v4447 = vld [vmem:[%s4355 + $0x16c] sm:$0xf]
      %v4448 = vld [vmem:[%s4355 + $0x170] sm:$0xf]
      %v4449 = vld [vmem:[%s4355 + $0x174] sm:$0xf]
      %v4450 = vld [vmem:[%s4355 + $0x178] sm:$0xf]
      %v4451 = vld [vmem:[%s4355 + $0x17c] sm:$0xf]
      %v4452 = vld [vmem:[%s4355 + $0x180] sm:$0xf]
      %v4453 = vld [vmem:[%s4355 + $0x184] sm:$0xf]
      %v4454 = vld [vmem:[%s4355 + $0x188] sm:$0xf]
      %v4455 = vld [vmem:[%s4355 + $0x18c] sm:$0xf]
      %v4456 = vld [vmem:[%s4355 + $0x190] sm:$0xf]
      %v4457 = vld [vmem:[%s4355 + $0x194] sm:$0xf]
      %v4458 = vld [vmem:[%s4355 + $0x198] sm:$0xf]
      %v4459 = vld [vmem:[%s4355 + $0x19c] sm:$0xf]
      %v4460 = vld [vmem:[%s4355 + $0x1a0] sm:$0xf]
      %v4461 = vld [vmem:[%s4355 + $0x1a4] sm:$0xf]
      %v4462 = vld [vmem:[%s4355 + $0x1a8] sm:$0xf]
      %v4463 = vld [vmem:[%s4355 + $0x1ac] sm:$0xf]
      %v4464 = vld [vmem:[%s4355 + $0x1b0] sm:$0xf]
      %v4465 = vld [vmem:[%s4355 + $0x1b4] sm:$0xf]
      %v4466 = vld [vmem:[%s4355 + $0x1b8] sm:$0xf]
      %v4467 = vld [vmem:[%s4355 + $0x1bc] sm:$0xf]
      %v4468 = vld [vmem:[%s4355 + $0x1c0] sm:$0xf]
      %v4469 = vld [vmem:[%s4355 + $0x1c4] sm:$0xf]
      %v4470 = vld [vmem:[%s4355 + $0x1c8] sm:$0xf]
      %v4471 = vld [vmem:[%s4355 + $0x1cc] sm:$0xf]
      %v4472 = vld [vmem:[%s4355 + $0x1d0] sm:$0xf]
      %v4473 = vld [vmem:[%s4355 + $0x1d4] sm:$0xf]
      %v4474 = vld [vmem:[%s4355 + $0x1d8] sm:$0xf]
      %v4475 = vld [vmem:[%s4355 + $0x1dc] sm:$0xf]
      %v4476 = vld [vmem:[%s4355 + $0x1e0] sm:$0xf]
      %v4477 = vld [vmem:[%s4355 + $0x1e4] sm:$0xf]
      %v4478 = vld [vmem:[%s4355 + $0x1e8] sm:$0xf]
      %v4479 = vld [vmem:[%s4355 + $0x1ec] sm:$0xf]
      %v4480 = vld [vmem:[%s4355 + $0x1f0] sm:$0xf]
      %v4481 = vld [vmem:[%s4355 + $0x1f4] sm:$0xf]
      %v4482 = vld [vmem:[%s4355 + $0x1f8] sm:$0xf]
      %v4483 = vld [vmem:[%s4355 + $0x1fc] sm:$0xf]
      %v4612 = vunpack.c.l.b16 %v4356
      %v4613 = vunpack.c.l.b16 %v4357
      %v4614 = vunpack.c.l.b16 %v4358
      %v4615 = vunpack.c.l.b16 %v4359
      %v4616 = vunpack.c.l.b16 %v4360
      %v4617 = vunpack.c.l.b16 %v4361
      %v4618 = vunpack.c.l.b16 %v4362
      %v4619 = vunpack.c.l.b16 %v4363
      %v4620 = vunpack.c.l.b16 %v4364
      %v4621 = vunpack.c.l.b16 %v4365
      %v4622 = vunpack.c.l.b16 %v4366
      %v4623 = vunpack.c.l.b16 %v4367
      %v4624 = vunpack.c.l.b16 %v4368
      %v4625 = vunpack.c.l.b16 %v4369
      %v4626 = vunpack.c.l.b16 %v4370
      %v4627 = vunpack.c.l.b16 %v4371
      %v4628 = vunpack.c.l.b16 %v4372
      %v4629 = vunpack.c.l.b16 %v4373
      %v4630 = vunpack.c.l.b16 %v4374
      %v4631 = vunpack.c.l.b16 %v4375
      %v4632 = vunpack.c.l.b16 %v4376
      %v4633 = vunpack.c.l.b16 %v4377
      %v4634 = vunpack.c.l.b16 %v4378
      %v4635 = vunpack.c.l.b16 %v4379
      %v4636 = vunpack.c.l.b16 %v4380
      %v4637 = vunpack.c.l.b16 %v4381
      %v4638 = vunpack.c.l.b16 %v4382
      %v4639 = vunpack.c.l.b16 %v4383
      %v4640 = vunpack.c.l.b16 %v4384
      %v4641 = vunpack.c.l.b16 %v4385
      %v4642 = vunpack.c.l.b16 %v4386
      %v4643 = vunpack.c.l.b16 %v4387
      %v4644 = vunpack.c.l.b16 %v4388
      %v4645 = vunpack.c.l.b16 %v4389
      %v4646 = vunpack.c.l.b16 %v4390
      %v4647 = vunpack.c.l.b16 %v4391
      %v4648 = vunpack.c.l.b16 %v4392
      %v4649 = vunpack.c.l.b16 %v4393
      %v4650 = vunpack.c.l.b16 %v4394
      %v4651 = vunpack.c.l.b16 %v4395
      %v4652 = vunpack.c.l.b16 %v4396
      %v4653 = vunpack.c.l.b16 %v4397
      %v4654 = vunpack.c.l.b16 %v4398
      %v4655 = vunpack.c.l.b16 %v4399
      %v4656 = vunpack.c.l.b16 %v4400
      %v4657 = vunpack.c.l.b16 %v4401
      %v4658 = vunpack.c.l.b16 %v4402
      %v4659 = vunpack.c.l.b16 %v4403
      %v4660 = vunpack.c.l.b16 %v4404
      %v4661 = vunpack.c.l.b16 %v4405
      %v4662 = vunpack.c.l.b16 %v4406
      %v4663 = vunpack.c.l.b16 %v4407
      %v4664 = vunpack.c.l.b16 %v4408
      %v4665 = vunpack.c.l.b16 %v4409
      %v4666 = vunpack.c.l.b16 %v4410
      %v4667 = vunpack.c.l.b16 %v4411
      %v4668 = vunpack.c.l.b16 %v4412
      %v4669 = vunpack.c.l.b16 %v4413
      %v4670 = vunpack.c.l.b16 %v4414
      %v4671 = vunpack.c.l.b16 %v4415
      %v4672 = vunpack.c.l.b16 %v4416
      %v4673 = vunpack.c.l.b16 %v4417
      %v4674 = vunpack.c.l.b16 %v4418
      %v4675 = vunpack.c.l.b16 %v4419
      %v4676 = vunpack.c.l.b16 %v4420
      %v4677 = vunpack.c.l.b16 %v4421
      %v4678 = vunpack.c.l.b16 %v4422
      %v4679 = vunpack.c.l.b16 %v4423
      %v4680 = vunpack.c.l.b16 %v4424
      %v4681 = vunpack.c.l.b16 %v4425
      %v4682 = vunpack.c.l.b16 %v4426
      %v4683 = vunpack.c.l.b16 %v4427
      %v4684 = vunpack.c.l.b16 %v4428
      %v4685 = vunpack.c.l.b16 %v4429
      %v4686 = vunpack.c.l.b16 %v4430
      %v4687 = vunpack.c.l.b16 %v4431
      %v4688 = vunpack.c.l.b16 %v4432
      %v4689 = vunpack.c.l.b16 %v4433
      %v4690 = vunpack.c.l.b16 %v4434
      %v4691 = vunpack.c.l.b16 %v4435
      %v4692 = vunpack.c.l.b16 %v4436
      %v4693 = vunpack.c.l.b16 %v4437
      %v4694 = vunpack.c.l.b16 %v4438
      %v4695 = vunpack.c.l.b16 %v4439
      %v4696 = vunpack.c.l.b16 %v4440
      %v4697 = vunpack.c.l.b16 %v4441
      %v4698 = vunpack.c.l.b16 %v4442
      %v4699 = vunpack.c.l.b16 %v4443
      %v4700 = vunpack.c.l.b16 %v4444
      %v4701 = vunpack.c.l.b16 %v4445
      %v4702 = vunpack.c.l.b16 %v4446
      %v4703 = vunpack.c.l.b16 %v4447
      %v4704 = vunpack.c.l.b16 %v4448
      %v4705 = vunpack.c.l.b16 %v4449
      %v4706 = vunpack.c.l.b16 %v4450
      %v4707 = vunpack.c.l.b16 %v4451
      %v4708 = vunpack.c.l.b16 %v4452
      %v4709 = vunpack.c.l.b16 %v4453
      %v4710 = vunpack.c.l.b16 %v4454
      %v4711 = vunpack.c.l.b16 %v4455
      %v4712 = vunpack.c.l.b16 %v4456
      %v4713 = vunpack.c.l.b16 %v4457
      %v4714 = vunpack.c.l.b16 %v4458
      %v4715 = vunpack.c.l.b16 %v4459
      %v4716 = vunpack.c.l.b16 %v4460
      %v4717 = vunpack.c.l.b16 %v4461
      %v4718 = vunpack.c.l.b16 %v4462
      %v4719 = vunpack.c.l.b16 %v4463
      %v4720 = vunpack.c.l.b16 %v4464
      %v4721 = vunpack.c.l.b16 %v4465
      %v4722 = vunpack.c.l.b16 %v4466
      %v4723 = vunpack.c.l.b16 %v4467
      %v4724 = vunpack.c.l.b16 %v4468
      %v4725 = vunpack.c.l.b16 %v4469
      %v4726 = vunpack.c.l.b16 %v4470
      %v4727 = vunpack.c.l.b16 %v4471
      %v4728 = vunpack.c.l.b16 %v4472
      %v4729 = vunpack.c.l.b16 %v4473
      %v4730 = vunpack.c.l.b16 %v4474
      %v4731 = vunpack.c.l.b16 %v4475
      %v4732 = vunpack.c.l.b16 %v4476
      %v4733 = vunpack.c.l.b16 %v4477
      %v4734 = vunpack.c.l.b16 %v4478
      %v4735 = vunpack.c.l.b16 %v4479
      %v4736 = vunpack.c.l.b16 %v4480
      %v4737 = vunpack.c.l.b16 %v4481
      %v4738 = vunpack.c.l.b16 %v4482
      %v4739 = vunpack.c.l.b16 %v4483
      %v4740 = vpack.c.b16 %v4613, %v4612
      %v4741 = vpack.c.b16 %v4615, %v4614
      %v4742 = vpack.c.b16 %v4617, %v4616
      %v4743 = vpack.c.b16 %v4619, %v4618
      %v4744 = vpack.c.b16 %v4621, %v4620
      %v4745 = vpack.c.b16 %v4623, %v4622
      %v4746 = vpack.c.b16 %v4625, %v4624
      %v4747 = vpack.c.b16 %v4627, %v4626
      %v4748 = vpack.c.b16 %v4629, %v4628
      %v4749 = vpack.c.b16 %v4631, %v4630
      %v4750 = vpack.c.b16 %v4633, %v4632
      %v4751 = vpack.c.b16 %v4635, %v4634
      %v4752 = vpack.c.b16 %v4637, %v4636
      %v4753 = vpack.c.b16 %v4639, %v4638
      %v4754 = vpack.c.b16 %v4641, %v4640
      %v4755 = vpack.c.b16 %v4643, %v4642
      %v4756 = vpack.c.b16 %v4645, %v4644
      %v4757 = vpack.c.b16 %v4647, %v4646
      %v4758 = vpack.c.b16 %v4649, %v4648
      %v4759 = vpack.c.b16 %v4651, %v4650
      %v4760 = vpack.c.b16 %v4653, %v4652
      %v4761 = vpack.c.b16 %v4655, %v4654
      %v4762 = vpack.c.b16 %v4657, %v4656
      %v4763 = vpack.c.b16 %v4659, %v4658
      %v4764 = vpack.c.b16 %v4661, %v4660
      %v4765 = vpack.c.b16 %v4663, %v4662
      %v4766 = vpack.c.b16 %v4665, %v4664
      %v4767 = vpack.c.b16 %v4667, %v4666
      %v4768 = vpack.c.b16 %v4669, %v4668
      %v4769 = vpack.c.b16 %v4671, %v4670
      %v4770 = vpack.c.b16 %v4673, %v4672
      %v4771 = vpack.c.b16 %v4675, %v4674
      %v4772 = vpack.c.b16 %v4677, %v4676
      %v4773 = vpack.c.b16 %v4679, %v4678
      %v4774 = vpack.c.b16 %v4681, %v4680
      %v4775 = vpack.c.b16 %v4683, %v4682
      %v4776 = vpack.c.b16 %v4685, %v4684
      %v4777 = vpack.c.b16 %v4687, %v4686
      %v4778 = vpack.c.b16 %v4689, %v4688
      %v4779 = vpack.c.b16 %v4691, %v4690
      %v4780 = vpack.c.b16 %v4693, %v4692
      %v4781 = vpack.c.b16 %v4695, %v4694
      %v4782 = vpack.c.b16 %v4697, %v4696
      %v4783 = vpack.c.b16 %v4699, %v4698
      %v4784 = vpack.c.b16 %v4701, %v4700
      %v4785 = vpack.c.b16 %v4703, %v4702
      %v4786 = vpack.c.b16 %v4705, %v4704
      %v4787 = vpack.c.b16 %v4707, %v4706
      %v4788 = vpack.c.b16 %v4709, %v4708
      %v4789 = vpack.c.b16 %v4711, %v4710
      %v4790 = vpack.c.b16 %v4713, %v4712
      %v4791 = vpack.c.b16 %v4715, %v4714
      %v4792 = vpack.c.b16 %v4717, %v4716
      %v4793 = vpack.c.b16 %v4719, %v4718
      %v4794 = vpack.c.b16 %v4721, %v4720
      %v4795 = vpack.c.b16 %v4723, %v4722
      %v4796 = vpack.c.b16 %v4725, %v4724
      %v4797 = vpack.c.b16 %v4727, %v4726
      %v4798 = vpack.c.b16 %v4729, %v4728
      %v4799 = vpack.c.b16 %v4731, %v4730
      %v4800 = vpack.c.b16 %v4733, %v4732
      %v4801 = vpack.c.b16 %v4735, %v4734
      %v4802 = vpack.c.b16 %v4737, %v4736
      %v4803 = vpack.c.b16 %v4739, %v4738
      %4868 = vmatprep.subr.bf16.mxu0 0
      %4869 = vmatpush1.bf16.msra.mxu0 %v4740
      %4870 = vmatprep.subr.bf16.mxu0 0
      %4871 = vmatpush1.bf16.msra.mxu0 %v4741
      %4872 = vmatprep.subr.bf16.mxu0 0
      %4873 = vmatpush1.bf16.msra.mxu0 %v4742
      %4874 = vmatprep.subr.bf16.mxu0 0
      %4875 = vmatpush1.bf16.msra.mxu0 %v4743
      %4876 = vmatprep.subr.bf16.mxu0 0
      %4877 = vmatpush1.bf16.msra.mxu0 %v4744
      %4878 = vmatprep.subr.bf16.mxu0 0
      %4879 = vmatpush1.bf16.msra.mxu0 %v4745
      %4880 = vmatprep.subr.bf16.mxu0 0
      %4881 = vmatpush1.bf16.msra.mxu0 %v4746
      %4882 = vmatprep.subr.bf16.mxu0 0
      %4883 = vmatpush1.bf16.msra.mxu0 %v4747
      %4884 = vmatprep.subr.bf16.mxu0 0
      %4885 = vmatpush1.bf16.msra.mxu0 %v4748
      %4886 = vmatprep.subr.bf16.mxu0 0
      %4887 = vmatpush1.bf16.msra.mxu0 %v4749
      %4888 = vmatprep.subr.bf16.mxu0 0
      %4889 = vmatpush1.bf16.msra.mxu0 %v4750
      %4890 = vmatprep.subr.bf16.mxu0 0
      %4891 = vmatpush1.bf16.msra.mxu0 %v4751
      %4892 = vmatprep.subr.bf16.mxu0 0
      %4893 = vmatpush1.bf16.msra.mxu0 %v4752
      %4894 = vmatprep.subr.bf16.mxu0 0
      %4895 = vmatpush1.bf16.msra.mxu0 %v4753
      %4896 = vmatprep.subr.bf16.mxu0 0
      %4897 = vmatpush1.bf16.msra.mxu0 %v4754
      %4898 = vmatprep.subr.bf16.mxu0 0
      %4899 = vmatpush1.bf16.msra.mxu0 %v4755
      %4900 = vmatprep.mubr.bf16.mxu0 %v2238
      %4901 = vmatmul.mubr.bf16.gmra.mrb[0].mxu0 %v2237
      %v4902 = vpop.f32.mrb[0].mxu0
      %v4903 = vadd.f32 0.0, %v4902
      %v4904 = vpop.f32.mrb[0].mxu0
      %v4905 = vpop.f32.mrb[0].mxu0
      %v4906 = vadd.f32 0.0, %v4905
      %v4907 = vpop.f32.mrb[0].mxu0
      %4908 = vmatprep.mubr.bf16.mxu0 %v2246
      %4909 = vmatmul.mubr.bf16.gmra.mrb[0].mxu0 %v2245
      %v4910 = vpop.f32.mrb[0].mxu0
      %v4911 = vadd.f32 0.0, %v4910
      %v4912 = vpop.f32.mrb[0].mxu0
      %v4913 = vpop.f32.mrb[0].mxu0
      %v4914 = vadd.f32 0.0, %v4913
      %v4915 = vpop.f32.mrb[0].mxu0
      %4916 = vdwg.mxu0
      %4917 = vmatprep.subr.bf16.mxu0 0
      %4918 = vmatpush1.bf16.msra.mxu0 %v4756
      %4919 = vmatprep.subr.bf16.mxu0 0
      %4920 = vmatpush1.bf16.msra.mxu0 %v4757
      %4921 = vmatprep.subr.bf16.mxu0 0
      %4922 = vmatpush1.bf16.msra.mxu0 %v4758
      %4923 = vmatprep.subr.bf16.mxu0 0
      %4924 = vmatpush1.bf16.msra.mxu0 %v4759
      %4925 = vmatprep.subr.bf16.mxu0 0
      %4926 = vmatpush1.bf16.msra.mxu0 %v4760
      %4927 = vmatprep.subr.bf16.mxu0 0
      %4928 = vmatpush1.bf16.msra.mxu0 %v4761
      %4929 = vmatprep.subr.bf16.mxu0 0
      %4930 = vmatpush1.bf16.msra.mxu0 %v4762
      %4931 = vmatprep.subr.bf16.mxu0 0
      %4932 = vmatpush1.bf16.msra.mxu0 %v4763
      %4933 = vmatprep.subr.bf16.mxu0 0
      %4934 = vmatpush1.bf16.msra.mxu0 %v4764
      %4935 = vmatprep.subr.bf16.mxu0 0
      %4936 = vmatpush1.bf16.msra.mxu0 %v4765
      %4937 = vmatprep.subr.bf16.mxu0 0
      %4938 = vmatpush1.bf16.msra.mxu0 %v4766
      %4939 = vmatprep.subr.bf16.mxu0 0
      %4940 = vmatpush1.bf16.msra.mxu0 %v4767
      %4941 = vmatprep.subr.bf16.mxu0 0
      %4942 = vmatpush1.bf16.msra.mxu0 %v4768
      %4943 = vmatprep.subr.bf16.mxu0 0
      %4944 = vmatpush1.bf16.msra.mxu0 %v4769
      %4945 = vmatprep.subr.bf16.mxu0 0
      %4946 = vmatpush1.bf16.msra.mxu0 %v4770
      %4947 = vmatprep.subr.bf16.mxu0 0
      %4948 = vmatpush1.bf16.msra.mxu0 %v4771
      %4949 = vmatprep.mubr.bf16.mxu0 %v2240
      %4950 = vmatmul.mubr.bf16.gmra.mrb[0].mxu0 %v2239
      %v4951 = vpop.f32.mrb[0].mxu0
      %v4952 = vadd.f32 %v4903, %v4951
      %v4953 = vpop.f32.mrb[0].mxu0
      %v4954 = vpop.f32.mrb[0].mxu0
      %v4955 = vadd.f32 %v4906, %v4954
      %v4956 = vpop.f32.mrb[0].mxu0
      %4957 = vmatprep.mubr.bf16.mxu0 %v2248
      %4958 = vmatmul.mubr.bf16.gmra.mrb[0].mxu0 %v2247
      %v4959 = vpop.f32.mrb[0].mxu0
      %v4960 = vadd.f32 %v4911, %v4959
      %v4961 = vpop.f32.mrb[0].mxu0
      %v4962 = vpop.f32.mrb[0].mxu0
      %v4963 = vadd.f32 %v4914, %v4962
      %v4964 = vpop.f32.mrb[0].mxu0
      %4965 = vdwg.mxu0
      %4966 = vmatprep.subr.bf16.mxu0 0
      %4967 = vmatpush1.bf16.msra.mxu0 %v4772
      %4968 = vmatprep.subr.bf16.mxu0 0
      %4969 = vmatpush1.bf16.msra.mxu0 %v4773
      %4970 = vmatprep.subr.bf16.mxu0 0
      %4971 = vmatpush1.bf16.msra.mxu0 %v4774
      %4972 = vmatprep.subr.bf16.mxu0 0
      %4973 = vmatpush1.bf16.msra.mxu0 %v4775
      %4974 = vmatprep.subr.bf16.mxu0 0
      %4975 = vmatpush1.bf16.msra.mxu0 %v4776
      %4976 = vmatprep.subr.bf16.mxu0 0
      %4977 = vmatpush1.bf16.msra.mxu0 %v4777
      %4978 = vmatprep.subr.bf16.mxu0 0
      %4979 = vmatpush1.bf16.msra.mxu0 %v4778
      %4980 = vmatprep.subr.bf16.mxu0 0
      %4981 = vmatpush1.bf16.msra.mxu0 %v4779
      %4982 = vmatprep.subr.bf16.mxu0 0
      %4983 = vmatpush1.bf16.msra.mxu0 %v4780
      %4984 = vmatprep.subr.bf16.mxu0 0
      %4985 = vmatpush1.bf16.msra.mxu0 %v4781
      %4986 = vmatprep.subr.bf16.mxu0 0
      %4987 = vmatpush1.bf16.msra.mxu0 %v4782
      %4988 = vmatprep.subr.bf16.mxu0 0
      %4989 = vmatpush1.bf16.msra.mxu0 %v4783
      %4990 = vmatprep.subr.bf16.mxu0 0
      %4991 = vmatpush1.bf16.msra.mxu0 %v4784
      %4992 = vmatprep.subr.bf16.mxu0 0
      %4993 = vmatpush1.bf16.msra.mxu0 %v4785
      %4994 = vmatprep.subr.bf16.mxu0 0
      %4995 = vmatpush1.bf16.msra.mxu0 %v4786
      %4996 = vmatprep.subr.bf16.mxu0 0
      %4997 = vmatpush1.bf16.msra.mxu0 %v4787
      %4998 = vmatprep.mubr.bf16.mxu0 %v2242
      %4999 = vmatmul.mubr.bf16.gmra.mrb[0].mxu0 %v2241
      %v5000 = vpop.f32.mrb[0].mxu0
      %v5001 = vadd.f32 %v4952, %v5000
      %v5002 = vpop.f32.mrb[0].mxu0
      %v5003 = vpop.f32.mrb[0].mxu0
      %v5004 = vadd.f32 %v4955, %v5003
      %v5005 = vpop.f32.mrb[0].mxu0
      %5006 = vmatprep.mubr.bf16.mxu0 %v2250
      %5007 = vmatmul.mubr.bf16.gmra.mrb[0].mxu0 %v2249
      %v5008 = vpop.f32.mrb[0].mxu0
      %v5009 = vadd.f32 %v4960, %v5008
      %v5010 = vpop.f32.mrb[0].mxu0
      %v5011 = vpop.f32.mrb[0].mxu0
      %v5012 = vadd.f32 %v4963, %v5011
      %v5013 = vpop.f32.mrb[0].mxu0
      %5014 = vdwg.mxu0
      %5015 = vmatprep.subr.bf16.mxu0 0
      %5016 = vmatpush1.bf16.msra.mxu0 %v4788
      %5017 = vmatprep.subr.bf16.mxu0 0
      %5018 = vmatpush1.bf16.msra.mxu0 %v4789
      %5019 = vmatprep.subr.bf16.mxu0 0
      %5020 = vmatpush1.bf16.msra.mxu0 %v4790
      %5021 = vmatprep.subr.bf16.mxu0 0
      %5022 = vmatpush1.bf16.msra.mxu0 %v4791
      %5023 = vmatprep.subr.bf16.mxu0 0
      %5024 = vmatpush1.bf16.msra.mxu0 %v4792
      %5025 = vmatprep.subr.bf16.mxu0 0
      %5026 = vmatpush1.bf16.msra.mxu0 %v4793
      %5027 = vmatprep.subr.bf16.mxu0 0
      %5028 = vmatpush1.bf16.msra.mxu0 %v4794
      %5029 = vmatprep.subr.bf16.mxu0 0
      %5030 = vmatpush1.bf16.msra.mxu0 %v4795
      %5031 = vmatprep.subr.bf16.mxu0 0
      %5032 = vmatpush1.bf16.msra.mxu0 %v4796
      %5033 = vmatprep.subr.bf16.mxu0 0
      %5034 = vmatpush1.bf16.msra.mxu0 %v4797
      %5035 = vmatprep.subr.bf16.mxu0 0
      %5036 = vmatpush1.bf16.msra.mxu0 %v4798
      %5037 = vmatprep.subr.bf16.mxu0 0
      %5038 = vmatpush1.bf16.msra.mxu0 %v4799
      %5039 = vmatprep.subr.bf16.mxu0 0
      %5040 = vmatpush1.bf16.msra.mxu0 %v4800
      %5041 = vmatprep.subr.bf16.mxu0 0
      %5042 = vmatpush1.bf16.msra.mxu0 %v4801
      %5043 = vmatprep.subr.bf16.mxu0 0
      %5044 = vmatpush1.bf16.msra.mxu0 %v4802
      %5045 = vmatprep.subr.bf16.mxu0 0
      %5046 = vmatpush1.bf16.msra.mxu0 %v4803
      %5047 = vmatprep.mubr.bf16.mxu0 %v2244
      %5048 = vmatmul.mubr.bf16.gmra.mrb[0].mxu0 %v2243
      %v5049 = vpop.f32.mrb[0].mxu0
      %v5050 = vadd.f32 %v5001, %v5049
      %v5051 = vpop.f32.mrb[0].mxu0
      %v5052 = vpop.f32.mrb[0].mxu0
      %v5053 = vadd.f32 %v5004, %v5052
      %v5054 = vpop.f32.mrb[0].mxu0
      %5055 = vmatprep.mubr.bf16.mxu0 %v2252
      %5056 = vmatmul.mubr.bf16.gmra.mrb[0].mxu0 %v2251
      %v5057 = vpop.f32.mrb[0].mxu0
      %v5058 = vadd.f32 %v5009, %v5057
      %v5059 = vpop.f32.mrb[0].mxu0
      %v5060 = vpop.f32.mrb[0].mxu0
      %v5061 = vadd.f32 %v5012, %v5060
      %v5062 = vpop.f32.mrb[0].mxu0
      %5063 = vdwg.mxu0
      %v5064 = vmul.f32 %v5050, %v2852
      %v5065 = vmul.f32 %v5053, %v2857
      %v5066 = vmul.f32 %v5058, %v2862
      %v5067 = vmul.f32 %v5061, %v2867
      %v5068 = vadd.f32 %v5064, %v2876
      %v5069 = vadd.f32 %v5065, %v2881
      %v5070 = vadd.f32 %v5066, %v2886
      %v5071 = vadd.f32 %v5067, %v2891
      %v5072 = vmax.f32 %v5068, 0.0
      %v5073 = vmax.f32 %v5069, 0.0
      %v5074 = vmax.f32 %v5070, 0.0
      %v5075 = vmax.f32 %v5071, 0.0
      %v5076 = vadd.f32 %v4351, %v5072
      %v5077 = vadd.f32 %v4352, %v5073
      %v5078 = vadd.f32 %v4353, %v5074
      %v5079 = vadd.f32 %v4354, %v5075
      %vm5080 = vcmask 130048
      %5081 = vst.msk [vmem:[%s367] sm:$0xff] %vm5080, %v5076
      %5082 = vst.msk [vmem:[%s367 + $0x8] sm:$0xff] %vm5080, %v5077
      %5083 = vst.msk [vmem:[%s367 + $0x10] sm:$0xff] %vm5080, %v5078
      %5084 = vst.msk [vmem:[%s367 + $0x18] sm:$0xff] %vm5080, %v5079
      %p5085 = scmp.lt.s32.totalorder %s23, 1
      %s5086 = scalar_select %p5085, %s23, 1
      %p5087 = scmp.lt.s32.totalorder %s24, 0
      %s5088 = scalar_select %p5087, %s24, 0
      %s5089 = smul.addr %s5086, 4
      %s5090 = sadd.s32 %s5088, %s5089
      %s5091 = smul.addr %s5090, 8
      %s5092 = scalar_lea.vmem %s8, %s5091
      // Predicated region
      $region53: #{dbl_attention_forward.1} parent=51 // pred_check
        %p5093 = pneg %p233
      $region54: #{dbl_attention_forward.1} parent=51 // pred_check_branch
        %5095 = sbr.rel (%p5093) target = $region56
      $region55: #{dbl_attention_forward.1} parent=51 // pred_region
        _
      $region56: #{dbl_attention_forward.1} parent=51 // pred_fallthru
        _
    $region52: #{dbl_attention_forward.1} parent=5 // pred_fallthru
      _
    %p5096 = scmp.le.s32.totalorder 2, %s14
    // Predicated region
    $region57: #{dbl_attention_forward.1} parent=5 // pred_check
      %p5097 = pneg %p5096
    $region58: #{dbl_attention_forward.1} parent=5 // pred_check_branch
      %5099 = sbr.rel (%p5097) target = $region60
    $region59: #{dbl_attention_forward.1} parent=5 // pred_region
      %s5100 = ssub.s32 %s14, 2
      // Predicated region
      $region61: #{dbl_attention_forward.1} parent=59 // pred_check
        %p5101 = pneg %p239
      $region62: #{dbl_attention_forward.1} parent=59 // pred_check_branch
        %5103 = sbr.rel (%p5101) target = $region64
      $region63: #{dbl_attention_forward.1} parent=59 // pred_region
        %p5104 = scmp.lt.s32.totalorder %s25, 1
        %s5105 = scalar_select %p5104, %s25, 1
        %p5106 = scmp.lt.s32.totalorder %s26, 0
        %s5107 = scalar_select %p5106, %s26, 0
        %s5108 = smul.addr %s5105, 4
        %s5109 = sadd.s32 %s5107, %s5108
        %s5110 = smul.addr %s5109, 8
        %s5111 = scalar_lea.vmem %s8, %s5110
      $region64: #{dbl_attention_forward.1} parent=59 // pred_fallthru
        _
    $region60: #{dbl_attention_forward.1} parent=5 // pred_fallthru
      _
  $region6: #{dbl_attention_forward.1} parent=0 // loop_footer
    %s18 = sadd.s32 1, %s14
  $region7: #{dbl_attention_forward.1} parent=0 // loop_footer_branch
    %13 = sbr.rel target = $region3
  $region8: #{dbl_attention_forward.1} parent=0 // loop_exit
    _

</llo_original>
